<compile_context>
chip_gen: v5e
topology: v5e:2x2
jax: 0.10.0
libtpu: 0.0.40
codegen_flags: <defaults>
</compile_context>

<pallas_src>
import jax
import jax.numpy as jnp
from jax import lax
from jax.experimental import pallas as pl
from jax.experimental.pallas import tpu as pltpu

_BN_EPS = 1e-5
_VMEM_LIMIT = 48 * 1024 * 1024        # safe on v5e/v6e (128 MiB) and v7x (64 MiB)


def _pick_tile_rows(ho, wo, target=4096):
    """Largest divisor of `ho` whose output tile has <= `target` pixels.

    Falls back to 1 if ho has no suitable divisor (correct, just smaller tiles).
    """
    best = 1
    for d in range(1, ho + 1):
        if ho % d == 0 and d * wo <= target:
            best = d
    return best


# --------------------------------------------------------------------------- #
# Kernel A: Conv3x3 stride-2 (as 2x2 stride-1 conv on space-to-depth input)
#           + folded-BN bias + ReLU.
# --------------------------------------------------------------------------- #
def _layer1_kernel(z_ref, w_ref, b_ref, o_ref, acc_ref):
    """z_ref: (ho+1, wo+1, 4*cin) bf16 full image (includes the conv padding)
    w_ref: (4, 4*cin, cout) bf16 per-tap weights (BN scale folded)
    b_ref: (1, cout) f32 folded BN bias
    o_ref: (th, wo, cout) bf16 output row block
    acc_ref: (th*wo, cout) f32 scratch accumulator
    """
    th, wo, cout = o_ref.shape
    cin4 = z_ref.shape[-1]
    r0 = pl.program_id(1) * th

    for t, (ah, aw) in enumerate(((0, 0), (0, 1), (1, 0), (1, 1))):
        tap = z_ref[pl.ds(r0 + ah, th), pl.ds(aw, wo), :]
        contrib = jnp.dot(tap.reshape(th * wo, cin4), w_ref[t],
                          preferred_element_type=jnp.float32)
        if t == 0:
            acc_ref[...] = contrib
        else:
            acc_ref[...] += contrib

    y = jnp.maximum(acc_ref[...] + b_ref[...], 0.0)          # f32 epilogue
    o_ref[...] = y.reshape(th, wo, cout).astype(o_ref.dtype)


def _layer1_call(z, w_taps, bias, ho, wo, th, cout, out_dtype):
    n = z.shape[0]
    n_rb = ho // th
    return pl.pallas_call(
        _layer1_kernel,
        out_shape=jax.ShapeDtypeStruct((n, ho, wo, cout), out_dtype),
        grid=(n, n_rb),
        in_specs=[
            pl.BlockSpec((None,) + z.shape[1:], lambda b, j: (b, 0, 0, 0)),
            pl.BlockSpec(w_taps.shape, lambda b, j: (0, 0, 0)),
            pl.BlockSpec(bias.shape, lambda b, j: (0, 0)),
        ],
        out_specs=pl.BlockSpec((None, th, wo, cout), lambda b, j: (b, j, 0, 0)),
        scratch_shapes=[pltpu.VMEM((th * wo, cout), jnp.float32)],
        compiler_params=pltpu.CompilerParams(
            dimension_semantics=("parallel", "parallel"),
            vmem_limit_bytes=_VMEM_LIMIT),
    )(z, w_taps, bias)


# --------------------------------------------------------------------------- #
# Kernel B: FUSED [Conv3x3/s1 + BN + ReLU] x 2.  The layer-2 activation stays
# in a VMEM scratch (no HBM round trip).  Spatial padding is folded in-kernel.
# --------------------------------------------------------------------------- #
def _layer23_kernel(y1_ref, w2_ref, b2_ref, w3_ref, b3_ref, o_ref,
                    p1_ref, p2_ref, acc2_ref, acc3_ref):
    """y1_ref: (ho, wo, c) bf16 full layer-1 image (fetched once per batch)
    w2_ref/w3_ref: (9, c, c) bf16; b2_ref/b3_ref: (1, c) f32
    o_ref: (th, wo, c) f32 final output row block
    p1_ref: (ho+4, wo+2, c) bf16 scratch = zero-padded y1 (persists over j)
    p2_ref: (th+2, wo+2, c) bf16 scratch = zero-padded y2 row window
    acc2_ref: ((th+2)*wo, c) f32;  acc3_ref: (th*wo, c) f32
    """
    th, wo, c = o_ref.shape
    ho = y1_ref.shape[0]
    j = pl.program_id(1)
    n_rb = pl.num_programs(1)
    r0 = j * th

    # Once per batch element: build the spatially padded layer-1 activation in
    # VMEM (conv padding folded into the kernel; halo zeroed, interior copied).
    @pl.when(j == 0)
    def _():
        p1_ref[...] = jnp.zeros(p1_ref.shape, p1_ref.dtype)
        p1_ref[2:2 + ho, 1:1 + wo, :] = y1_ref[...]

    # ---- layer 2: compute y2 rows [r0-1, r0+th+1) (one halo row on each side
    #      for layer 3) into the padded VMEM scratch p2.
    for kh in range(3):
        for kw in range(3):
            tap = p1_ref[pl.ds(r0 + kh, th + 2), pl.ds(kw, wo), :]
            contrib = jnp.dot(tap.reshape((th + 2) * wo, c), w2_ref[kh * 3 + kw],
                              preferred_element_type=jnp.float32)
            if kh == 0 and kw == 0:
                acc2_ref[...] = contrib
            else:
                acc2_ref[...] += contrib
    y2 = jnp.maximum(acc2_ref[...] + b2_ref[...], 0.0)

    p2_ref[:, 0:1, :] = jnp.zeros((th + 2, 1, c), p2_ref.dtype)          # left pad col
    p2_ref[:, wo + 1:wo + 2, :] = jnp.zeros((th + 2, 1, c), p2_ref.dtype)  # right pad col
    p2_ref[:, 1:1 + wo, :] = y2.reshape(th + 2, wo, c).astype(p2_ref.dtype)

    @pl.when(j == 0)                 # halo row above the image -> conv padding
    def _():
        p2_ref[0:1, :, :] = jnp.zeros((1, wo + 2, c), p2_ref.dtype)

    @pl.when(j == n_rb - 1)          # halo row below the image -> conv padding
    def _():
        p2_ref[th + 1:th + 2, :, :] = jnp.zeros((1, wo + 2, c), p2_ref.dtype)

    # ---- layer 3: consumes the VMEM-resident y2 tile, writes real channels.
    for kh in range(3):
        for kw in range(3):
            tap = p2_ref[pl.ds(kh, th), pl.ds(kw, wo), :]
            contrib = jnp.dot(tap.reshape(th * wo, c), w3_ref[kh * 3 + kw],
                              preferred_element_type=jnp.float32)
            if kh == 0 and kw == 0:
                acc3_ref[...] = contrib
            else:
                acc3_ref[...] += contrib
    y3 = jnp.maximum(acc3_ref[...] + b3_ref[...], 0.0)
    o_ref[...] = y3.reshape(th, wo, c).astype(o_ref.dtype)


def _layer23_call(y1, w2, b2, w3, b3, th):
    n, ho, wo, c = y1.shape
    n_rb = ho // th
    return pl.pallas_call(
        _layer23_kernel,
        out_shape=jax.ShapeDtypeStruct((n, ho, wo, c), jnp.float32),
        grid=(n, n_rb),
        in_specs=[
            pl.BlockSpec((None, ho, wo, c), lambda b, j: (b, 0, 0, 0)),
            pl.BlockSpec(w2.shape, lambda b, j: (0, 0, 0)),
            pl.BlockSpec(b2.shape, lambda b, j: (0, 0)),
            pl.BlockSpec(w3.shape, lambda b, j: (0, 0, 0)),
            pl.BlockSpec(b3.shape, lambda b, j: (0, 0)),
        ],
        out_specs=pl.BlockSpec((None, th, wo, c), lambda b, j: (b, j, 0, 0)),
        scratch_shapes=[
            pltpu.VMEM((ho + 4, wo + 2, c), y1.dtype),          # padded y1 image
            pltpu.VMEM((th + 2, wo + 2, c), y1.dtype),          # padded y2 tile
            pltpu.VMEM(((th + 2) * wo, c), jnp.float32),        # layer-2 acc
            pltpu.VMEM((th * wo, c), jnp.float32),              # layer-3 acc
        ],
        compiler_params=pltpu.CompilerParams(
            # row axis must stay sequential: the padded-y1 scratch is filled at
            # j == 0 and reused by later row blocks of the same batch element.
            dimension_semantics=("parallel", "arbitrary"),
            vmem_limit_bytes=_VMEM_LIMIT),
    )(y1, w2, b2, w3, b3)


# ------------------------------ host-side glue ----------------------------- #
def _pack_taps_stride1(w, scale):
    """3x3 stride-1 conv -> (9, cin, cout) bf16 taps (BN scale folded)."""
    wf = (w * scale[:, None, None, None]).astype(jnp.float32)          # (co, ci, 3, 3)
    cin, cout = w.shape[1], w.shape[0]
    taps = jnp.transpose(wf, (2, 3, 1, 0)).reshape(9, cin, cout)       # kh*3+kw
    return taps.astype(jnp.bfloat16)


def _pack_taps_stride2(w, scale):
    """3x3 stride-2 conv rewritten as a 2x2 stride-1 conv on a s2d input."""
    cout, cin = w.shape[0], w.shape[1]
    wf = (w * scale[:, None, None, None]).astype(jnp.float32)          # (co, ci, 3, 3)
    w4 = jnp.zeros((2, 2, 2, 2, cin, cout), jnp.float32)               # (ah, aw, ph, pw, ci, co)
    for ah in range(2):
        for aw in range(2):
            for ph in range(2):
                for pw in range(2):
                    kh, kw = 2 * ah + ph, 2 * aw + pw
                    if kh < 3 and kw < 3:
                        w4 = w4.at[ah, aw, ph, pw].set(
                            jnp.transpose(wf[:, :, kh, kw], (1, 0)))
    return w4.reshape(4, 4 * cin, cout).astype(jnp.bfloat16)           # tap = ah*2+aw


def _bias2d(b):
    return b.reshape(1, -1).astype(jnp.float32)


def deblur_down_forward(x_nchw, params):
    """Forward pass: NCHW in, NCHW out (matches the PyTorch module)."""
    (w1, s1, b1), (w2, s2, b2), (w3, s3, b3) = params
    cout = w1.shape[0]

    x = jnp.transpose(x_nchw, (0, 2, 3, 1)).astype(jnp.float32)        # -> NHWC
    n, h, w_dim, cin = x.shape
    assert h % 2 == 0 and w_dim % 2 == 0, "even spatial sizes required"
    ho, wo = h // 2, w_dim // 2

    # Layer-1 input prep (raw input, cin channels only): spatial pad + space-
    # to-depth, so the stride-2 conv becomes a unit-stride 2x2 conv.  The s2d
    # array keeps its natural 4*cin channels (no 128-lane padding in HBM).
    xp = jnp.pad(x, ((0, 0), (1, 1), (1, 1), (0, 0)))                  # (N, H+2, W+2, cin)
    z = xp.reshape(n, ho + 1, 2, wo + 1, 2, cin)
    z = jnp.transpose(z, (0, 1, 3, 2, 4, 5)).reshape(n, ho + 1, wo + 1, 4 * cin)
    z = z.astype(jnp.bfloat16)

    taps1 = _pack_taps_stride2(w1, s1)
    taps2 = _pack_taps_stride1(w2, s2)
    taps3 = _pack_taps_stride1(w3, s3)

    th = _pick_tile_rows(ho, wo)

    # Kernel A: conv1(s2)+BN+ReLU -> (N, ho, wo, cout) bf16 (real channels only)
    y1 = _layer1_call(z, taps1, _bias2d(b1), ho, wo, th, cout, jnp.bfloat16)

    # Kernel B: fused conv2+BN+ReLU+conv3+BN+ReLU -> (N, ho, wo, cout) f32
    y3 = _layer23_call(y1, taps2, _bias2d(b2), taps3, _bias2d(b3), th)

    return jnp.transpose(y3, (0, 3, 1, 2))                             # -> NCHW


# --------------------------- params & reference ---------------------------- #
def init_deblur_down_params(key, in_channels, out_channels):
    """Deterministic synthetic parameters (conv weights + folded BN affine)."""
    params = []
    cins = [in_channels, out_channels, out_channels]
    for li in range(3):
        key, kw, kg, kb, km, kv = jax.random.split(key, 6)
        cin = cins[li]
        w = jax.random.normal(kw, (out_channels, cin, 3, 3), jnp.float32) * 0.1
        gamma = 1.0 + 0.1 * jax.random.normal(kg, (out_channels,), jnp.float32)
        beta = 0.1 * jax.random.normal(kb, (out_channels,), jnp.float32)
        running_mean = 0.1 * jax.random.normal(km, (out_channels,), jnp.float32)
        running_var = jnp.abs(
            1.0 + 0.1 * jax.random.normal(kv, (out_channels,), jnp.float32))
        scale = gamma / jnp.sqrt(running_var + _BN_EPS)
        bias = beta - running_mean * scale
        params.append((w, scale, bias))
    return params


def _reference_forward(x_nchw, params):
    """Pure-JAX reference (f32) for a correctness check."""
    x = x_nchw
    for (w, scale, bias), s in zip(params, (2, 1, 1)):
        x = lax.conv_general_dilated(
            x, w, window_strides=(s, s), padding=((1, 1), (1, 1)),
            dimension_numbers=("NCHW", "OIHW", "NCHW"),
            precision=lax.Precision.HIGHEST)
        x = x * scale[None, :, None, None] + bias[None, :, None, None]
        x = jnp.maximum(x, 0.0)
    return x


if __name__ == "__main__":
    key = jax.random.PRNGKey(0)
    key, kx = jax.random.split(key)

    in_channels, out_channels = 4, 8
    n, h, w = 2, 16, 16
    x = jax.random.normal(kx, (n, in_channels, h, w), jnp.float32)
    params = init_deblur_down_params(key, in_channels, out_channels)

    fwd = jax.jit(deblur_down_forward)
    out = jax.block_until_ready(fwd(x, params))

    expected_shape = (n, out_channels, h // 2, w // 2)
    assert out.shape == expected_shape, (out.shape, expected_shape)
    assert bool(jnp.all(out >= 0.0)), "ReLU output must be non-negative"

    ref = _reference_forward(x, params)
    max_err = float(jnp.max(jnp.abs(out - ref)))
    # bf16 activations/weights vs an all-f32 HIGHEST reference.
    assert max_err < 1e-1, f"kernel/reference mismatch: max abs err = {max_err}"

    print("KERNEL_OK")
</pallas_src>

<mosaic_0001>
module attributes {stable_mosaic.version = 11 : i64} {
  func.func @_layer1_kernel(%arg0: i32, %arg1: i32, %arg2: memref<1x9x9x16xbf16, #tpu.memory_space<vmem>>, %arg3: memref<4x16x8xbf16, #tpu.memory_space<vmem>>, %arg4: memref<1x8xf32, #tpu.memory_space<vmem>>, %arg5: memref<1x8x8x8xbf16, #tpu.memory_space<vmem>>, %arg6: memref<64x8xf32, #tpu.memory_space<vmem>>) attributes {dimension_semantics = [#tpu.dimension_semantics<parallel>, #tpu.dimension_semantics<parallel>], iteration_bounds = array<i64: 2, 1>, scalar_prefetch = 0 : i64, scratch_operands = 1 : i64, tpu.core_type = #tpu.core_type<tc>, window_params = [{transform_indices = @transform_0, window_bounds = array<i64: 1, 9, 9, 16>}, {pipeline_mode = #tpu.pipeline_mode<synchronous>, transform_indices = @transform_1, window_bounds = array<i64: 4, 16, 8>}, {pipeline_mode = #tpu.pipeline_mode<synchronous>, transform_indices = @transform_2, window_bounds = array<i64: 1, 8>}, {transform_indices = @transform_3, window_bounds = array<i64: 1, 8, 8, 8>}]} {
    %c8_i32 = arith.constant 8 : i32
    %0 = arith.muli %arg1, %c8_i32 : i32
    %c0_i32 = arith.constant 0 : i32
    %1 = arith.addi %0, %c0_i32 : i32
    %c0 = arith.constant 0 : index
    %2 = arith.index_cast %1 : i32 to index
    %c0_0 = arith.constant 0 : index
    %c0_1 = arith.constant 0 : index
    %3 = vector.load %arg2[%c0, %2, %c0_0, %c0_1] : memref<1x9x9x16xbf16, #tpu.memory_space<vmem>>, vector<1x8x8x16xbf16>
    %4 = vector.shape_cast %3 : vector<1x8x8x16xbf16> to vector<8x8x16xbf16>
    %5 = vector.shape_cast %4 : vector<8x8x16xbf16> to vector<64x16xbf16>
    %c0_2 = arith.constant 0 : index
    %c0_3 = arith.constant 0 : index
    %c0_4 = arith.constant 0 : index
    %6 = vector.load %arg3[%c0_2, %c0_3, %c0_4] : memref<4x16x8xbf16, #tpu.memory_space<vmem>>, vector<1x16x8xbf16>
    %7 = vector.shape_cast %6 : vector<1x16x8xbf16> to vector<16x8xbf16>
    %cst = arith.constant dense<0.000000e+00> : vector<64x8xf32>
    %8 = tpu.matmul %5, %7, %cst {dimension_numbers = #tpu.dot_dimension_numbers<[1], [0], [0], [1], [0, 0, 1, 1], [], []>} : vector<64x16xbf16>, vector<16x8xbf16>, vector<64x8xf32> -> vector<64x8xf32>
    %c0_5 = arith.constant 0 : index
    %c0_6 = arith.constant 0 : index
    %9 = vector.load %arg6[%c0_5, %c0_6] : memref<64x8xf32, #tpu.memory_space<vmem>>, vector<64x8xf32>
    tpu.vector_store %arg6[%c0_5, %c0_6], %8 {strides = array<i32>} : memref<64x8xf32, #tpu.memory_space<vmem>>, vector<64x8xf32>,
    %c0_i32_7 = arith.constant 0 : i32
    %10 = arith.addi %0, %c0_i32_7 : i32
    %c0_8 = arith.constant 0 : index
    %11 = arith.index_cast %10 : i32 to index
    %c1 = arith.constant 1 : index
    %c0_9 = arith.constant 0 : index
    %12 = vector.load %arg2[%c0_8, %11, %c1, %c0_9] : memref<1x9x9x16xbf16, #tpu.memory_space<vmem>>, vector<1x8x8x16xbf16>
    %13 = vector.shape_cast %12 : vector<1x8x8x16xbf16> to vector<8x8x16xbf16>
    %14 = vector.shape_cast %13 : vector<8x8x16xbf16> to vector<64x16xbf16>
    %c1_10 = arith.constant 1 : index
    %c0_11 = arith.constant 0 : index
    %c0_12 = arith.constant 0 : index
    %15 = vector.load %arg3[%c1_10, %c0_11, %c0_12] : memref<4x16x8xbf16, #tpu.memory_space<vmem>>, vector<1x16x8xbf16>
    %16 = vector.shape_cast %15 : vector<1x16x8xbf16> to vector<16x8xbf16>
    %cst_13 = arith.constant dense<0.000000e+00> : vector<64x8xf32>
    %17 = tpu.matmul %14, %16, %cst_13 {dimension_numbers = #tpu.dot_dimension_numbers<[1], [0], [0], [1], [0, 0, 1, 1], [], []>} : vector<64x16xbf16>, vector<16x8xbf16>, vector<64x8xf32> -> vector<64x8xf32>
    %c0_14 = arith.constant 0 : index
    %c0_15 = arith.constant 0 : index
    %18 = vector.load %arg6[%c0_14, %c0_15] : memref<64x8xf32, #tpu.memory_space<vmem>>, vector<64x8xf32>
    %19 = arith.addf %18, %17 : vector<64x8xf32>
    %c0_16 = arith.constant 0 : index
    %c0_17 = arith.constant 0 : index
    %20 = vector.load %arg6[%c0_16, %c0_17] : memref<64x8xf32, #tpu.memory_space<vmem>>, vector<64x8xf32>
    tpu.vector_store %arg6[%c0_16, %c0_17], %19 {strides = array<i32>} : memref<64x8xf32, #tpu.memory_space<vmem>>, vector<64x8xf32>,
    %c1_i32 = arith.constant 1 : i32
    %21 = arith.addi %0, %c1_i32 : i32
    %c0_18 = arith.constant 0 : index
    %22 = arith.index_cast %21 : i32 to index
    %c0_19 = arith.constant 0 : index
    %c0_20 = arith.constant 0 : index
    %23 = vector.load %arg2[%c0_18, %22, %c0_19, %c0_20] : memref<1x9x9x16xbf16, #tpu.memory_space<vmem>>, vector<1x8x8x16xbf16>
    %24 = vector.shape_cast %23 : vector<1x8x8x16xbf16> to vector<8x8x16xbf16>
    %25 = vector.shape_cast %24 : vector<8x8x16xbf16> to vector<64x16xbf16>
    %c2 = arith.constant 2 : index
    %c0_21 = arith.constant 0 : index
    %c0_22 = arith.constant 0 : index
    %26 = vector.load %arg3[%c2, %c0_21, %c0_22] : memref<4x16x8xbf16, #tpu.memory_space<vmem>>, vector<1x16x8xbf16>
    %27 = vector.shape_cast %26 : vector<1x16x8xbf16> to vector<16x8xbf16>
    %cst_23 = arith.constant dense<0.000000e+00> : vector<64x8xf32>
    %28 = tpu.matmul %25, %27, %cst_23 {dimension_numbers = #tpu.dot_dimension_numbers<[1], [0], [0], [1], [0, 0, 1, 1], [], []>} : vector<64x16xbf16>, vector<16x8xbf16>, vector<64x8xf32> -> vector<64x8xf32>
    %c0_24 = arith.constant 0 : index
    %c0_25 = arith.constant 0 : index
    %29 = vector.load %arg6[%c0_24, %c0_25] : memref<64x8xf32, #tpu.memory_space<vmem>>, vector<64x8xf32>
    %30 = arith.addf %29, %28 : vector<64x8xf32>
    %c0_26 = arith.constant 0 : index
    %c0_27 = arith.constant 0 : index
    %31 = vector.load %arg6[%c0_26, %c0_27] : memref<64x8xf32, #tpu.memory_space<vmem>>, vector<64x8xf32>
    tpu.vector_store %arg6[%c0_26, %c0_27], %30 {strides = array<i32>} : memref<64x8xf32, #tpu.memory_space<vmem>>, vector<64x8xf32>,
    %c1_i32_28 = arith.constant 1 : i32
    %32 = arith.addi %0, %c1_i32_28 : i32
    %c0_29 = arith.constant 0 : index
    %33 = arith.index_cast %32 : i32 to index
    %c1_30 = arith.constant 1 : index
    %c0_31 = arith.constant 0 : index
    %34 = vector.load %arg2[%c0_29, %33, %c1_30, %c0_31] : memref<1x9x9x16xbf16, #tpu.memory_space<vmem>>, vector<1x8x8x16xbf16>
    %35 = vector.shape_cast %34 : vector<1x8x8x16xbf16> to vector<8x8x16xbf16>
    %36 = vector.shape_cast %35 : vector<8x8x16xbf16> to vector<64x16xbf16>
    %c3 = arith.constant 3 : index
    %c0_32 = arith.constant 0 : index
    %c0_33 = arith.constant 0 : index
    %37 = vector.load %arg3[%c3, %c0_32, %c0_33] : memref<4x16x8xbf16, #tpu.memory_space<vmem>>, vector<1x16x8xbf16>
    %38 = vector.shape_cast %37 : vector<1x16x8xbf16> to vector<16x8xbf16>
    %cst_34 = arith.constant dense<0.000000e+00> : vector<64x8xf32>
    %39 = tpu.matmul %36, %38, %cst_34 {dimension_numbers = #tpu.dot_dimension_numbers<[1], [0], [0], [1], [0, 0, 1, 1], [], []>} : vector<64x16xbf16>, vector<16x8xbf16>, vector<64x8xf32> -> vector<64x8xf32>
    %c0_35 = arith.constant 0 : index
    %c0_36 = arith.constant 0 : index
    %40 = vector.load %arg6[%c0_35, %c0_36] : memref<64x8xf32, #tpu.memory_space<vmem>>, vector<64x8xf32>
    %41 = arith.addf %40, %39 : vector<64x8xf32>
    %c0_37 = arith.constant 0 : index
    %c0_38 = arith.constant 0 : index
    %42 = vector.load %arg6[%c0_37, %c0_38] : memref<64x8xf32, #tpu.memory_space<vmem>>, vector<64x8xf32>
    tpu.vector_store %arg6[%c0_37, %c0_38], %41 {strides = array<i32>} : memref<64x8xf32, #tpu.memory_space<vmem>>, vector<64x8xf32>,
    %c0_39 = arith.constant 0 : index
    %c0_40 = arith.constant 0 : index
    %43 = vector.load %arg6[%c0_39, %c0_40] : memref<64x8xf32, #tpu.memory_space<vmem>>, vector<64x8xf32>
    %c0_41 = arith.constant 0 : index
    %c0_42 = arith.constant 0 : index
    %44 = vector.load %arg4[%c0_41, %c0_42] : memref<1x8xf32, #tpu.memory_space<vmem>>, vector<1x8xf32>
    %45 = vector.broadcast %44 : vector<1x8xf32> to vector<64x8xf32>
    %46 = arith.addf %43, %45 : vector<64x8xf32>
    %cst_43 = arith.constant 0.000000e+00 : f32
    %47 = vector.broadcast %cst_43 : f32 to vector<64x8xf32>
    %48 = arith.maximumf %46, %47 : vector<64x8xf32>
    %49 = vector.shape_cast %48 : vector<64x8xf32> to vector<8x8x8xf32>
    %50 = arith.truncf %49 : vector<8x8x8xf32> to vector<8x8x8xbf16>
    %c0_44 = arith.constant 0 : index
    %c0_45 = arith.constant 0 : index
    %c0_46 = arith.constant 0 : index
    %c0_47 = arith.constant 0 : index
    %51 = vector.load %arg5[%c0_44, %c0_45, %c0_46, %c0_47] : memref<1x8x8x8xbf16, #tpu.memory_space<vmem>>, vector<1x8x8x8xbf16>
    %52 = vector.shape_cast %51 : vector<1x8x8x8xbf16> to vector<8x8x8xbf16>
    %53 = vector.shape_cast %50 : vector<8x8x8xbf16> to vector<1x8x8x8xbf16>
    tpu.vector_store %arg5[%c0_44, %c0_45, %c0_46, %c0_47], %53 {strides = array<i32>} : memref<1x8x8x8xbf16, #tpu.memory_space<vmem>>, vector<1x8x8x8xbf16>,
    return
  }
  func.func @transform_0(%arg0: i32, %arg1: i32) -> (i32, i32, i32, i32) {
    %c0_i32 = arith.constant 0 : i32
    %c0_i32_0 = arith.constant 0 : i32
    %c0_i32_1 = arith.constant 0 : i32
    %c0_i32_2 = arith.constant 0 : i32
    return %arg0, %c0_i32, %c0_i32_0, %c0_i32_1 : i32, i32, i32, i32
  }
  func.func @transform_1(%arg0: i32, %arg1: i32) -> (i32, i32, i32) {
    %c0_i32 = arith.constant 0 : i32
    %c0_i32_0 = arith.constant 0 : i32
    %c0_i32_1 = arith.constant 0 : i32
    %c0_i32_2 = arith.constant 0 : i32
    return %c0_i32, %c0_i32_0, %c0_i32_1 : i32, i32, i32
  }
  func.func @transform_2(%arg0: i32, %arg1: i32) -> (i32, i32) {
    %c0_i32 = arith.constant 0 : i32
    %c0_i32_0 = arith.constant 0 : i32
    %c0_i32_1 = arith.constant 0 : i32
    return %c0_i32, %c0_i32_0 : i32, i32
  }
  func.func @transform_3(%arg0: i32, %arg1: i32) -> (i32, i32, i32, i32) {
    %c0_i32 = arith.constant 0 : i32
    %c0_i32_0 = arith.constant 0 : i32
    %c0_i32_1 = arith.constant 0 : i32
    return %arg0, %arg1, %c0_i32, %c0_i32_0 : i32, i32, i32, i32
  }
}

module attributes {stable_mosaic.version = 11 : i64} {
  func.func @_layer23_kernel(%arg0: i32, %arg1: i32, %arg2: memref<1x8x8x8xbf16, #tpu.memory_space<vmem>>, %arg3: memref<9x8x8xbf16, #tpu.memory_space<vmem>>, %arg4: memref<1x8xf32, #tpu.memory_space<vmem>>, %arg5: memref<9x8x8xbf16, #tpu.memory_space<vmem>>, %arg6: memref<1x8xf32, #tpu.memory_space<vmem>>, %arg7: memref<1x8x8x8xf32, #tpu.memory_space<vmem>>, %arg8: memref<12x10x8xbf16, #tpu.memory_space<vmem>>, %arg9: memref<10x10x8xbf16, #tpu.memory_space<vmem>>, %arg10: memref<80x8xf32, #tpu.memory_space<vmem>>, %arg11: memref<64x8xf32, #tpu.memory_space<vmem>>) attributes {dimension_semantics = [#tpu.dimension_semantics<parallel>, #tpu.dimension_semantics<arbitrary>], iteration_bounds = array<i64: 2, 1>, scalar_prefetch = 0 : i64, scratch_operands = 4 : i64, tpu.core_type = #tpu.core_type<tc>, window_params = [{transform_indices = @transform_0, window_bounds = array<i64: 1, 8, 8, 8>}, {pipeline_mode = #tpu.pipeline_mode<synchronous>, transform_indices = @transform_1, window_bounds = array<i64: 9, 8, 8>}, {pipeline_mode = #tpu.pipeline_mode<synchronous>, transform_indices = @transform_2, window_bounds = array<i64: 1, 8>}, {pipeline_mode = #tpu.pipeline_mode<synchronous>, transform_indices = @transform_3, window_bounds = array<i64: 9, 8, 8>}, {pipeline_mode = #tpu.pipeline_mode<synchronous>, transform_indices = @transform_4, window_bounds = array<i64: 1, 8>}, {transform_indices = @transform_5, window_bounds = array<i64: 1, 8, 8, 8>}]} {
    %c8_i32 = arith.constant 8 : i32
    %0 = arith.muli %arg1, %c8_i32 : i32
    %c0_i32 = arith.constant 0 : i32
    %1 = arith.cmpi eq, %arg1, %c0_i32 : i32
    %2 = arith.extui %1 : i1 to i32
    %c0_i32_0 = arith.constant 0 : i32
    %3 = arith.cmpi ne, %2, %c0_i32_0 : i32
    scf.if %3 {
      %cst_211 = arith.constant 0.000000e+00 : bf16
      %191 = vector.broadcast %cst_211 : bf16 to vector<12x10x8xbf16>
      %c0_212 = arith.constant 0 : index
      %c0_213 = arith.constant 0 : index
      %c0_214 = arith.constant 0 : index
      %192 = vector.load %arg8[%c0_212, %c0_213, %c0_214] : memref<12x10x8xbf16, #tpu.memory_space<vmem>>, vector<12x10x8xbf16>
      tpu.vector_store %arg8[%c0_212, %c0_213, %c0_214], %191 {strides = array<i32>} : memref<12x10x8xbf16, #tpu.memory_space<vmem>>, vector<12x10x8xbf16>,
      %c0_215 = arith.constant 0 : index
      %c0_216 = arith.constant 0 : index
      %c0_217 = arith.constant 0 : index
      %c0_218 = arith.constant 0 : index
      %193 = vector.load %arg2[%c0_215, %c0_216, %c0_217, %c0_218] : memref<1x8x8x8xbf16, #tpu.memory_space<vmem>>, vector<1x8x8x8xbf16>
      %194 = vector.shape_cast %193 : vector<1x8x8x8xbf16> to vector<8x8x8xbf16>
      %c2_219 = arith.constant 2 : index
      %c1_220 = arith.constant 1 : index
      %c0_221 = arith.constant 0 : index
      %195 = vector.load %arg8[%c2_219, %c1_220, %c0_221] : memref<12x10x8xbf16, #tpu.memory_space<vmem>>, vector<8x8x8xbf16>
      tpu.vector_store %arg8[%c2_219, %c1_220, %c0_221], %194 {strides = array<i32>} : memref<12x10x8xbf16, #tpu.memory_space<vmem>>, vector<8x8x8xbf16>,
    } else {
    }
    %c0_i32_1 = arith.constant 0 : i32
    %4 = arith.addi %0, %c0_i32_1 : i32
    %5 = arith.index_cast %4 : i32 to index
    %c0 = arith.constant 0 : index
    %c0_2 = arith.constant 0 : index
    %6 = vector.load %arg8[%5, %c0, %c0_2] : memref<12x10x8xbf16, #tpu.memory_space<vmem>>, vector<10x8x8xbf16>
    %7 = vector.shape_cast %6 : vector<10x8x8xbf16> to vector<80x8xbf16>
    %c0_3 = arith.constant 0 : index
    %c0_4 = arith.constant 0 : index
    %c0_5 = arith.constant 0 : index
    %8 = vector.load %arg3[%c0_3, %c0_4, %c0_5] : memref<9x8x8xbf16, #tpu.memory_space<vmem>>, vector<1x8x8xbf16>
    %9 = vector.shape_cast %8 : vector<1x8x8xbf16> to vector<8x8xbf16>
    %cst = arith.constant dense<0.000000e+00> : vector<80x8xf32>
    %10 = tpu.matmul %7, %9, %cst {dimension_numbers = #tpu.dot_dimension_numbers<[1], [0], [0], [1], [0, 0, 1, 1], [], []>} : vector<80x8xbf16>, vector<8x8xbf16>, vector<80x8xf32> -> vector<80x8xf32>
    %c0_6 = arith.constant 0 : index
    %c0_7 = arith.constant 0 : index
    %11 = vector.load %arg10[%c0_6, %c0_7] : memref<80x8xf32, #tpu.memory_space<vmem>>, vector<80x8xf32>
    tpu.vector_store %arg10[%c0_6, %c0_7], %10 {strides = array<i32>} : memref<80x8xf32, #tpu.memory_space<vmem>>, vector<80x8xf32>,
    %c0_i32_8 = arith.constant 0 : i32
    %12 = arith.addi %0, %c0_i32_8 : i32
    %13 = arith.index_cast %12 : i32 to index
    %c1 = arith.constant 1 : index
    %c0_9 = arith.constant 0 : index
    %14 = vector.load %arg8[%13, %c1, %c0_9] : memref<12x10x8xbf16, #tpu.memory_space<vmem>>, vector<10x8x8xbf16>
    %15 = vector.shape_cast %14 : vector<10x8x8xbf16> to vector<80x8xbf16>
    %c1_10 = arith.constant 1 : index
    %c0_11 = arith.constant 0 : index
    %c0_12 = arith.constant 0 : index
    %16 = vector.load %arg3[%c1_10, %c0_11, %c0_12] : memref<9x8x8xbf16, #tpu.memory_space<vmem>>, vector<1x8x8xbf16>
    %17 = vector.shape_cast %16 : vector<1x8x8xbf16> to vector<8x8xbf16>
    %cst_13 = arith.constant dense<0.000000e+00> : vector<80x8xf32>
    %18 = tpu.matmul %15, %17, %cst_13 {dimension_numbers = #tpu.dot_dimension_numbers<[1], [0], [0], [1], [0, 0, 1, 1], [], []>} : vector<80x8xbf16>, vector<8x8xbf16>, vector<80x8xf32> -> vector<80x8xf32>
    %c0_14 = arith.constant 0 : index
    %c0_15 = arith.constant 0 : index
    %19 = vector.load %arg10[%c0_14, %c0_15] : memref<80x8xf32, #tpu.memory_space<vmem>>, vector<80x8xf32>
    %20 = arith.addf %19, %18 : vector<80x8xf32>
    %c0_16 = arith.constant 0 : index
    %c0_17 = arith.constant 0 : index
    %21 = vector.load %arg10[%c0_16, %c0_17] : memref<80x8xf32, #tpu.memory_space<vmem>>, vector<80x8xf32>
    tpu.vector_store %arg10[%c0_16, %c0_17], %20 {strides = array<i32>} : memref<80x8xf32, #tpu.memory_space<vmem>>, vector<80x8xf32>,
    %c0_i32_18 = arith.constant 0 : i32
    %22 = arith.addi %0, %c0_i32_18 : i32
    %23 = arith.index_cast %22 : i32 to index
    %c2 = arith.constant 2 : index
    %c0_19 = arith.constant 0 : index
    %24 = vector.load %arg8[%23, %c2, %c0_19] : memref<12x10x8xbf16, #tpu.memory_space<vmem>>, vector<10x8x8xbf16>
    %25 = vector.shape_cast %24 : vector<10x8x8xbf16> to vector<80x8xbf16>
    %c2_20 = arith.constant 2 : index
    %c0_21 = arith.constant 0 : index
    %c0_22 = arith.constant 0 : index
    %26 = vector.load %arg3[%c2_20, %c0_21, %c0_22] : memref<9x8x8xbf16, #tpu.memory_space<vmem>>, vector<1x8x8xbf16>
    %27 = vector.shape_cast %26 : vector<1x8x8xbf16> to vector<8x8xbf16>
    %cst_23 = arith.constant dense<0.000000e+00> : vector<80x8xf32>
    %28 = tpu.matmul %25, %27, %cst_23 {dimension_numbers = #tpu.dot_dimension_numbers<[1], [0], [0], [1], [0, 0, 1, 1], [], []>} : vector<80x8xbf16>, vector<8x8xbf16>, vector<80x8xf32> -> vector<80x8xf32>
    %c0_24 = arith.constant 0 : index
    %c0_25 = arith.constant 0 : index
    %29 = vector.load %arg10[%c0_24, %c0_25] : memref<80x8xf32, #tpu.memory_space<vmem>>, vector<80x8xf32>
    %30 = arith.addf %29, %28 : vector<80x8xf32>
    %c0_26 = arith.constant 0 : index
    %c0_27 = arith.constant 0 : index
    %31 = vector.load %arg10[%c0_26, %c0_27] : memref<80x8xf32, #tpu.memory_space<vmem>>, vector<80x8xf32>
    tpu.vector_store %arg10[%c0_26, %c0_27], %30 {strides = array<i32>} : memref<80x8xf32, #tpu.memory_space<vmem>>, vector<80x8xf32>,
    %c1_i32 = arith.constant 1 : i32
    %32 = arith.addi %0, %c1_i32 : i32
    %33 = arith.index_cast %32 : i32 to index
    %c0_28 = arith.constant 0 : index
    %c0_29 = arith.constant 0 : index
    %34 = vector.load %arg8[%33, %c0_28, %c0_29] : memref<12x10x8xbf16, #tpu.memory_space<vmem>>, vector<10x8x8xbf16>
    %35 = vector.shape_cast %34 : vector<10x8x8xbf16> to vector<80x8xbf16>
    %c3 = arith.constant 3 : index
    %c0_30 = arith.constant 0 : index
    %c0_31 = arith.constant 0 : index
    %36 = vector.load %arg3[%c3, %c0_30, %c0_31] : memref<9x8x8xbf16, #tpu.memory_space<vmem>>, vector<1x8x8xbf16>
    %37 = vector.shape_cast %36 : vector<1x8x8xbf16> to vector<8x8xbf16>
    %cst_32 = arith.constant dense<0.000000e+00> : vector<80x8xf32>
    %38 = tpu.matmul %35, %37, %cst_32 {dimension_numbers = #tpu.dot_dimension_numbers<[1], [0], [0], [1], [0, 0, 1, 1], [], []>} : vector<80x8xbf16>, vector<8x8xbf16>, vector<80x8xf32> -> vector<80x8xf32>
    %c0_33 = arith.constant 0 : index
    %c0_34 = arith.constant 0 : index
    %39 = vector.load %arg10[%c0_33, %c0_34] : memref<80x8xf32, #tpu.memory_space<vmem>>, vector<80x8xf32>
    %40 = arith.addf %39, %38 : vector<80x8xf32>
    %c0_35 = arith.constant 0 : index
    %c0_36 = arith.constant 0 : index
    %41 = vector.load %arg10[%c0_35, %c0_36] : memref<80x8xf32, #tpu.memory_space<vmem>>, vector<80x8xf32>
    tpu.vector_store %arg10[%c0_35, %c0_36], %40 {strides = array<i32>} : memref<80x8xf32, #tpu.memory_space<vmem>>, vector<80x8xf32>,
    %c1_i32_37 = arith.constant 1 : i32
    %42 = arith.addi %0, %c1_i32_37 : i32
    %43 = arith.index_cast %42 : i32 to index
    %c1_38 = arith.constant 1 : index
    %c0_39 = arith.constant 0 : index
    %44 = vector.load %arg8[%43, %c1_38, %c0_39] : memref<12x10x8xbf16, #tpu.memory_space<vmem>>, vector<10x8x8xbf16>
    %45 = vector.shape_cast %44 : vector<10x8x8xbf16> to vector<80x8xbf16>
    %c4 = arith.constant 4 : index
    %c0_40 = arith.constant 0 : index
    %c0_41 = arith.constant 0 : index
    %46 = vector.load %arg3[%c4, %c0_40, %c0_41] : memref<9x8x8xbf16, #tpu.memory_space<vmem>>, vector<1x8x8xbf16>
    %47 = vector.shape_cast %46 : vector<1x8x8xbf16> to vector<8x8xbf16>
    %cst_42 = arith.constant dense<0.000000e+00> : vector<80x8xf32>
    %48 = tpu.matmul %45, %47, %cst_42 {dimension_numbers = #tpu.dot_dimension_numbers<[1], [0], [0], [1], [0, 0, 1, 1], [], []>} : vector<80x8xbf16>, vector<8x8xbf16>, vector<80x8xf32> -> vector<80x8xf32>
    %c0_43 = arith.constant 0 : index
    %c0_44 = arith.constant 0 : index
    %49 = vector.load %arg10[%c0_43, %c0_44] : memref<80x8xf32, #tpu.memory_space<vmem>>, vector<80x8xf32>
    %50 = arith.addf %49, %48 : vector<80x8xf32>
    %c0_45 = arith.constant 0 : index
    %c0_46 = arith.constant 0 : index
    %51 = vector.load %arg10[%c0_45, %c0_46] : memref<80x8xf32, #tpu.memory_space<vmem>>, vector<80x8xf32>
    tpu.vector_store %arg10[%c0_45, %c0_46], %50 {strides = array<i32>} : memref<80x8xf32, #tpu.memory_space<vmem>>, vector<80x8xf32>,
    %c1_i32_47 = arith.constant 1 : i32
    %52 = arith.addi %0, %c1_i32_47 : i32
    %53 = arith.index_cast %52 : i32 to index
    %c2_48 = arith.constant 2 : index
    %c0_49 = arith.constant 0 : index
    %54 = vector.load %arg8[%53, %c2_48, %c0_49] : memref<12x10x8xbf16, #tpu.memory_space<vmem>>, vector<10x8x8xbf16>
    %55 = vector.shape_cast %54 : vector<10x8x8xbf16> to vector<80x8xbf16>
    %c5 = arith.constant 5 : index
    %c0_50 = arith.constant 0 : index
    %c0_51 = arith.constant 0 : index
    %56 = vector.load %arg3[%c5, %c0_50, %c0_51] : memref<9x8x8xbf16, #tpu.memory_space<vmem>>, vector<1x8x8xbf16>
    %57 = vector.shape_cast %56 : vector<1x8x8xbf16> to vector<8x8xbf16>
    %cst_52 = arith.constant dense<0.000000e+00> : vector<80x8xf32>
    %58 = tpu.matmul %55, %57, %cst_52 {dimension_numbers = #tpu.dot_dimension_numbers<[1], [0], [0], [1], [0, 0, 1, 1], [], []>} : vector<80x8xbf16>, vector<8x8xbf16>, vector<80x8xf32> -> vector<80x8xf32>
    %c0_53 = arith.constant 0 : index
    %c0_54 = arith.constant 0 : index
    %59 = vector.load %arg10[%c0_53, %c0_54] : memref<80x8xf32, #tpu.memory_space<vmem>>, vector<80x8xf32>
    %60 = arith.addf %59, %58 : vector<80x8xf32>
    %c0_55 = arith.constant 0 : index
    %c0_56 = arith.constant 0 : index
    %61 = vector.load %arg10[%c0_55, %c0_56] : memref<80x8xf32, #tpu.memory_space<vmem>>, vector<80x8xf32>
    tpu.vector_store %arg10[%c0_55, %c0_56], %60 {strides = array<i32>} : memref<80x8xf32, #tpu.memory_space<vmem>>, vector<80x8xf32>,
    %c2_i32 = arith.constant 2 : i32
    %62 = arith.addi %0, %c2_i32 : i32
    %63 = arith.index_cast %62 : i32 to index
    %c0_57 = arith.constant 0 : index
    %c0_58 = arith.constant 0 : index
    %64 = vector.load %arg8[%63, %c0_57, %c0_58] : memref<12x10x8xbf16, #tpu.memory_space<vmem>>, vector<10x8x8xbf16>
    %65 = vector.shape_cast %64 : vector<10x8x8xbf16> to vector<80x8xbf16>
    %c6 = arith.constant 6 : index
    %c0_59 = arith.constant 0 : index
    %c0_60 = arith.constant 0 : index
    %66 = vector.load %arg3[%c6, %c0_59, %c0_60] : memref<9x8x8xbf16, #tpu.memory_space<vmem>>, vector<1x8x8xbf16>
    %67 = vector.shape_cast %66 : vector<1x8x8xbf16> to vector<8x8xbf16>
    %cst_61 = arith.constant dense<0.000000e+00> : vector<80x8xf32>
    %68 = tpu.matmul %65, %67, %cst_61 {dimension_numbers = #tpu.dot_dimension_numbers<[1], [0], [0], [1], [0, 0, 1, 1], [], []>} : vector<80x8xbf16>, vector<8x8xbf16>, vector<80x8xf32> -> vector<80x8xf32>
    %c0_62 = arith.constant 0 : index
    %c0_63 = arith.constant 0 : index
    %69 = vector.load %arg10[%c0_62, %c0_63] : memref<80x8xf32, #tpu.memory_space<vmem>>, vector<80x8xf32>
    %70 = arith.addf %69, %68 : vector<80x8xf32>
    %c0_64 = arith.constant 0 : index
    %c0_65 = arith.constant 0 : index
    %71 = vector.load %arg10[%c0_64, %c0_65] : memref<80x8xf32, #tpu.memory_space<vmem>>, vector<80x8xf32>
    tpu.vector_store %arg10[%c0_64, %c0_65], %70 {strides = array<i32>} : memref<80x8xf32, #tpu.memory_space<vmem>>, vector<80x8xf32>,
    %c2_i32_66 = arith.constant 2 : i32
    %72 = arith.addi %0, %c2_i32_66 : i32
    %73 = arith.index_cast %72 : i32 to index
    %c1_67 = arith.constant 1 : index
    %c0_68 = arith.constant 0 : index
    %74 = vector.load %arg8[%73, %c1_67, %c0_68] : memref<12x10x8xbf16, #tpu.memory_space<vmem>>, vector<10x8x8xbf16>
    %75 = vector.shape_cast %74 : vector<10x8x8xbf16> to vector<80x8xbf16>
    %c7 = arith.constant 7 : index
    %c0_69 = arith.constant 0 : index
    %c0_70 = arith.constant 0 : index
    %76 = vector.load %arg3[%c7, %c0_69, %c0_70] : memref<9x8x8xbf16, #tpu.memory_space<vmem>>, vector<1x8x8xbf16>
    %77 = vector.shape_cast %76 : vector<1x8x8xbf16> to vector<8x8xbf16>
    %cst_71 = arith.constant dense<0.000000e+00> : vector<80x8xf32>
    %78 = tpu.matmul %75, %77, %cst_71 {dimension_numbers = #tpu.dot_dimension_numbers<[1], [0], [0], [1], [0, 0, 1, 1], [], []>} : vector<80x8xbf16>, vector<8x8xbf16>, vector<80x8xf32> -> vector<80x8xf32>
    %c0_72 = arith.constant 0 : index
    %c0_73 = arith.constant 0 : index
    %79 = vector.load %arg10[%c0_72, %c0_73] : memref<80x8xf32, #tpu.memory_space<vmem>>, vector<80x8xf32>
    %80 = arith.addf %79, %78 : vector<80x8xf32>
    %c0_74 = arith.constant 0 : index
    %c0_75 = arith.constant 0 : index
    %81 = vector.load %arg10[%c0_74, %c0_75] : memref<80x8xf32, #tpu.memory_space<vmem>>, vector<80x8xf32>
    tpu.vector_store %arg10[%c0_74, %c0_75], %80 {strides = array<i32>} : memref<80x8xf32, #tpu.memory_space<vmem>>, vector<80x8xf32>,
    %c2_i32_76 = arith.constant 2 : i32
    %82 = arith.addi %0, %c2_i32_76 : i32
    %83 = arith.index_cast %82 : i32 to index
    %c2_77 = arith.constant 2 : index
    %c0_78 = arith.constant 0 : index
    %84 = vector.load %arg8[%83, %c2_77, %c0_78] : memref<12x10x8xbf16, #tpu.memory_space<vmem>>, vector<10x8x8xbf16>
    %85 = vector.shape_cast %84 : vector<10x8x8xbf16> to vector<80x8xbf16>
    %c8 = arith.constant 8 : index
    %c0_79 = arith.constant 0 : index
    %c0_80 = arith.constant 0 : index
    %86 = vector.load %arg3[%c8, %c0_79, %c0_80] : memref<9x8x8xbf16, #tpu.memory_space<vmem>>, vector<1x8x8xbf16>
    %87 = vector.shape_cast %86 : vector<1x8x8xbf16> to vector<8x8xbf16>
    %cst_81 = arith.constant dense<0.000000e+00> : vector<80x8xf32>
    %88 = tpu.matmul %85, %87, %cst_81 {dimension_numbers = #tpu.dot_dimension_numbers<[1], [0], [0], [1], [0, 0, 1, 1], [], []>} : vector<80x8xbf16>, vector<8x8xbf16>, vector<80x8xf32> -> vector<80x8xf32>
    %c0_82 = arith.constant 0 : index
    %c0_83 = arith.constant 0 : index
    %89 = vector.load %arg10[%c0_82, %c0_83] : memref<80x8xf32, #tpu.memory_space<vmem>>, vector<80x8xf32>
    %90 = arith.addf %89, %88 : vector<80x8xf32>
    %c0_84 = arith.constant 0 : index
    %c0_85 = arith.constant 0 : index
    %91 = vector.load %arg10[%c0_84, %c0_85] : memref<80x8xf32, #tpu.memory_space<vmem>>, vector<80x8xf32>
    tpu.vector_store %arg10[%c0_84, %c0_85], %90 {strides = array<i32>} : memref<80x8xf32, #tpu.memory_space<vmem>>, vector<80x8xf32>,
    %c0_86 = arith.constant 0 : index
    %c0_87 = arith.constant 0 : index
    %92 = vector.load %arg10[%c0_86, %c0_87] : memref<80x8xf32, #tpu.memory_space<vmem>>, vector<80x8xf32>
    %c0_88 = arith.constant 0 : index
    %c0_89 = arith.constant 0 : index
    %93 = vector.load %arg4[%c0_88, %c0_89] : memref<1x8xf32, #tpu.memory_space<vmem>>, vector<1x8xf32>
    %94 = vector.broadcast %93 : vector<1x8xf32> to vector<80x8xf32>
    %95 = arith.addf %92, %94 : vector<80x8xf32>
    %cst_90 = arith.constant 0.000000e+00 : f32
    %96 = vector.broadcast %cst_90 : f32 to vector<80x8xf32>
    %97 = arith.maximumf %95, %96 : vector<80x8xf32>
    %cst_91 = arith.constant 0.000000e+00 : bf16
    %98 = vector.broadcast %cst_91 : bf16 to vector<10x1x8xbf16>
    %c0_92 = arith.constant 0 : index
    %c0_93 = arith.constant 0 : index
    %c0_94 = arith.constant 0 : index
    %99 = vector.load %arg9[%c0_92, %c0_93, %c0_94] : memref<10x10x8xbf16, #tpu.memory_space<vmem>>, vector<10x1x8xbf16>
    tpu.vector_store %arg9[%c0_92, %c0_93, %c0_94], %98 {strides = array<i32>} : memref<10x10x8xbf16, #tpu.memory_space<vmem>>, vector<10x1x8xbf16>,
    %cst_95 = arith.constant 0.000000e+00 : bf16
    %100 = vector.broadcast %cst_95 : bf16 to vector<10x1x8xbf16>
    %c0_96 = arith.constant 0 : index
    %c9 = arith.constant 9 : index
    %c0_97 = arith.constant 0 : index
    %101 = vector.load %arg9[%c0_96, %c9, %c0_97] : memref<10x10x8xbf16, #tpu.memory_space<vmem>>, vector<10x1x8xbf16>
    tpu.vector_store %arg9[%c0_96, %c9, %c0_97], %100 {strides = array<i32>} : memref<10x10x8xbf16, #tpu.memory_space<vmem>>, vector<10x1x8xbf16>,
    %102 = vector.shape_cast %97 : vector<80x8xf32> to vector<10x8x8xf32>
    %103 = arith.truncf %102 : vector<10x8x8xf32> to vector<10x8x8xbf16>
    %c0_98 = arith.constant 0 : index
    %c1_99 = arith.constant 1 : index
    %c0_100 = arith.constant 0 : index
    %104 = vector.load %arg9[%c0_98, %c1_99, %c0_100] : memref<10x10x8xbf16, #tpu.memory_space<vmem>>, vector<10x8x8xbf16>
    tpu.vector_store %arg9[%c0_98, %c1_99, %c0_100], %103 {strides = array<i32>} : memref<10x10x8xbf16, #tpu.memory_space<vmem>>, vector<10x8x8xbf16>,
    %c0_i32_101 = arith.constant 0 : i32
    %105 = arith.cmpi eq, %arg1, %c0_i32_101 : i32
    %106 = arith.extui %105 : i1 to i32
    %c0_i32_102 = arith.constant 0 : i32
    %107 = arith.cmpi ne, %106, %c0_i32_102 : i32
    scf.if %107 {
      %cst_211 = arith.constant 0.000000e+00 : bf16
      %191 = vector.broadcast %cst_211 : bf16 to vector<1x10x8xbf16>
      %c0_212 = arith.constant 0 : index
      %c0_213 = arith.constant 0 : index
      %c0_214 = arith.constant 0 : index
      %192 = vector.load %arg9[%c0_212, %c0_213, %c0_214] : memref<10x10x8xbf16, #tpu.memory_space<vmem>>, vector<1x10x8xbf16>
      tpu.vector_store %arg9[%c0_212, %c0_213, %c0_214], %191 {strides = array<i32>} : memref<10x10x8xbf16, #tpu.memory_space<vmem>>, vector<1x10x8xbf16>,
    } else {
    }
    %c0_i32_103 = arith.constant 0 : i32
    %108 = arith.cmpi eq, %arg1, %c0_i32_103 : i32
    %109 = arith.extui %108 : i1 to i32
    %c0_i32_104 = arith.constant 0 : i32
    %110 = arith.cmpi ne, %109, %c0_i32_104 : i32
    scf.if %110 {
      %cst_211 = arith.constant 0.000000e+00 : bf16
      %191 = vector.broadcast %cst_211 : bf16 to vector<1x10x8xbf16>
      %c9_212 = arith.constant 9 : index
      %c0_213 = arith.constant 0 : index
      %c0_214 = arith.constant 0 : index
      %192 = vector.load %arg9[%c9_212, %c0_213, %c0_214] : memref<10x10x8xbf16, #tpu.memory_space<vmem>>, vector<1x10x8xbf16>
      tpu.vector_store %arg9[%c9_212, %c0_213, %c0_214], %191 {strides = array<i32>} : memref<10x10x8xbf16, #tpu.memory_space<vmem>>, vector<1x10x8xbf16>,
    } else {
    }
    %c0_105 = arith.constant 0 : index
    %c0_106 = arith.constant 0 : index
    %c0_107 = arith.constant 0 : index
    %111 = vector.load %arg9[%c0_105, %c0_106, %c0_107] : memref<10x10x8xbf16, #tpu.memory_space<vmem>>, vector<8x8x8xbf16>
    %112 = vector.shape_cast %111 : vector<8x8x8xbf16> to vector<64x8xbf16>
    %c0_108 = arith.constant 0 : index
    %c0_109 = arith.constant 0 : index
    %c0_110 = arith.constant 0 : index
    %113 = vector.load %arg5[%c0_108, %c0_109, %c0_110] : memref<9x8x8xbf16, #tpu.memory_space<vmem>>, vector<1x8x8xbf16>
    %114 = vector.shape_cast %113 : vector<1x8x8xbf16> to vector<8x8xbf16>
    %cst_111 = arith.constant dense<0.000000e+00> : vector<64x8xf32>
    %115 = tpu.matmul %112, %114, %cst_111 {dimension_numbers = #tpu.dot_dimension_numbers<[1], [0], [0], [1], [0, 0, 1, 1], [], []>} : vector<64x8xbf16>, vector<8x8xbf16>, vector<64x8xf32> -> vector<64x8xf32>
    %c0_112 = arith.constant 0 : index
    %c0_113 = arith.constant 0 : index
    %116 = vector.load %arg11[%c0_112, %c0_113] : memref<64x8xf32, #tpu.memory_space<vmem>>, vector<64x8xf32>
    tpu.vector_store %arg11[%c0_112, %c0_113], %115 {strides = array<i32>} : memref<64x8xf32, #tpu.memory_space<vmem>>, vector<64x8xf32>,
    %c0_114 = arith.constant 0 : index
    %c1_115 = arith.constant 1 : index
    %c0_116 = arith.constant 0 : index
    %117 = vector.load %arg9[%c0_114, %c1_115, %c0_116] : memref<10x10x8xbf16, #tpu.memory_space<vmem>>, vector<8x8x8xbf16>
    %118 = vector.shape_cast %117 : vector<8x8x8xbf16> to vector<64x8xbf16>
    %c1_117 = arith.constant 1 : index
    %c0_118 = arith.constant 0 : index
    %c0_119 = arith.constant 0 : index
    %119 = vector.load %arg5[%c1_117, %c0_118, %c0_119] : memref<9x8x8xbf16, #tpu.memory_space<vmem>>, vector<1x8x8xbf16>
    %120 = vector.shape_cast %119 : vector<1x8x8xbf16> to vector<8x8xbf16>
    %cst_120 = arith.constant dense<0.000000e+00> : vector<64x8xf32>
    %121 = tpu.matmul %118, %120, %cst_120 {dimension_numbers = #tpu.dot_dimension_numbers<[1], [0], [0], [1], [0, 0, 1, 1], [], []>} : vector<64x8xbf16>, vector<8x8xbf16>, vector<64x8xf32> -> vector<64x8xf32>
    %c0_121 = arith.constant 0 : index
    %c0_122 = arith.constant 0 : index
    %122 = vector.load %arg11[%c0_121, %c0_122] : memref<64x8xf32, #tpu.memory_space<vmem>>, vector<64x8xf32>
    %123 = arith.addf %122, %121 : vector<64x8xf32>
    %c0_123 = arith.constant 0 : index
    %c0_124 = arith.constant 0 : index
    %124 = vector.load %arg11[%c0_123, %c0_124] : memref<64x8xf32, #tpu.memory_space<vmem>>, vector<64x8xf32>
    tpu.vector_store %arg11[%c0_123, %c0_124], %123 {strides = array<i32>} : memref<64x8xf32, #tpu.memory_space<vmem>>, vector<64x8xf32>,
    %c0_125 = arith.constant 0 : index
    %c2_126 = arith.constant 2 : index
    %c0_127 = arith.constant 0 : index
    %125 = vector.load %arg9[%c0_125, %c2_126, %c0_127] : memref<10x10x8xbf16, #tpu.memory_space<vmem>>, vector<8x8x8xbf16>
    %126 = vector.shape_cast %125 : vector<8x8x8xbf16> to vector<64x8xbf16>
    %c2_128 = arith.constant 2 : index
    %c0_129 = arith.constant 0 : index
    %c0_130 = arith.constant 0 : index
    %127 = vector.load %arg5[%c2_128, %c0_129, %c0_130] : memref<9x8x8xbf16, #tpu.memory_space<vmem>>, vector<1x8x8xbf16>
    %128 = vector.shape_cast %127 : vector<1x8x8xbf16> to vector<8x8xbf16>
    %cst_131 = arith.constant dense<0.000000e+00> : vector<64x8xf32>
    %129 = tpu.matmul %126, %128, %cst_131 {dimension_numbers = #tpu.dot_dimension_numbers<[1], [0], [0], [1], [0, 0, 1, 1], [], []>} : vector<64x8xbf16>, vector<8x8xbf16>, vector<64x8xf32> -> vector<64x8xf32>
    %c0_132 = arith.constant 0 : index
    %c0_133 = arith.constant 0 : index
    %130 = vector.load %arg11[%c0_132, %c0_133] : memref<64x8xf32, #tpu.memory_space<vmem>>, vector<64x8xf32>
    %131 = arith.addf %130, %129 : vector<64x8xf32>
    %c0_134 = arith.constant 0 : index
    %c0_135 = arith.constant 0 : index
    %132 = vector.load %arg11[%c0_134, %c0_135] : memref<64x8xf32, #tpu.memory_space<vmem>>, vector<64x8xf32>
    tpu.vector_store %arg11[%c0_134, %c0_135], %131 {strides = array<i32>} : memref<64x8xf32, #tpu.memory_space<vmem>>, vector<64x8xf32>,
    %c1_136 = arith.constant 1 : index
    %c0_137 = arith.constant 0 : index
    %c0_138 = arith.constant 0 : index
    %133 = vector.load %arg9[%c1_136, %c0_137, %c0_138] : memref<10x10x8xbf16, #tpu.memory_space<vmem>>, vector<8x8x8xbf16>
    %134 = vector.shape_cast %133 : vector<8x8x8xbf16> to vector<64x8xbf16>
    %c3_139 = arith.constant 3 : index
    %c0_140 = arith.constant 0 : index
    %c0_141 = arith.constant 0 : index
    %135 = vector.load %arg5[%c3_139, %c0_140, %c0_141] : memref<9x8x8xbf16, #tpu.memory_space<vmem>>, vector<1x8x8xbf16>
    %136 = vector.shape_cast %135 : vector<1x8x8xbf16> to vector<8x8xbf16>
    %cst_142 = arith.constant dense<0.000000e+00> : vector<64x8xf32>
    %137 = tpu.matmul %134, %136, %cst_142 {dimension_numbers = #tpu.dot_dimension_numbers<[1], [0], [0], [1], [0, 0, 1, 1], [], []>} : vector<64x8xbf16>, vector<8x8xbf16>, vector<64x8xf32> -> vector<64x8xf32>
    %c0_143 = arith.constant 0 : index
    %c0_144 = arith.constant 0 : index
    %138 = vector.load %arg11[%c0_143, %c0_144] : memref<64x8xf32, #tpu.memory_space<vmem>>, vector<64x8xf32>
    %139 = arith.addf %138, %137 : vector<64x8xf32>
    %c0_145 = arith.constant 0 : index
    %c0_146 = arith.constant 0 : index
    %140 = vector.load %arg11[%c0_145, %c0_146] : memref<64x8xf32, #tpu.memory_space<vmem>>, vector<64x8xf32>
    tpu.vector_store %arg11[%c0_145, %c0_146], %139 {strides = array<i32>} : memref<64x8xf32, #tpu.memory_space<vmem>>, vector<64x8xf32>,
    %c1_147 = arith.constant 1 : index
    %c1_148 = arith.constant 1 : index
    %c0_149 = arith.constant 0 : index
    %141 = vector.load %arg9[%c1_147, %c1_148, %c0_149] : memref<10x10x8xbf16, #tpu.memory_space<vmem>>, vector<8x8x8xbf16>
    %142 = vector.shape_cast %141 : vector<8x8x8xbf16> to vector<64x8xbf16>
    %c4_150 = arith.constant 4 : index
    %c0_151 = arith.constant 0 : index
    %c0_152 = arith.constant 0 : index
    %143 = vector.load %arg5[%c4_150, %c0_151, %c0_152] : memref<9x8x8xbf16, #tpu.memory_space<vmem>>, vector<1x8x8xbf16>
    %144 = vector.shape_cast %143 : vector<1x8x8xbf16> to vector<8x8xbf16>
    %cst_153 = arith.constant dense<0.000000e+00> : vector<64x8xf32>
    %145 = tpu.matmul %142, %144, %cst_153 {dimension_numbers = #tpu.dot_dimension_numbers<[1], [0], [0], [1], [0, 0, 1, 1], [], []>} : vector<64x8xbf16>, vector<8x8xbf16>, vector<64x8xf32> -> vector<64x8xf32>
    %c0_154 = arith.constant 0 : index
    %c0_155 = arith.constant 0 : index
    %146 = vector.load %arg11[%c0_154, %c0_155] : memref<64x8xf32, #tpu.memory_space<vmem>>, vector<64x8xf32>
    %147 = arith.addf %146, %145 : vector<64x8xf32>
    %c0_156 = arith.constant 0 : index
    %c0_157 = arith.constant 0 : index
    %148 = vector.load %arg11[%c0_156, %c0_157] : memref<64x8xf32, #tpu.memory_space<vmem>>, vector<64x8xf32>
    tpu.vector_store %arg11[%c0_156, %c0_157], %147 {strides = array<i32>} : memref<64x8xf32, #tpu.memory_space<vmem>>, vector<64x8xf32>,
    %c1_158 = arith.constant 1 : index
    %c2_159 = arith.constant 2 : index
    %c0_160 = arith.constant 0 : index
    %149 = vector.load %arg9[%c1_158, %c2_159, %c0_160] : memref<10x10x8xbf16, #tpu.memory_space<vmem>>, vector<8x8x8xbf16>
    %150 = vector.shape_cast %149 : vector<8x8x8xbf16> to vector<64x8xbf16>
    %c5_161 = arith.constant 5 : index
    %c0_162 = arith.constant 0 : index
    %c0_163 = arith.constant 0 : index
    %151 = vector.load %arg5[%c5_161, %c0_162, %c0_163] : memref<9x8x8xbf16, #tpu.memory_space<vmem>>, vector<1x8x8xbf16>
    %152 = vector.shape_cast %151 : vector<1x8x8xbf16> to vector<8x8xbf16>
    %cst_164 = arith.constant dense<0.000000e+00> : vector<64x8xf32>
    %153 = tpu.matmul %150, %152, %cst_164 {dimension_numbers = #tpu.dot_dimension_numbers<[1], [0], [0], [1], [0, 0, 1, 1], [], []>} : vector<64x8xbf16>, vector<8x8xbf16>, vector<64x8xf32> -> vector<64x8xf32>
    %c0_165 = arith.constant 0 : index
    %c0_166 = arith.constant 0 : index
    %154 = vector.load %arg11[%c0_165, %c0_166] : memref<64x8xf32, #tpu.memory_space<vmem>>, vector<64x8xf32>
    %155 = arith.addf %154, %153 : vector<64x8xf32>
    %c0_167 = arith.constant 0 : index
    %c0_168 = arith.constant 0 : index
    %156 = vector.load %arg11[%c0_167, %c0_168] : memref<64x8xf32, #tpu.memory_space<vmem>>, vector<64x8xf32>
    tpu.vector_store %arg11[%c0_167, %c0_168], %155 {strides = array<i32>} : memref<64x8xf32, #tpu.memory_space<vmem>>, vector<64x8xf32>,
    %c2_169 = arith.constant 2 : index
    %c0_170 = arith.constant 0 : index
    %c0_171 = arith.constant 0 : index
    %157 = vector.load %arg9[%c2_169, %c0_170, %c0_171] : memref<10x10x8xbf16, #tpu.memory_space<vmem>>, vector<8x8x8xbf16>
    %158 = vector.shape_cast %157 : vector<8x8x8xbf16> to vector<64x8xbf16>
    %c6_172 = arith.constant 6 : index
    %c0_173 = arith.constant 0 : index
    %c0_174 = arith.constant 0 : index
    %159 = vector.load %arg5[%c6_172, %c0_173, %c0_174] : memref<9x8x8xbf16, #tpu.memory_space<vmem>>, vector<1x8x8xbf16>
    %160 = vector.shape_cast %159 : vector<1x8x8xbf16> to vector<8x8xbf16>
    %cst_175 = arith.constant dense<0.000000e+00> : vector<64x8xf32>
    %161 = tpu.matmul %158, %160, %cst_175 {dimension_numbers = #tpu.dot_dimension_numbers<[1], [0], [0], [1], [0, 0, 1, 1], [], []>} : vector<64x8xbf16>, vector<8x8xbf16>, vector<64x8xf32> -> vector<64x8xf32>
    %c0_176 = arith.constant 0 : index
    %c0_177 = arith.constant 0 : index
    %162 = vector.load %arg11[%c0_176, %c0_177] : memref<64x8xf32, #tpu.memory_space<vmem>>, vector<64x8xf32>
    %163 = arith.addf %162, %161 : vector<64x8xf32>
    %c0_178 = arith.constant 0 : index
    %c0_179 = arith.constant 0 : index
    %164 = vector.load %arg11[%c0_178, %c0_179] : memref<64x8xf32, #tpu.memory_space<vmem>>, vector<64x8xf32>
    tpu.vector_store %arg11[%c0_178, %c0_179], %163 {strides = array<i32>} : memref<64x8xf32, #tpu.memory_space<vmem>>, vector<64x8xf32>,
    %c2_180 = arith.constant 2 : index
    %c1_181 = arith.constant 1 : index
    %c0_182 = arith.constant 0 : index
    %165 = vector.load %arg9[%c2_180, %c1_181, %c0_182] : memref<10x10x8xbf16, #tpu.memory_space<vmem>>, vector<8x8x8xbf16>
    %166 = vector.shape_cast %165 : vector<8x8x8xbf16> to vector<64x8xbf16>
    %c7_183 = arith.constant 7 : index
    %c0_184 = arith.constant 0 : index
    %c0_185 = arith.constant 0 : index
    %167 = vector.load %arg5[%c7_183, %c0_184, %c0_185] : memref<9x8x8xbf16, #tpu.memory_space<vmem>>, vector<1x8x8xbf16>
    %168 = vector.shape_cast %167 : vector<1x8x8xbf16> to vector<8x8xbf16>
    %cst_186 = arith.constant dense<0.000000e+00> : vector<64x8xf32>
    %169 = tpu.matmul %166, %168, %cst_186 {dimension_numbers = #tpu.dot_dimension_numbers<[1], [0], [0], [1], [0, 0, 1, 1], [], []>} : vector<64x8xbf16>, vector<8x8xbf16>, vector<64x8xf32> -> vector<64x8xf32>
    %c0_187 = arith.constant 0 : index
    %c0_188 = arith.constant 0 : index
    %170 = vector.load %arg11[%c0_187, %c0_188] : memref<64x8xf32, #tpu.memory_space<vmem>>, vector<64x8xf32>
    %171 = arith.addf %170, %169 : vector<64x8xf32>
    %c0_189 = arith.constant 0 : index
    %c0_190 = arith.constant 0 : index
    %172 = vector.load %arg11[%c0_189, %c0_190] : memref<64x8xf32, #tpu.memory_space<vmem>>, vector<64x8xf32>
    tpu.vector_store %arg11[%c0_189, %c0_190], %171 {strides = array<i32>} : memref<64x8xf32, #tpu.memory_space<vmem>>, vector<64x8xf32>,
    %c2_191 = arith.constant 2 : index
    %c2_192 = arith.constant 2 : index
    %c0_193 = arith.constant 0 : index
    %173 = vector.load %arg9[%c2_191, %c2_192, %c0_193] : memref<10x10x8xbf16, #tpu.memory_space<vmem>>, vector<8x8x8xbf16>
    %174 = vector.shape_cast %173 : vector<8x8x8xbf16> to vector<64x8xbf16>
    %c8_194 = arith.constant 8 : index
    %c0_195 = arith.constant 0 : index
    %c0_196 = arith.constant 0 : index
    %175 = vector.load %arg5[%c8_194, %c0_195, %c0_196] : memref<9x8x8xbf16, #tpu.memory_space<vmem>>, vector<1x8x8xbf16>
    %176 = vector.shape_cast %175 : vector<1x8x8xbf16> to vector<8x8xbf16>
    %cst_197 = arith.constant dense<0.000000e+00> : vector<64x8xf32>
    %177 = tpu.matmul %174, %176, %cst_197 {dimension_numbers = #tpu.dot_dimension_numbers<[1], [0], [0], [1], [0, 0, 1, 1], [], []>} : vector<64x8xbf16>, vector<8x8xbf16>, vector<64x8xf32> -> vector<64x8xf32>
    %c0_198 = arith.constant 0 : index
    %c0_199 = arith.constant 0 : index
    %178 = vector.load %arg11[%c0_198, %c0_199] : memref<64x8xf32, #tpu.memory_space<vmem>>, vector<64x8xf32>
    %179 = arith.addf %178, %177 : vector<64x8xf32>
    %c0_200 = arith.constant 0 : index
    %c0_201 = arith.constant 0 : index
    %180 = vector.load %arg11[%c0_200, %c0_201] : memref<64x8xf32, #tpu.memory_space<vmem>>, vector<64x8xf32>
    tpu.vector_store %arg11[%c0_200, %c0_201], %179 {strides = array<i32>} : memref<64x8xf32, #tpu.memory_space<vmem>>, vector<64x8xf32>,
    %c0_202 = arith.constant 0 : index
    %c0_203 = arith.constant 0 : index
    %181 = vector.load %arg11[%c0_202, %c0_203] : memref<64x8xf32, #tpu.memory_space<vmem>>, vector<64x8xf32>
    %c0_204 = arith.constant 0 : index
    %c0_205 = arith.constant 0 : index
    %182 = vector.load %arg6[%c0_204, %c0_205] : memref<1x8xf32, #tpu.memory_space<vmem>>, vector<1x8xf32>
    %183 = vector.broadcast %182 : vector<1x8xf32> to vector<64x8xf32>
    %184 = arith.addf %181, %183 : vector<64x8xf32>
    %cst_206 = arith.constant 0.000000e+00 : f32
    %185 = vector.broadcast %cst_206 : f32 to vector<64x8xf32>
    %186 = arith.maximumf %184, %185 : vector<64x8xf32>
    %187 = vector.shape_cast %186 : vector<64x8xf32> to vector<8x8x8xf32>
    %c0_207 = arith.constant 0 : index
    %c0_208 = arith.constant 0 : index
    %c0_209 = arith.constant 0 : index
    %c0_210 = arith.constant 0 : index
    %188 = vector.load %arg7[%c0_207, %c0_208, %c0_209, %c0_210] : memref<1x8x8x8xf32, #tpu.memory_space<vmem>>, vector<1x8x8x8xf32>
    %189 = vector.shape_cast %188 : vector<1x8x8x8xf32> to vector<8x8x8xf32>
    %190 = vector.shape_cast %187 : vector<8x8x8xf32> to vector<1x8x8x8xf32>
    tpu.vector_store %arg7[%c0_207, %c0_208, %c0_209, %c0_210], %190 {strides = array<i32>} : memref<1x8x8x8xf32, #tpu.memory_space<vmem>>, vector<1x8x8x8xf32>,
    return
  }
  func.func @transform_0(%arg0: i32, %arg1: i32) -> (i32, i32, i32, i32) {
    %c0_i32 = arith.constant 0 : i32
    %c0_i32_0 = arith.constant 0 : i32
    %c0_i32_1 = arith.constant 0 : i32
    %c0_i32_2 = arith.constant 0 : i32
    return %arg0, %c0_i32, %c0_i32_0, %c0_i32_1 : i32, i32, i32, i32
  }
  func.func @transform_1(%arg0: i32, %arg1: i32) -> (i32, i32, i32) {
    %c0_i32 = arith.constant 0 : i32
    %c0_i32_0 = arith.constant 0 : i32
    %c0_i32_1 = arith.constant 0 : i32
    %c0_i32_2 = arith.constant 0 : i32
    return %c0_i32, %c0_i32_0, %c0_i32_1 : i32, i32, i32
  }
  func.func @transform_2(%arg0: i32, %arg1: i32) -> (i32, i32) {
    %c0_i32 = arith.constant 0 : i32
    %c0_i32_0 = arith.constant 0 : i32
    %c0_i32_1 = arith.constant 0 : i32
    return %c0_i32, %c0_i32_0 : i32, i32
  }
  func.func @transform_3(%arg0: i32, %arg1: i32) -> (i32, i32, i32) {
    %c0_i32 = arith.constant 0 : i32
    %c0_i32_0 = arith.constant 0 : i32
    %c0_i32_1 = arith.constant 0 : i32
    %c0_i32_2 = arith.constant 0 : i32
    return %c0_i32, %c0_i32_0, %c0_i32_1 : i32, i32, i32
  }
  func.func @transform_4(%arg0: i32, %arg1: i32) -> (i32, i32) {
    %c0_i32 = arith.constant 0 : i32
    %c0_i32_0 = arith.constant 0 : i32
    %c0_i32_1 = arith.constant 0 : i32
    return %c0_i32, %c0_i32_0 : i32, i32
  }
  func.func @transform_5(%arg0: i32, %arg1: i32) -> (i32, i32, i32, i32) {
    %c0_i32 = arith.constant 0 : i32
    %c0_i32_0 = arith.constant 0 : i32
    %c0_i32_1 = arith.constant 0 : i32
    return %arg0, %arg1, %c0_i32, %c0_i32_0 : i32, i32, i32, i32
  }
}

</mosaic_0001>

<llo_original>
// kernel: deblur_down_forward.2
$region0: #{deblur_down_forward.2}
  #allocation0 [shape = 'u32[]', space=smem, size = 0x4, offset = 0x4, fixed_abs, tag = 'smem constant byte address 0x4 - core index']
  #allocation1 [shape = 'u32[72,128]{1,0:T(1,128)}', space=vmem, size = 0x9000, scoped, tag = 'internal scratch']
  #allocation2 [shape = 'f32[64,8]{1,0:T(8,128)}', space=vmem, size = 0x8000, scoped, tag = 'scratch operand']
  %s0 = inlined_call_operand.vmem [shape: bf16[2,9,9,16], index: 0, kind: input, shape index: {}]
  %s1 = inlined_call_operand.vmem [shape: bf16[4,16,8], index: 1, kind: input, shape index: {}]
  %s2 = inlined_call_operand.vmem [shape: f32[1,8], index: 2, kind: input, shape index: {}]
  %s3 = inlined_call_operand.vmem [shape: bf16[2,8,8,8], index: 3, kind: output, shape index: {}]
  %s4 = sld [smem:[#allocation0]]
  $region45: #{deblur_down_forward.2} parent=0
    _
  %s6 = ssub.s32 1, %s4
  %s7 = scalar_select 0, %s6, %s4
  loop: start=0, step=1, limit=4
  $region2: #{deblur_down_forward.2} parent=0 // loop_pre_header
    _
  $region3: #{deblur_down_forward.2} parent=0 // loop_header
    %s9 = sphi 0, %s13
    %p10 = scmp.ge.s32.totalorder %s9, 4
    %s16 = sphi 0, %s28
    %s17 = sphi 0, %s24
    %s18 = sphi 0, %s16
    %s19 = sphi 0, %s17
    %s20 = sphi 0, %s18
    %s21 = sphi 0, %s19
    %s31 = sphi 0, %s33
    %s34 = sphi 0, %s31
    %s35 = sphi 0, %s34
    %s51 = sphi 0, %s35
    %s55 = sphi 0, %s55
    %s57 = sphi 0, %s55
    %s58 = sphi 0, %s57
    %s72 = sphi 0, %s58
    %s76 = sphi 0, %s76
    %s78 = sphi 0, %s76
    %s79 = sphi 0, %s78
    %s93 = sphi 0, %s79
    %s101 = sphi 0, %s103
    %s104 = sphi 0, %s101
    %s105 = sphi 0, %s104
    %s121 = sphi 0, %s105
  $region4: #{deblur_down_forward.2} parent=0 // loop_header_branch
    %12 = sbr.rel (%p10) target = $region8
  $region5: #{deblur_down_forward.2} parent=0 // loop_body
    %s14 = ssub.s32 %s9, 1
    %s15 = ssub.s32 %s9, 2
    %s22 = sadd.s32 1, %s17
    %p23 = scmp.ge.s32.totalorder %s22, 1
    %s24 = scalar_select %p23, 0, %s22
    %s25 = sadd.s32 1, %s16
    %s26 = scalar_select %p23, %s25, %s16
    %p27 = scmp.ge.s32.totalorder %s26, 2
    %s28 = scalar_select %p27, 0, %s26
    %s29 = ssub.s32 %s16, %s28
    %p30 = scmp.eq.s32.totalorder %s29, 0
    %s32 = sadd.s32 %s31, 1
    %s33 = scalar_select %p30, %s31, %s32
    %p36 = pneg %p30
    %p37 = scmp.eq.s32.totalorder %s9, 1
    %p38 = por %p36, %p37
    %p39 = scmp.ne.s32.totalorder %s31, %s34
    %p40 = scmp.eq.s32.totalorder %s9, 0
    %p41 = por %p39, %p40
    %p42 = scmp.ne.s32.totalorder %s31, %s34
    %p43 = scmp.eq.s32.totalorder %s14, 1
    %p44 = por %p42, %p43
    %p45 = scmp.ne.s32.totalorder %s34, %s35
    %p46 = scmp.eq.s32.totalorder %s14, 0
    %p47 = por %p45, %p46
    %p48 = scmp.ne.s32.totalorder %s34, %s35
    %p49 = scmp.eq.s32.totalorder %s15, 1
    %p50 = por %p48, %p49
    %p52 = scmp.ne.s32.totalorder %s35, %s51
    %p53 = scmp.eq.s32.totalorder %s15, 0
    %p54 = por %p52, %p53
    %s56 = sadd.s32 %s55, 1
    %p59 = scmp.eq.s32.totalorder %s9, 1
    %p60 = scmp.ne.s32.totalorder %s55, %s57
    %p61 = scmp.eq.s32.totalorder %s9, 0
    %p62 = por %p60, %p61
    %p63 = scmp.ne.s32.totalorder %s55, %s57
    %p64 = scmp.eq.s32.totalorder %s14, 1
    %p65 = por %p63, %p64
    %p66 = scmp.ne.s32.totalorder %s57, %s58
    %p67 = scmp.eq.s32.totalorder %s14, 0
    %p68 = por %p66, %p67
    %p69 = scmp.ne.s32.totalorder %s57, %s58
    %p70 = scmp.eq.s32.totalorder %s15, 1
    %p71 = por %p69, %p70
    %p73 = scmp.ne.s32.totalorder %s58, %s72
    %p74 = scmp.eq.s32.totalorder %s15, 0
    %p75 = por %p73, %p74
    %s77 = sadd.s32 %s76, 1
    %p80 = scmp.eq.s32.totalorder %s9, 1
    %p81 = scmp.ne.s32.totalorder %s76, %s78
    %p82 = scmp.eq.s32.totalorder %s9, 0
    %p83 = por %p81, %p82
    %p84 = scmp.ne.s32.totalorder %s76, %s78
    %p85 = scmp.eq.s32.totalorder %s14, 1
    %p86 = por %p84, %p85
    %p87 = scmp.ne.s32.totalorder %s78, %s79
    %p88 = scmp.eq.s32.totalorder %s14, 0
    %p89 = por %p87, %p88
    %p90 = scmp.ne.s32.totalorder %s78, %s79
    %p91 = scmp.eq.s32.totalorder %s15, 1
    %p92 = por %p90, %p91
    %p94 = scmp.ne.s32.totalorder %s79, %s93
    %p95 = scmp.eq.s32.totalorder %s15, 0
    %p96 = por %p94, %p95
    %s97 = ssub.s32 %s16, %s28
    %s98 = ssub.s32 %s17, %s24
    %s99 = sor.u32 %s97, %s98
    %p100 = scmp.eq.s32.totalorder %s99, 0
    %s102 = sadd.s32 %s101, 1
    %s103 = scalar_select %p100, %s101, %s102
    %p106 = pneg %p100
    %p107 = scmp.eq.s32.totalorder %s9, 1
    %p108 = por %p106, %p107
    %p109 = scmp.ne.s32.totalorder %s101, %s104
    %p110 = scmp.eq.s32.totalorder %s9, 0
    %p111 = por %p109, %p110
    %p112 = scmp.ne.s32.totalorder %s101, %s104
    %p113 = scmp.eq.s32.totalorder %s14, 1
    %p114 = por %p112, %p113
    %p115 = scmp.ne.s32.totalorder %s104, %s105
    %p116 = scmp.eq.s32.totalorder %s14, 0
    %p117 = por %p115, %p116
    %p118 = scmp.ne.s32.totalorder %s104, %s105
    %p119 = scmp.eq.s32.totalorder %s15, 1
    %p120 = por %p118, %p119
    %p122 = scmp.ne.s32.totalorder %s105, %s121
    %p123 = scmp.eq.s32.totalorder %s15, 0
    %p124 = por %p122, %p123
    %p125 = scmp.le.s32.totalorder 1, %s9
    %p126 = scmp.lt.s32.totalorder %s9, 3
    %p127 = pnand %p125, %p126
    %p128 = pneg %p127
    // Predicated region
    $region9: #{deblur_down_forward.2} parent=5 // pred_check
      _
    $region10: #{deblur_down_forward.2} parent=5 // pred_check_branch
      %130 = sbr.rel (%p127) target = $region12
    $region11: #{deblur_down_forward.2} parent=5 // pred_region
      %s131 = ssub.s32 %s9, 1
      // Predicated region
      $region13: #{deblur_down_forward.2} parent=11 // pred_check
        %p132 = pneg %p68
      $region14: #{deblur_down_forward.2} parent=11 // pred_check_branch
        %134 = sbr.rel (%p132) target = $region16
      $region15: #{deblur_down_forward.2} parent=11 // pred_region
        _
      $region16: #{deblur_down_forward.2} parent=11 // pred_fallthru
        _
      // Predicated region
      $region17: #{deblur_down_forward.2} parent=11 // pred_check
        %p135 = pneg %p89
      $region18: #{deblur_down_forward.2} parent=11 // pred_check_branch
        %137 = sbr.rel (%p135) target = $region20
      $region19: #{deblur_down_forward.2} parent=11 // pred_region
        _
      $region20: #{deblur_down_forward.2} parent=11 // pred_fallthru
        _
    $region12: #{deblur_down_forward.2} parent=5 // pred_fallthru
      _
    %p138 = scmp.lt.s32.totalorder %s9, 2
    // Predicated region
    $region21: #{deblur_down_forward.2} parent=5 // pred_check
      %p139 = pneg %p138
    $region22: #{deblur_down_forward.2} parent=5 // pred_check_branch
      %141 = sbr.rel (%p139) target = $region24
    $region23: #{deblur_down_forward.2} parent=5 // pred_region
      // Predicated region
      $region25: #{deblur_down_forward.2} parent=23 // pred_check
        %p142 = pneg %p41
      $region26: #{deblur_down_forward.2} parent=23 // pred_check_branch
        %144 = sbr.rel (%p142) target = $region28
      $region27: #{deblur_down_forward.2} parent=23 // pred_region
        %p145 = scmp.lt.s32.totalorder %s16, 1
        %s146 = scalar_select %p145, %s16, 1
        %s147 = smul.addr %s146, 18
        %s148 = smul.addr %s147, 4
        %s149 = scalar_lea.vmem %s0, %s148
      $region28: #{deblur_down_forward.2} parent=23 // pred_fallthru
        _
    $region24: #{deblur_down_forward.2} parent=5 // pred_fallthru
      _
    %p150 = scmp.le.s32.totalorder 1, %s9
    %p151 = scmp.lt.s32.totalorder %s9, 3
    %p152 = pnand %p150, %p151
    %p153 = pneg %p152
    // Predicated region
    $region29: #{deblur_down_forward.2} parent=5 // pred_check
      _
    $region30: #{deblur_down_forward.2} parent=5 // pred_check_branch
      %155 = sbr.rel (%p152) target = $region32
    $region31: #{deblur_down_forward.2} parent=5 // pred_region
      %s156 = ssub.s32 %s9, 1
      %p157 = scmp.lt.s32.totalorder %s18, 1
      %s158 = scalar_select %p157, %s18, 1
      %s159 = smul.addr %s158, 18
      %s160 = smul.addr %s159, 4
      %s161 = scalar_lea.vmem %s0, %s160
      %p162 = pneg %p47
      %p163 = pneg %p44
      %p164 = pneg %p68
      %p165 = pneg %p65
      %p166 = pneg %p89
      %p167 = pneg %p86
      %p168 = pneg %p117
      %p169 = pneg %p114
      %s170 = smul.u32 8, %s19
      %p171 = scmp.lt.s32.totalorder %s18, 1
      %s172 = scalar_select %p171, %s18, 1
      %p173 = scmp.lt.s32.totalorder %s170, 7
      %s174 = scalar_select %p173, %s170, 7
      %s175 = smul.addr %s172, 8
      %s176 = sadd.s32 %s174, %s175
      %s177 = smul.addr %s176, 4
      %s178 = scalar_lea.vmem %s3, %s177
      %p179 = scmp.lt.s32.totalorder %s18, 1
      %s180 = scalar_select %p179, %s18, 1
      %s181 = smul.addr %s180, 18
      %s182 = smul.addr %s181, 4
      %s183 = scalar_lea.vmem %s0, %s182
      %s184 = smul.u32 8, %s19
      %p185 = scmp.lt.s32.totalorder %s18, 1
      %s186 = scalar_select %p185, %s18, 1
      %p187 = scmp.lt.s32.totalorder %s184, 7
      %s188 = scalar_select %p187, %s184, 7
      %s189 = smul.addr %s186, 8
      %s190 = sadd.s32 %s188, %s189
      %s191 = smul.addr %s190, 4
      %s192 = scalar_lea.vmem %s3, %s191
      %s193 = smul.u32 8, %s19
      %s195 = smul.u32 %s19, 8
      %s196 = smul.u32 %s195, 2
      %s197 = smul.addr %s196, 4
      %s198 = scalar_lea.vmem %s183, %s197
      %v199 = vld [vmem:[%s198] sm:$0xf]
      %v200 = vld [vmem:[%s198 + $0x8] sm:$0xf]
      %v201 = vld [vmem:[%s198 + $0x10] sm:$0xf]
      %v202 = vld [vmem:[%s198 + $0x18] sm:$0xf]
      %v203 = vld [vmem:[%s198 + $0x20] sm:$0xf]
      %v204 = vld [vmem:[%s198 + $0x28] sm:$0xf]
      %v205 = vld [vmem:[%s198 + $0x30] sm:$0xf]
      %v206 = vld [vmem:[%s198 + $0x38] sm:$0xf]
      %v207 = vld [vmem:[%s1] sm:$0xf]
      %v208 = vld [vmem:[%s1 + $0x4] sm:$0xf]
      %v217 = vunpack.c.l.b16 %v199
      %v218 = vunpack.c.l.b16 %v200
      %v219 = vunpack.c.l.b16 %v201
      %v220 = vunpack.c.l.b16 %v202
      %v221 = vunpack.c.l.b16 %v203
      %v222 = vunpack.c.l.b16 %v204
      %v223 = vunpack.c.l.b16 %v205
      %v224 = vunpack.c.l.b16 %v206
      %v225 = vpack.c.b16 %v218, %v217
      %v226 = vpack.c.b16 %v220, %v219
      %v227 = vpack.c.b16 %v222, %v221
      %v228 = vpack.c.b16 %v224, %v223
      %v231 = vunpack.c.l.b16 %v207
      %v232 = vunpack.c.l.b16 %v208
      %v233 = vpack.c.b16 %v232, %v231
      %vm235 = vcmask 130048
      %v237 = vsel %vm235, %v225, 0
      %v240 = vsel %vm235, %v226, 0
      %v243 = vsel %vm235, %v227, 0
      %v246 = vsel %vm235, %v228, 0
      %248 = vmatpush.bf16.msra.mxu0 0
      %249 = vmatpush.bf16.msra.mxu0 0
      %250 = vmatpush.bf16.msra.mxu0 0
      %251 = vmatpush.bf16.msra.mxu0 0
      %252 = vmatpush.bf16.msra.mxu0 0
      %253 = vmatpush.bf16.msra.mxu0 0
      %254 = vmatpush.bf16.msra.mxu0 0
      %255 = vmatpush.bf16.msra.mxu0 %v233
      %256 = vmatmul.bf16.gmra.mxu0 %v237
      %v257 = vpop.f32.mrf.mxu0
      %v258 = vadd.f32 0.0, %v257
      %v259 = vpop.f32.mrf.mxu0
      %v260 = vadd.f32 0.0, %v259
      %261 = vmatmul.bf16.gmra.mxu0 %v240
      %v262 = vpop.f32.mrf.mxu0
      %v263 = vadd.f32 0.0, %v262
      %v264 = vpop.f32.mrf.mxu0
      %v265 = vadd.f32 0.0, %v264
      %266 = vmatmul.bf16.gmra.mxu0 %v243
      %v267 = vpop.f32.mrf.mxu0
      %v268 = vadd.f32 0.0, %v267
      %v269 = vpop.f32.mrf.mxu0
      %v270 = vadd.f32 0.0, %v269
      %271 = vmatmul.bf16.gmra.mxu0 %v246
      %v272 = vpop.f32.mrf.mxu0
      %v273 = vadd.f32 0.0, %v272
      %v274 = vpop.f32.mrf.mxu0
      %v275 = vadd.f32 0.0, %v274
      %276 = vdwg.mxu0
      %vm277 = vcmask 64512
      %278 = vst.msk [vmem:[#allocation2] sm:$0xff] %vm277, %v258
      %279 = vst.msk [vmem:[#allocation2 + $0x8] sm:$0xff] %vm277, %v260
      %280 = vst.msk [vmem:[#allocation2 + $0x10] sm:$0xff] %vm277, %v263
      %281 = vst.msk [vmem:[#allocation2 + $0x18] sm:$0xff] %vm277, %v265
      %282 = vst.msk [vmem:[#allocation2 + $0x20] sm:$0xff] %vm277, %v268
      %283 = vst.msk [vmem:[#allocation2 + $0x28] sm:$0xff] %vm277, %v270
      %284 = vst.msk [vmem:[#allocation2 + $0x30] sm:$0xff] %vm277, %v273
      %285 = vst.msk [vmem:[#allocation2 + $0x38] sm:$0xff] %vm277, %v275
      %v286 = vld [vmem:[%s198] sm:$0xf]
      %v287 = vld [vmem:[%s198 + $0x4] sm:$0x1]
      %v288 = vld [vmem:[%s198 + $0x8] sm:$0xf]
      %v289 = vld [vmem:[%s198 + $0xc] sm:$0x1]
      %v290 = vld [vmem:[%s198 + $0x10] sm:$0xf]
      %v291 = vld [vmem:[%s198 + $0x14] sm:$0x1]
      %v292 = vld [vmem:[%s198 + $0x18] sm:$0xf]
      %v293 = vld [vmem:[%s198 + $0x1c] sm:$0x1]
      %v294 = vld [vmem:[%s198 + $0x20] sm:$0xf]
      %v295 = vld [vmem:[%s198 + $0x24] sm:$0x1]
      %v296 = vld [vmem:[%s198 + $0x28] sm:$0xf]
      %v297 = vld [vmem:[%s198 + $0x2c] sm:$0x1]
      %v298 = vld [vmem:[%s198 + $0x30] sm:$0xf]
      %v299 = vld [vmem:[%s198 + $0x34] sm:$0x1]
      %v300 = vld [vmem:[%s198 + $0x38] sm:$0xf]
      %v301 = vld [vmem:[%s198 + $0x3c] sm:$0x1]
      %vm302 = vsmask.f32 3328
      %vm303 = vsmask.f32 7440
      %vm304 = vmor %vm302, %vm303
      %v306 = vshrl.u32 %v286, 16
      %v308 = vrot.slane %v306, 4
      %v309 = vshll.u32 %v286, 16
      %v311 = vrot.slane %v309, 5
      %v312 = vor.u32 %v308, %v311
      %v313 = vrot.slane %v312, 4
      %v315 = vshll.u32 %v287, 16
      %v317 = vrot.slane %v315, 5
      %v318 = vsel %vm304, %v313, %v317
      %v320 = vshrl.u32 %v288, 16
      %v322 = vrot.slane %v320, 4
      %v323 = vshll.u32 %v288, 16
      %v325 = vrot.slane %v323, 5
      %v326 = vor.u32 %v322, %v325
      %v327 = vrot.slane %v326, 4
      %v329 = vshll.u32 %v289, 16
      %v331 = vrot.slane %v329, 5
      %v332 = vsel %vm304, %v327, %v331
      %v334 = vshrl.u32 %v290, 16
      %v336 = vrot.slane %v334, 4
      %v337 = vshll.u32 %v290, 16
      %v339 = vrot.slane %v337, 5
      %v340 = vor.u32 %v336, %v339
      %v341 = vrot.slane %v340, 4
      %v343 = vshll.u32 %v291, 16
      %v345 = vrot.slane %v343, 5
      %v346 = vsel %vm304, %v341, %v345
      %v348 = vshrl.u32 %v292, 16
      %v350 = vrot.slane %v348, 4
      %v351 = vshll.u32 %v292, 16
      %v353 = vrot.slane %v351, 5
      %v354 = vor.u32 %v350, %v353
      %v355 = vrot.slane %v354, 4
      %v357 = vshll.u32 %v293, 16
      %v359 = vrot.slane %v357, 5
      %v360 = vsel %vm304, %v355, %v359
      %v362 = vshrl.u32 %v294, 16
      %v364 = vrot.slane %v362, 4
      %v365 = vshll.u32 %v294, 16
      %v367 = vrot.slane %v365, 5
      %v368 = vor.u32 %v364, %v367
      %v369 = vrot.slane %v368, 4
      %v371 = vshll.u32 %v295, 16
      %v373 = vrot.slane %v371, 5
      %v374 = vsel %vm304, %v369, %v373
      %v376 = vshrl.u32 %v296, 16
      %v378 = vrot.slane %v376, 4
      %v379 = vshll.u32 %v296, 16
      %v381 = vrot.slane %v379, 5
      %v382 = vor.u32 %v378, %v381
      %v383 = vrot.slane %v382, 4
      %v385 = vshll.u32 %v297, 16
      %v387 = vrot.slane %v385, 5
      %v388 = vsel %vm304, %v383, %v387
      %v390 = vshrl.u32 %v298, 16
      %v392 = vrot.slane %v390, 4
      %v393 = vshll.u32 %v298, 16
      %v395 = vrot.slane %v393, 5
      %v396 = vor.u32 %v392, %v395
      %v397 = vrot.slane %v396, 4
      %v399 = vshll.u32 %v299, 16
      %v401 = vrot.slane %v399, 5
      %v402 = vsel %vm304, %v397, %v401
      %v404 = vshrl.u32 %v300, 16
      %v406 = vrot.slane %v404, 4
      %v407 = vshll.u32 %v300, 16
      %v409 = vrot.slane %v407, 5
      %v410 = vor.u32 %v406, %v409
      %v411 = vrot.slane %v410, 4
      %v413 = vshll.u32 %v301, 16
      %v415 = vrot.slane %v413, 5
      %v416 = vsel %vm304, %v411, %v415
      %s417 = scalar_lea.vmem %s1, 8
      %v418 = vld [vmem:[%s417] sm:$0xf]
      %v419 = vld [vmem:[%s417 + $0x4] sm:$0xf]
      %v420 = vunpack.c.l.b16 %v318
      %v421 = vunpack.c.l.b16 %v332
      %v422 = vunpack.c.l.b16 %v346
      %v423 = vunpack.c.l.b16 %v360
      %v424 = vunpack.c.l.b16 %v374
      %v425 = vunpack.c.l.b16 %v388
      %v426 = vunpack.c.l.b16 %v402
      %v427 = vunpack.c.l.b16 %v416
      %v428 = vpack.c.b16 %v421, %v420
      %v429 = vpack.c.b16 %v423, %v422
      %v430 = vpack.c.b16 %v425, %v424
      %v431 = vpack.c.b16 %v427, %v426
      %v434 = vunpack.c.l.b16 %v418
      %v435 = vunpack.c.l.b16 %v419
      %v436 = vpack.c.b16 %v435, %v434
      %v439 = vsel %vm235, %v428, 0
      %v442 = vsel %vm235, %v429, 0
      %v445 = vsel %vm235, %v430, 0
      %v448 = vsel %vm235, %v431, 0
      %450 = vmatpush.bf16.msra.mxu0 0
      %451 = vmatpush.bf16.msra.mxu0 0
      %452 = vmatpush.bf16.msra.mxu0 0
      %453 = vmatpush.bf16.msra.mxu0 0
      %454 = vmatpush.bf16.msra.mxu0 0
      %455 = vmatpush.bf16.msra.mxu0 0
      %456 = vmatpush.bf16.msra.mxu0 0
      %457 = vmatpush.bf16.msra.mxu0 %v436
      %458 = vmatmul.bf16.gmra.mxu0 %v439
      %v459 = vpop.f32.mrf.mxu0
      %v460 = vadd.f32 0.0, %v459
      %v461 = vpop.f32.mrf.mxu0
      %v462 = vadd.f32 0.0, %v461
      %463 = vmatmul.bf16.gmra.mxu0 %v442
      %v464 = vpop.f32.mrf.mxu0
      %v465 = vadd.f32 0.0, %v464
      %v466 = vpop.f32.mrf.mxu0
      %v467 = vadd.f32 0.0, %v466
      %468 = vmatmul.bf16.gmra.mxu0 %v445
      %v469 = vpop.f32.mrf.mxu0
      %v470 = vadd.f32 0.0, %v469
      %v471 = vpop.f32.mrf.mxu0
      %v472 = vadd.f32 0.0, %v471
      %473 = vmatmul.bf16.gmra.mxu0 %v448
      %v474 = vpop.f32.mrf.mxu0
      %v475 = vadd.f32 0.0, %v474
      %v476 = vpop.f32.mrf.mxu0
      %v477 = vadd.f32 0.0, %v476
      %478 = vdwg.mxu0
      %v479 = vld [vmem:[#allocation2] sm:$0xff]
      %v480 = vld [vmem:[#allocation2 + $0x8] sm:$0xff]
      %v481 = vld [vmem:[#allocation2 + $0x10] sm:$0xff]
      %v482 = vld [vmem:[#allocation2 + $0x18] sm:$0xff]
      %v483 = vld [vmem:[#allocation2 + $0x20] sm:$0xff]
      %v484 = vld [vmem:[#allocation2 + $0x28] sm:$0xff]
      %v485 = vld [vmem:[#allocation2 + $0x30] sm:$0xff]
      %v486 = vld [vmem:[#allocation2 + $0x38] sm:$0xff]
      %v487 = vadd.f32 %v479, %v460
      %v488 = vadd.f32 %v480, %v462
      %v489 = vadd.f32 %v481, %v465
      %v490 = vadd.f32 %v482, %v467
      %v491 = vadd.f32 %v483, %v470
      %v492 = vadd.f32 %v484, %v472
      %v493 = vadd.f32 %v485, %v475
      %v494 = vadd.f32 %v486, %v477
      %495 = vst.msk [vmem:[#allocation2] sm:$0xff] %vm277, %v487
      %496 = vst.msk [vmem:[#allocation2 + $0x8] sm:$0xff] %vm277, %v488
      %497 = vst.msk [vmem:[#allocation2 + $0x10] sm:$0xff] %vm277, %v489
      %498 = vst.msk [vmem:[#allocation2 + $0x18] sm:$0xff] %vm277, %v490
      %499 = vst.msk [vmem:[#allocation2 + $0x20] sm:$0xff] %vm277, %v491
      %500 = vst.msk [vmem:[#allocation2 + $0x28] sm:$0xff] %vm277, %v492
      %501 = vst.msk [vmem:[#allocation2 + $0x30] sm:$0xff] %vm277, %v493
      %502 = vst.msk [vmem:[#allocation2 + $0x38] sm:$0xff] %vm277, %v494
      %s503 = sadd.s32 %s195, 1
      %s504 = smul.u32 %s503, 2
      %s505 = smul.addr %s504, 4
      %s506 = scalar_lea.vmem %s183, %s505
      %v507 = vld [vmem:[%s506] sm:$0xf]
      %v508 = vld [vmem:[%s506 + $0x8] sm:$0xf]
      %v509 = vld [vmem:[%s506 + $0x10] sm:$0xf]
      %v510 = vld [vmem:[%s506 + $0x18] sm:$0xf]
      %v511 = vld [vmem:[%s506 + $0x20] sm:$0xf]
      %v512 = vld [vmem:[%s506 + $0x28] sm:$0xf]
      %v513 = vld [vmem:[%s506 + $0x30] sm:$0xf]
      %v514 = vld [vmem:[%s506 + $0x38] sm:$0xf]
      %s515 = scalar_lea.vmem %s1, 16
      %v516 = vld [vmem:[%s515] sm:$0xf]
      %v517 = vld [vmem:[%s515 + $0x4] sm:$0xf]
      %v526 = vunpack.c.l.b16 %v507
      %v527 = vunpack.c.l.b16 %v508
      %v528 = vunpack.c.l.b16 %v509
      %v529 = vunpack.c.l.b16 %v510
      %v530 = vunpack.c.l.b16 %v511
      %v531 = vunpack.c.l.b16 %v512
      %v532 = vunpack.c.l.b16 %v513
      %v533 = vunpack.c.l.b16 %v514
      %v534 = vpack.c.b16 %v527, %v526
      %v535 = vpack.c.b16 %v529, %v528
      %v536 = vpack.c.b16 %v531, %v530
      %v537 = vpack.c.b16 %v533, %v532
      %v540 = vunpack.c.l.b16 %v516
      %v541 = vunpack.c.l.b16 %v517
      %v542 = vpack.c.b16 %v541, %v540
      %v545 = vsel %vm235, %v534, 0
      %v548 = vsel %vm235, %v535, 0
      %v551 = vsel %vm235, %v536, 0
      %v554 = vsel %vm235, %v537, 0
      %556 = vmatpush.bf16.msra.mxu0 0
      %557 = vmatpush.bf16.msra.mxu0 0
      %558 = vmatpush.bf16.msra.mxu0 0
      %559 = vmatpush.bf16.msra.mxu0 0
      %560 = vmatpush.bf16.msra.mxu0 0
      %561 = vmatpush.bf16.msra.mxu0 0
      %562 = vmatpush.bf16.msra.mxu0 0
      %563 = vmatpush.bf16.msra.mxu0 %v542
      %564 = vmatmul.bf16.gmra.mxu0 %v545
      %v565 = vpop.f32.mrf.mxu0
      %v566 = vadd.f32 0.0, %v565
      %v567 = vpop.f32.mrf.mxu0
      %v568 = vadd.f32 0.0, %v567
      %569 = vmatmul.bf16.gmra.mxu0 %v548
      %v570 = vpop.f32.mrf.mxu0
      %v571 = vadd.f32 0.0, %v570
      %v572 = vpop.f32.mrf.mxu0
      %v573 = vadd.f32 0.0, %v572
      %574 = vmatmul.bf16.gmra.mxu0 %v551
      %v575 = vpop.f32.mrf.mxu0
      %v576 = vadd.f32 0.0, %v575
      %v577 = vpop.f32.mrf.mxu0
      %v578 = vadd.f32 0.0, %v577
      %579 = vmatmul.bf16.gmra.mxu0 %v554
      %v580 = vpop.f32.mrf.mxu0
      %v581 = vadd.f32 0.0, %v580
      %v582 = vpop.f32.mrf.mxu0
      %v583 = vadd.f32 0.0, %v582
      %584 = vdwg.mxu0
      %v585 = vld [vmem:[#allocation2] sm:$0xff]
      %v586 = vld [vmem:[#allocation2 + $0x8] sm:$0xff]
      %v587 = vld [vmem:[#allocation2 + $0x10] sm:$0xff]
      %v588 = vld [vmem:[#allocation2 + $0x18] sm:$0xff]
      %v589 = vld [vmem:[#allocation2 + $0x20] sm:$0xff]
      %v590 = vld [vmem:[#allocation2 + $0x28] sm:$0xff]
      %v591 = vld [vmem:[#allocation2 + $0x30] sm:$0xff]
      %v592 = vld [vmem:[#allocation2 + $0x38] sm:$0xff]
      %v593 = vadd.f32 %v585, %v566
      %v594 = vadd.f32 %v586, %v568
      %v595 = vadd.f32 %v587, %v571
      %v596 = vadd.f32 %v588, %v573
      %v597 = vadd.f32 %v589, %v576
      %v598 = vadd.f32 %v590, %v578
      %v599 = vadd.f32 %v591, %v581
      %v600 = vadd.f32 %v592, %v583
      %601 = vst.msk [vmem:[#allocation2] sm:$0xff] %vm277, %v593
      %602 = vst.msk [vmem:[#allocation2 + $0x8] sm:$0xff] %vm277, %v594
      %603 = vst.msk [vmem:[#allocation2 + $0x10] sm:$0xff] %vm277, %v595
      %604 = vst.msk [vmem:[#allocation2 + $0x18] sm:$0xff] %vm277, %v596
      %605 = vst.msk [vmem:[#allocation2 + $0x20] sm:$0xff] %vm277, %v597
      %606 = vst.msk [vmem:[#allocation2 + $0x28] sm:$0xff] %vm277, %v598
      %607 = vst.msk [vmem:[#allocation2 + $0x30] sm:$0xff] %vm277, %v599
      %608 = vst.msk [vmem:[#allocation2 + $0x38] sm:$0xff] %vm277, %v600
      %v609 = vld [vmem:[%s506] sm:$0xf]
      %v610 = vld [vmem:[%s506 + $0x4] sm:$0x1]
      %v611 = vld [vmem:[%s506 + $0x8] sm:$0xf]
      %v612 = vld [vmem:[%s506 + $0xc] sm:$0x1]
      %v613 = vld [vmem:[%s506 + $0x10] sm:$0xf]
      %v614 = vld [vmem:[%s506 + $0x14] sm:$0x1]
      %v615 = vld [vmem:[%s506 + $0x18] sm:$0xf]
      %v616 = vld [vmem:[%s506 + $0x1c] sm:$0x1]
      %v617 = vld [vmem:[%s506 + $0x20] sm:$0xf]
      %v618 = vld [vmem:[%s506 + $0x24] sm:$0x1]
      %v619 = vld [vmem:[%s506 + $0x28] sm:$0xf]
      %v620 = vld [vmem:[%s506 + $0x2c] sm:$0x1]
      %v621 = vld [vmem:[%s506 + $0x30] sm:$0xf]
      %v622 = vld [vmem:[%s506 + $0x34] sm:$0x1]
      %v623 = vld [vmem:[%s506 + $0x38] sm:$0xf]
      %v624 = vld [vmem:[%s506 + $0x3c] sm:$0x1]
      %v626 = vshrl.u32 %v609, 16
      %v628 = vrot.slane %v626, 4
      %v629 = vshll.u32 %v609, 16
      %v631 = vrot.slane %v629, 5
      %v632 = vor.u32 %v628, %v631
      %v633 = vrot.slane %v632, 4
      %v635 = vshll.u32 %v610, 16
      %v637 = vrot.slane %v635, 5
      %v638 = vsel %vm304, %v633, %v637
      %v640 = vshrl.u32 %v611, 16
      %v642 = vrot.slane %v640, 4
      %v643 = vshll.u32 %v611, 16
      %v645 = vrot.slane %v643, 5
      %v646 = vor.u32 %v642, %v645
      %v647 = vrot.slane %v646, 4
      %v649 = vshll.u32 %v612, 16
      %v651 = vrot.slane %v649, 5
      %v652 = vsel %vm304, %v647, %v651
      %v654 = vshrl.u32 %v613, 16
      %v656 = vrot.slane %v654, 4
      %v657 = vshll.u32 %v613, 16
      %v659 = vrot.slane %v657, 5
      %v660 = vor.u32 %v656, %v659
      %v661 = vrot.slane %v660, 4
      %v663 = vshll.u32 %v614, 16
      %v665 = vrot.slane %v663, 5
      %v666 = vsel %vm304, %v661, %v665
      %v668 = vshrl.u32 %v615, 16
      %v670 = vrot.slane %v668, 4
      %v671 = vshll.u32 %v615, 16
      %v673 = vrot.slane %v671, 5
      %v674 = vor.u32 %v670, %v673
      %v675 = vrot.slane %v674, 4
      %v677 = vshll.u32 %v616, 16
      %v679 = vrot.slane %v677, 5
      %v680 = vsel %vm304, %v675, %v679
      %v682 = vshrl.u32 %v617, 16
      %v684 = vrot.slane %v682, 4
      %v685 = vshll.u32 %v617, 16
      %v687 = vrot.slane %v685, 5
      %v688 = vor.u32 %v684, %v687
      %v689 = vrot.slane %v688, 4
      %v691 = vshll.u32 %v618, 16
      %v693 = vrot.slane %v691, 5
      %v694 = vsel %vm304, %v689, %v693
      %v696 = vshrl.u32 %v619, 16
      %v698 = vrot.slane %v696, 4
      %v699 = vshll.u32 %v619, 16
      %v701 = vrot.slane %v699, 5
      %v702 = vor.u32 %v698, %v701
      %v703 = vrot.slane %v702, 4
      %v705 = vshll.u32 %v620, 16
      %v707 = vrot.slane %v705, 5
      %v708 = vsel %vm304, %v703, %v707
      %v710 = vshrl.u32 %v621, 16
      %v712 = vrot.slane %v710, 4
      %v713 = vshll.u32 %v621, 16
      %v715 = vrot.slane %v713, 5
      %v716 = vor.u32 %v712, %v715
      %v717 = vrot.slane %v716, 4
      %v719 = vshll.u32 %v622, 16
      %v721 = vrot.slane %v719, 5
      %v722 = vsel %vm304, %v717, %v721
      %v724 = vshrl.u32 %v623, 16
      %v726 = vrot.slane %v724, 4
      %v727 = vshll.u32 %v623, 16
      %v729 = vrot.slane %v727, 5
      %v730 = vor.u32 %v726, %v729
      %v731 = vrot.slane %v730, 4
      %v733 = vshll.u32 %v624, 16
      %v735 = vrot.slane %v733, 5
      %v736 = vsel %vm304, %v731, %v735
      %s737 = scalar_lea.vmem %s1, 24
      %v738 = vld [vmem:[%s737] sm:$0xf]
      %v739 = vld [vmem:[%s737 + $0x4] sm:$0xf]
      %v740 = vunpack.c.l.b16 %v638
      %v741 = vunpack.c.l.b16 %v652
      %v742 = vunpack.c.l.b16 %v666
      %v743 = vunpack.c.l.b16 %v680
      %v744 = vunpack.c.l.b16 %v694
      %v745 = vunpack.c.l.b16 %v708
      %v746 = vunpack.c.l.b16 %v722
      %v747 = vunpack.c.l.b16 %v736
      %v748 = vpack.c.b16 %v741, %v740
      %v749 = vpack.c.b16 %v743, %v742
      %v750 = vpack.c.b16 %v745, %v744
      %v751 = vpack.c.b16 %v747, %v746
      %v754 = vunpack.c.l.b16 %v738
      %v755 = vunpack.c.l.b16 %v739
      %v756 = vpack.c.b16 %v755, %v754
      %v759 = vsel %vm235, %v748, 0
      %v762 = vsel %vm235, %v749, 0
      %v765 = vsel %vm235, %v750, 0
      %v768 = vsel %vm235, %v751, 0
      %770 = vmatpush.bf16.msra.mxu0 0
      %771 = vmatpush.bf16.msra.mxu0 0
      %772 = vmatpush.bf16.msra.mxu0 0
      %773 = vmatpush.bf16.msra.mxu0 0
      %774 = vmatpush.bf16.msra.mxu0 0
      %775 = vmatpush.bf16.msra.mxu0 0
      %776 = vmatpush.bf16.msra.mxu0 0
      %777 = vmatpush.bf16.msra.mxu0 %v756
      %778 = vmatmul.bf16.gmra.mxu0 %v759
      %v779 = vpop.f32.mrf.mxu0
      %v780 = vadd.f32 0.0, %v779
      %v781 = vpop.f32.mrf.mxu0
      %v782 = vadd.f32 0.0, %v781
      %783 = vmatmul.bf16.gmra.mxu0 %v762
      %v784 = vpop.f32.mrf.mxu0
      %v785 = vadd.f32 0.0, %v784
      %v786 = vpop.f32.mrf.mxu0
      %v787 = vadd.f32 0.0, %v786
      %788 = vmatmul.bf16.gmra.mxu0 %v765
      %v789 = vpop.f32.mrf.mxu0
      %v790 = vadd.f32 0.0, %v789
      %v791 = vpop.f32.mrf.mxu0
      %v792 = vadd.f32 0.0, %v791
      %793 = vmatmul.bf16.gmra.mxu0 %v768
      %v794 = vpop.f32.mrf.mxu0
      %v795 = vadd.f32 0.0, %v794
      %v796 = vpop.f32.mrf.mxu0
      %v797 = vadd.f32 0.0, %v796
      %798 = vdwg.mxu0
      %v799 = vld [vmem:[#allocation2] sm:$0xff]
      %v800 = vld [vmem:[#allocation2 + $0x8] sm:$0xff]
      %v801 = vld [vmem:[#allocation2 + $0x10] sm:$0xff]
      %v802 = vld [vmem:[#allocation2 + $0x18] sm:$0xff]
      %v803 = vld [vmem:[#allocation2 + $0x20] sm:$0xff]
      %v804 = vld [vmem:[#allocation2 + $0x28] sm:$0xff]
      %v805 = vld [vmem:[#allocation2 + $0x30] sm:$0xff]
      %v806 = vld [vmem:[#allocation2 + $0x38] sm:$0xff]
      %v807 = vadd.f32 %v799, %v780
      %v808 = vadd.f32 %v800, %v782
      %v809 = vadd.f32 %v801, %v785
      %v810 = vadd.f32 %v802, %v787
      %v811 = vadd.f32 %v803, %v790
      %v812 = vadd.f32 %v804, %v792
      %v813 = vadd.f32 %v805, %v795
      %v814 = vadd.f32 %v806, %v797
      %815 = vst.msk [vmem:[#allocation2] sm:$0xff] %vm277, %v807
      %816 = vst.msk [vmem:[#allocation2 + $0x8] sm:$0xff] %vm277, %v808
      %817 = vst.msk [vmem:[#allocation2 + $0x10] sm:$0xff] %vm277, %v809
      %818 = vst.msk [vmem:[#allocation2 + $0x18] sm:$0xff] %vm277, %v810
      %819 = vst.msk [vmem:[#allocation2 + $0x20] sm:$0xff] %vm277, %v811
      %820 = vst.msk [vmem:[#allocation2 + $0x28] sm:$0xff] %vm277, %v812
      %821 = vst.msk [vmem:[#allocation2 + $0x30] sm:$0xff] %vm277, %v813
      %822 = vst.msk [vmem:[#allocation2 + $0x38] sm:$0xff] %vm277, %v814
      %v823 = vld [vmem:[#allocation2] sm:$0xff]
      %v824 = vld [vmem:[#allocation2 + $0x8] sm:$0xff]
      %v825 = vld [vmem:[#allocation2 + $0x10] sm:$0xff]
      %v826 = vld [vmem:[#allocation2 + $0x18] sm:$0xff]
      %v827 = vld [vmem:[#allocation2 + $0x20] sm:$0xff]
      %v828 = vld [vmem:[#allocation2 + $0x28] sm:$0xff]
      %v829 = vld [vmem:[#allocation2 + $0x30] sm:$0xff]
      %v830 = vld [vmem:[#allocation2 + $0x38] sm:$0xff]
      %v831 = vld [vmem:[%s2] sm:$0x1]
      %v833 = vperm.slane %v831, 0
      %v835 = vadd.f32 %v823, %v833
      %v836 = vadd.f32 %v824, %v833
      %v837 = vadd.f32 %v825, %v833
      %v838 = vadd.f32 %v826, %v833
      %v839 = vadd.f32 %v827, %v833
      %v840 = vadd.f32 %v828, %v833
      %v841 = vadd.f32 %v829, %v833
      %v842 = vadd.f32 %v830, %v833
      %v843 = vmax.f32 %v835, 0.0
      %v844 = vmax.f32 %v836, 0.0
      %v845 = vmax.f32 %v837, 0.0
      %v846 = vmax.f32 %v838, 0.0
      %v847 = vmax.f32 %v839, 0.0
      %v848 = vmax.f32 %v840, 0.0
      %v849 = vmax.f32 %v841, 0.0
      %v850 = vmax.f32 %v842, 0.0
      %v851 = vpack.c.bf16 %v843, %v843
      %v852 = vpack.c.bf16 %v844, %v844
      %v853 = vpack.c.bf16 %v845, %v845
      %v854 = vpack.c.bf16 %v846, %v846
      %v855 = vpack.c.bf16 %v847, %v847
      %v856 = vpack.c.bf16 %v848, %v848
      %v857 = vpack.c.bf16 %v849, %v849
      %v858 = vpack.c.bf16 %v850, %v850
      %vm859 = vcmask 60416
      %860 = vst.msk [vmem:[%s192] sm:$0xf] %vm859, %v851
      %861 = vst.msk [vmem:[%s192 + $0x4] sm:$0xf] %vm859, %v852
      %862 = vst.msk [vmem:[%s192 + $0x8] sm:$0xf] %vm859, %v853
      %863 = vst.msk [vmem:[%s192 + $0xc] sm:$0xf] %vm859, %v854
      %864 = vst.msk [vmem:[%s192 + $0x10] sm:$0xf] %vm859, %v855
      %865 = vst.msk [vmem:[%s192 + $0x14] sm:$0xf] %vm859, %v856
      %866 = vst.msk [vmem:[%s192 + $0x18] sm:$0xf] %vm859, %v857
      %867 = vst.msk [vmem:[%s192 + $0x1c] sm:$0xf] %vm859, %v858
      %s868 = smul.u32 8, %s19
      %p869 = scmp.lt.s32.totalorder %s18, 1
      %s870 = scalar_select %p869, %s18, 1
      %p871 = scmp.lt.s32.totalorder %s868, 7
      %s872 = scalar_select %p871, %s868, 7
      %s873 = smul.addr %s870, 8
      %s874 = sadd.s32 %s872, %s873
      %s875 = smul.addr %s874, 4
      %s876 = scalar_lea.vmem %s3, %s875
      // Predicated region
      $region33: #{deblur_down_forward.2} parent=31 // pred_check
        %p877 = pneg %p114
      $region34: #{deblur_down_forward.2} parent=31 // pred_check_branch
        %879 = sbr.rel (%p877) target = $region36
      $region35: #{deblur_down_forward.2} parent=31 // pred_region
        %s880 = smul.u32 8, %s19
      $region36: #{deblur_down_forward.2} parent=31 // pred_fallthru
        _
    $region32: #{deblur_down_forward.2} parent=5 // pred_fallthru
      _
    %p881 = scmp.le.s32.totalorder 2, %s9
    // Predicated region
    $region37: #{deblur_down_forward.2} parent=5 // pred_check
      %p882 = pneg %p881
    $region38: #{deblur_down_forward.2} parent=5 // pred_check_branch
      %884 = sbr.rel (%p882) target = $region40
    $region39: #{deblur_down_forward.2} parent=5 // pred_region
      %s885 = ssub.s32 %s9, 2
      // Predicated region
      $region41: #{deblur_down_forward.2} parent=39 // pred_check
        %p886 = pneg %p120
      $region42: #{deblur_down_forward.2} parent=39 // pred_check_branch
        %888 = sbr.rel (%p886) target = $region44
      $region43: #{deblur_down_forward.2} parent=39 // pred_region
        %s889 = smul.u32 8, %s21
        %p890 = scmp.lt.s32.totalorder %s20, 1
        %s891 = scalar_select %p890, %s20, 1
        %p892 = scmp.lt.s32.totalorder %s889, 7
        %s893 = scalar_select %p892, %s889, 7
        %s894 = smul.addr %s891, 8
        %s895 = sadd.s32 %s893, %s894
        %s896 = smul.addr %s895, 4
        %s897 = scalar_lea.vmem %s3, %s896
      $region44: #{deblur_down_forward.2} parent=39 // pred_fallthru
        _
    $region40: #{deblur_down_forward.2} parent=5 // pred_fallthru
      _
  $region6: #{deblur_down_forward.2} parent=0 // loop_footer
    %s13 = sadd.s32 1, %s9
  $region7: #{deblur_down_forward.2} parent=0 // loop_footer_branch
    %8 = sbr.rel target = $region3
  $region8: #{deblur_down_forward.2} parent=0 // loop_exit
    _

// kernel: deblur_down_forward.3
$region0: #{deblur_down_forward.3}
  #allocation0 [shape = 'u32[]', space=smem, size = 0x4, offset = 0x4, fixed_abs, tag = 'smem constant byte address 0x4 - core index']
  #allocation1 [shape = 'u32[72,128]{1,0:T(1,128)}', space=vmem, size = 0x9000, scoped, tag = 'internal scratch']
  #allocation2 [shape = 'bf16[12,10,8]{2,1,0:T(8,128)(2,1)}', space=vmem, size = 0xc000, scoped, tag = 'scratch operand']
  #allocation3 [shape = 'bf16[10,10,8]{2,1,0:T(8,128)(2,1)}', space=vmem, size = 0xa000, scoped, tag = 'scratch operand']
  #allocation4 [shape = 'f32[80,8]{1,0:T(8,128)}', space=vmem, size = 0xa000, scoped, tag = 'scratch operand']
  #allocation5 [shape = 'f32[64,8]{1,0:T(8,128)}', space=vmem, size = 0x8000, scoped, tag = 'scratch operand']
  %s0 = inlined_call_operand.vmem [shape: bf16[2,8,8,8], index: 0, kind: input, shape index: {}]
  %s1 = inlined_call_operand.vmem [shape: bf16[9,8,8], index: 1, kind: input, shape index: {}]
  %s2 = inlined_call_operand.vmem [shape: f32[1,8], index: 2, kind: input, shape index: {}]
  %s3 = inlined_call_operand.vmem [shape: bf16[9,8,8], index: 3, kind: input, shape index: {}]
  %s4 = inlined_call_operand.vmem [shape: f32[1,8], index: 4, kind: input, shape index: {}]
  %s5 = inlined_call_operand.vmem [shape: f32[2,8,8,8], index: 5, kind: output, shape index: {}]
  %s6 = sld [smem:[#allocation0]]
  $region61: #{deblur_down_forward.3} parent=0
    _
  %s8 = ssub.s32 1, %s6
  %s9 = scalar_select 0, %s8, %s6
  loop: start=0, step=1, limit=4
  $region2: #{deblur_down_forward.3} parent=0 // loop_pre_header
    _
  $region3: #{deblur_down_forward.3} parent=0 // loop_header
    %s11 = sphi 0, %s15
    %p12 = scmp.ge.s32.totalorder %s11, 4
    %s18 = sphi 0, %s30
    %s19 = sphi 0, %s26
    %s20 = sphi 0, %s18
    %s21 = sphi 0, %s19
    %s22 = sphi 0, %s20
    %s23 = sphi 0, %s21
    %s33 = sphi 0, %s35
    %s36 = sphi 0, %s33
    %s37 = sphi 0, %s36
    %s53 = sphi 0, %s37
    %s57 = sphi 0, %s57
    %s59 = sphi 0, %s57
    %s60 = sphi 0, %s59
    %s74 = sphi 0, %s60
    %s78 = sphi 0, %s78
    %s80 = sphi 0, %s78
    %s81 = sphi 0, %s80
    %s95 = sphi 0, %s81
    %s99 = sphi 0, %s99
    %s101 = sphi 0, %s99
    %s102 = sphi 0, %s101
    %s116 = sphi 0, %s102
    %s120 = sphi 0, %s120
    %s122 = sphi 0, %s120
    %s123 = sphi 0, %s122
    %s137 = sphi 0, %s123
    %s145 = sphi 0, %s147
    %s148 = sphi 0, %s145
    %s149 = sphi 0, %s148
    %s165 = sphi 0, %s149
  $region4: #{deblur_down_forward.3} parent=0 // loop_header_branch
    %14 = sbr.rel (%p12) target = $region8
  $region5: #{deblur_down_forward.3} parent=0 // loop_body
    %s16 = ssub.s32 %s11, 1
    %s17 = ssub.s32 %s11, 2
    %s24 = sadd.s32 1, %s19
    %p25 = scmp.ge.s32.totalorder %s24, 1
    %s26 = scalar_select %p25, 0, %s24
    %s27 = sadd.s32 1, %s18
    %s28 = scalar_select %p25, %s27, %s18
    %p29 = scmp.ge.s32.totalorder %s28, 2
    %s30 = scalar_select %p29, 0, %s28
    %s31 = ssub.s32 %s18, %s30
    %p32 = scmp.eq.s32.totalorder %s31, 0
    %s34 = sadd.s32 %s33, 1
    %s35 = scalar_select %p32, %s33, %s34
    %p38 = pneg %p32
    %p39 = scmp.eq.s32.totalorder %s11, 1
    %p40 = por %p38, %p39
    %p41 = scmp.ne.s32.totalorder %s33, %s36
    %p42 = scmp.eq.s32.totalorder %s11, 0
    %p43 = por %p41, %p42
    %p44 = scmp.ne.s32.totalorder %s33, %s36
    %p45 = scmp.eq.s32.totalorder %s16, 1
    %p46 = por %p44, %p45
    %p47 = scmp.ne.s32.totalorder %s36, %s37
    %p48 = scmp.eq.s32.totalorder %s16, 0
    %p49 = por %p47, %p48
    %p50 = scmp.ne.s32.totalorder %s36, %s37
    %p51 = scmp.eq.s32.totalorder %s17, 1
    %p52 = por %p50, %p51
    %p54 = scmp.ne.s32.totalorder %s37, %s53
    %p55 = scmp.eq.s32.totalorder %s17, 0
    %p56 = por %p54, %p55
    %s58 = sadd.s32 %s57, 1
    %p61 = scmp.eq.s32.totalorder %s11, 1
    %p62 = scmp.ne.s32.totalorder %s57, %s59
    %p63 = scmp.eq.s32.totalorder %s11, 0
    %p64 = por %p62, %p63
    %p65 = scmp.ne.s32.totalorder %s57, %s59
    %p66 = scmp.eq.s32.totalorder %s16, 1
    %p67 = por %p65, %p66
    %p68 = scmp.ne.s32.totalorder %s59, %s60
    %p69 = scmp.eq.s32.totalorder %s16, 0
    %p70 = por %p68, %p69
    %p71 = scmp.ne.s32.totalorder %s59, %s60
    %p72 = scmp.eq.s32.totalorder %s17, 1
    %p73 = por %p71, %p72
    %p75 = scmp.ne.s32.totalorder %s60, %s74
    %p76 = scmp.eq.s32.totalorder %s17, 0
    %p77 = por %p75, %p76
    %s79 = sadd.s32 %s78, 1
    %p82 = scmp.eq.s32.totalorder %s11, 1
    %p83 = scmp.ne.s32.totalorder %s78, %s80
    %p84 = scmp.eq.s32.totalorder %s11, 0
    %p85 = por %p83, %p84
    %p86 = scmp.ne.s32.totalorder %s78, %s80
    %p87 = scmp.eq.s32.totalorder %s16, 1
    %p88 = por %p86, %p87
    %p89 = scmp.ne.s32.totalorder %s80, %s81
    %p90 = scmp.eq.s32.totalorder %s16, 0
    %p91 = por %p89, %p90
    %p92 = scmp.ne.s32.totalorder %s80, %s81
    %p93 = scmp.eq.s32.totalorder %s17, 1
    %p94 = por %p92, %p93
    %p96 = scmp.ne.s32.totalorder %s81, %s95
    %p97 = scmp.eq.s32.totalorder %s17, 0
    %p98 = por %p96, %p97
    %s100 = sadd.s32 %s99, 1
    %p103 = scmp.eq.s32.totalorder %s11, 1
    %p104 = scmp.ne.s32.totalorder %s99, %s101
    %p105 = scmp.eq.s32.totalorder %s11, 0
    %p106 = por %p104, %p105
    %p107 = scmp.ne.s32.totalorder %s99, %s101
    %p108 = scmp.eq.s32.totalorder %s16, 1
    %p109 = por %p107, %p108
    %p110 = scmp.ne.s32.totalorder %s101, %s102
    %p111 = scmp.eq.s32.totalorder %s16, 0
    %p112 = por %p110, %p111
    %p113 = scmp.ne.s32.totalorder %s101, %s102
    %p114 = scmp.eq.s32.totalorder %s17, 1
    %p115 = por %p113, %p114
    %p117 = scmp.ne.s32.totalorder %s102, %s116
    %p118 = scmp.eq.s32.totalorder %s17, 0
    %p119 = por %p117, %p118
    %s121 = sadd.s32 %s120, 1
    %p124 = scmp.eq.s32.totalorder %s11, 1
    %p125 = scmp.ne.s32.totalorder %s120, %s122
    %p126 = scmp.eq.s32.totalorder %s11, 0
    %p127 = por %p125, %p126
    %p128 = scmp.ne.s32.totalorder %s120, %s122
    %p129 = scmp.eq.s32.totalorder %s16, 1
    %p130 = por %p128, %p129
    %p131 = scmp.ne.s32.totalorder %s122, %s123
    %p132 = scmp.eq.s32.totalorder %s16, 0
    %p133 = por %p131, %p132
    %p134 = scmp.ne.s32.totalorder %s122, %s123
    %p135 = scmp.eq.s32.totalorder %s17, 1
    %p136 = por %p134, %p135
    %p138 = scmp.ne.s32.totalorder %s123, %s137
    %p139 = scmp.eq.s32.totalorder %s17, 0
    %p140 = por %p138, %p139
    %s141 = ssub.s32 %s18, %s30
    %s142 = ssub.s32 %s19, %s26
    %s143 = sor.u32 %s141, %s142
    %p144 = scmp.eq.s32.totalorder %s143, 0
    %s146 = sadd.s32 %s145, 1
    %s147 = scalar_select %p144, %s145, %s146
    %p150 = pneg %p144
    %p151 = scmp.eq.s32.totalorder %s11, 1
    %p152 = por %p150, %p151
    %p153 = scmp.ne.s32.totalorder %s145, %s148
    %p154 = scmp.eq.s32.totalorder %s11, 0
    %p155 = por %p153, %p154
    %p156 = scmp.ne.s32.totalorder %s145, %s148
    %p157 = scmp.eq.s32.totalorder %s16, 1
    %p158 = por %p156, %p157
    %p159 = scmp.ne.s32.totalorder %s148, %s149
    %p160 = scmp.eq.s32.totalorder %s16, 0
    %p161 = por %p159, %p160
    %p162 = scmp.ne.s32.totalorder %s148, %s149
    %p163 = scmp.eq.s32.totalorder %s17, 1
    %p164 = por %p162, %p163
    %p166 = scmp.ne.s32.totalorder %s149, %s165
    %p167 = scmp.eq.s32.totalorder %s17, 0
    %p168 = por %p166, %p167
    %p169 = scmp.le.s32.totalorder 1, %s11
    %p170 = scmp.lt.s32.totalorder %s11, 3
    %p171 = pnand %p169, %p170
    %p172 = pneg %p171
    // Predicated region
    $region9: #{deblur_down_forward.3} parent=5 // pred_check
      _
    $region10: #{deblur_down_forward.3} parent=5 // pred_check_branch
      %174 = sbr.rel (%p171) target = $region12
    $region11: #{deblur_down_forward.3} parent=5 // pred_region
      %s175 = ssub.s32 %s11, 1
      // Predicated region
      $region13: #{deblur_down_forward.3} parent=11 // pred_check
        %p176 = pneg %p70
      $region14: #{deblur_down_forward.3} parent=11 // pred_check_branch
        %178 = sbr.rel (%p176) target = $region16
      $region15: #{deblur_down_forward.3} parent=11 // pred_region
        _
      $region16: #{deblur_down_forward.3} parent=11 // pred_fallthru
        _
      // Predicated region
      $region17: #{deblur_down_forward.3} parent=11 // pred_check
        %p179 = pneg %p91
      $region18: #{deblur_down_forward.3} parent=11 // pred_check_branch
        %181 = sbr.rel (%p179) target = $region20
      $region19: #{deblur_down_forward.3} parent=11 // pred_region
        _
      $region20: #{deblur_down_forward.3} parent=11 // pred_fallthru
        _
      // Predicated region
      $region21: #{deblur_down_forward.3} parent=11 // pred_check
        %p182 = pneg %p112
      $region22: #{deblur_down_forward.3} parent=11 // pred_check_branch
        %184 = sbr.rel (%p182) target = $region24
      $region23: #{deblur_down_forward.3} parent=11 // pred_region
        _
      $region24: #{deblur_down_forward.3} parent=11 // pred_fallthru
        _
      // Predicated region
      $region25: #{deblur_down_forward.3} parent=11 // pred_check
        %p185 = pneg %p133
      $region26: #{deblur_down_forward.3} parent=11 // pred_check_branch
        %187 = sbr.rel (%p185) target = $region28
      $region27: #{deblur_down_forward.3} parent=11 // pred_region
        _
      $region28: #{deblur_down_forward.3} parent=11 // pred_fallthru
        _
    $region12: #{deblur_down_forward.3} parent=5 // pred_fallthru
      _
    %p188 = scmp.lt.s32.totalorder %s11, 2
    // Predicated region
    $region29: #{deblur_down_forward.3} parent=5 // pred_check
      %p189 = pneg %p188
    $region30: #{deblur_down_forward.3} parent=5 // pred_check_branch
      %191 = sbr.rel (%p189) target = $region32
    $region31: #{deblur_down_forward.3} parent=5 // pred_region
      // Predicated region
      $region33: #{deblur_down_forward.3} parent=31 // pred_check
        %p192 = pneg %p43
      $region34: #{deblur_down_forward.3} parent=31 // pred_check_branch
        %194 = sbr.rel (%p192) target = $region36
      $region35: #{deblur_down_forward.3} parent=31 // pred_region
        %p195 = scmp.lt.s32.totalorder %s18, 1
        %s196 = scalar_select %p195, %s18, 1
        %s197 = smul.addr %s196, 8
        %s198 = smul.addr %s197, 4
        %s199 = scalar_lea.vmem %s0, %s198
      $region36: #{deblur_down_forward.3} parent=31 // pred_fallthru
        _
    $region32: #{deblur_down_forward.3} parent=5 // pred_fallthru
      _
    %p200 = scmp.le.s32.totalorder 1, %s11
    %p201 = scmp.lt.s32.totalorder %s11, 3
    %p202 = pnand %p200, %p201
    %p203 = pneg %p202
    // Predicated region
    $region37: #{deblur_down_forward.3} parent=5 // pred_check
      _
    $region38: #{deblur_down_forward.3} parent=5 // pred_check_branch
      %205 = sbr.rel (%p202) target = $region40
    $region39: #{deblur_down_forward.3} parent=5 // pred_region
      %s206 = ssub.s32 %s11, 1
      %p207 = scmp.lt.s32.totalorder %s20, 1
      %s208 = scalar_select %p207, %s20, 1
      %s209 = smul.addr %s208, 8
      %s210 = smul.addr %s209, 4
      %s211 = scalar_lea.vmem %s0, %s210
      %p212 = pneg %p49
      %p213 = pneg %p46
      %p214 = pneg %p70
      %p215 = pneg %p67
      %p216 = pneg %p91
      %p217 = pneg %p88
      %p218 = pneg %p112
      %p219 = pneg %p109
      %p220 = pneg %p133
      %p221 = pneg %p130
      %p222 = pneg %p161
      %p223 = pneg %p158
      %s224 = smul.u32 8, %s21
      %p225 = scmp.lt.s32.totalorder %s20, 1
      %s226 = scalar_select %p225, %s20, 1
      %p227 = scmp.lt.s32.totalorder %s224, 7
      %s228 = scalar_select %p227, %s224, 7
      %s229 = smul.addr %s226, 8
      %s230 = sadd.s32 %s228, %s229
      %s231 = smul.addr %s230, 8
      %s232 = scalar_lea.vmem %s5, %s231
      %p233 = scmp.lt.s32.totalorder %s20, 1
      %s234 = scalar_select %p233, %s20, 1
      %s235 = smul.addr %s234, 8
      %s236 = smul.addr %s235, 4
      %s237 = scalar_lea.vmem %s0, %s236
      %s238 = smul.u32 8, %s21
      %p239 = scmp.lt.s32.totalorder %s20, 1
      %s240 = scalar_select %p239, %s20, 1
      %p241 = scmp.lt.s32.totalorder %s238, 7
      %s242 = scalar_select %p241, %s238, 7
      %s243 = smul.addr %s240, 8
      %s244 = sadd.s32 %s242, %s243
      %s245 = smul.addr %s244, 8
      %s246 = scalar_lea.vmem %s5, %s245
      %s247 = smul.u32 8, %s21
      %s249 = smul.u32 %s21, 8
      %p250 = scmp.eq.s32.totalorder %s21, 0
      // Predicated region
      $region41: #{deblur_down_forward.3} parent=39 // pred_check
        %p251 = pneg %p250
      $region42: #{deblur_down_forward.3} parent=39 // pred_check_branch
        %253 = sbr.rel (%p251) target = $region44
      $region43: #{deblur_down_forward.3} parent=39 // pred_region
        %vm254 = vcmask 60416
        %255 = vst.msk [vmem:[#allocation2] sm:$0xf] %vm254, 0
        %vm256 = vcmask 57344
        %257 = vst.msk [vmem:[#allocation2 + $0x4] sm:$0x1] %vm256, 0
        %258 = vst.msk [vmem:[#allocation2 + $0x8] sm:$0xf] %vm254, 0
        %259 = vst.msk [vmem:[#allocation2 + $0xc] sm:$0x1] %vm256, 0
        %260 = vst.msk [vmem:[#allocation2 + $0x10] sm:$0xf] %vm254, 0
        %261 = vst.msk [vmem:[#allocation2 + $0x14] sm:$0x1] %vm256, 0
        %262 = vst.msk [vmem:[#allocation2 + $0x18] sm:$0xf] %vm254, 0
        %263 = vst.msk [vmem:[#allocation2 + $0x1c] sm:$0x1] %vm256, 0
        %264 = vst.msk [vmem:[#allocation2 + $0x20] sm:$0xf] %vm254, 0
        %265 = vst.msk [vmem:[#allocation2 + $0x24] sm:$0x1] %vm256, 0
        %266 = vst.msk [vmem:[#allocation2 + $0x28] sm:$0xf] %vm254, 0
        %267 = vst.msk [vmem:[#allocation2 + $0x2c] sm:$0x1] %vm256, 0
        %268 = vst.msk [vmem:[#allocation2 + $0x30] sm:$0xf] %vm254, 0
        %269 = vst.msk [vmem:[#allocation2 + $0x34] sm:$0x1] %vm256, 0
        %270 = vst.msk [vmem:[#allocation2 + $0x38] sm:$0xf] %vm254, 0
        %271 = vst.msk [vmem:[#allocation2 + $0x3c] sm:$0x1] %vm256, 0
        %272 = vst.msk [vmem:[#allocation2 + $0x40] sm:$0xf] %vm254, 0
        %273 = vst.msk [vmem:[#allocation2 + $0x44] sm:$0x1] %vm256, 0
        %274 = vst.msk [vmem:[#allocation2 + $0x48] sm:$0xf] %vm254, 0
        %275 = vst.msk [vmem:[#allocation2 + $0x4c] sm:$0x1] %vm256, 0
        %276 = vst.msk [vmem:[#allocation2 + $0x50] sm:$0xf] %vm254, 0
        %277 = vst.msk [vmem:[#allocation2 + $0x54] sm:$0x1] %vm256, 0
        %278 = vst.msk [vmem:[#allocation2 + $0x58] sm:$0xf] %vm254, 0
        %279 = vst.msk [vmem:[#allocation2 + $0x5c] sm:$0x1] %vm256, 0
        %v280 = vld [vmem:[%s237] sm:$0xf]
        %v281 = vld [vmem:[%s237 + $0x4] sm:$0xf]
        %v282 = vld [vmem:[%s237 + $0x8] sm:$0xf]
        %v283 = vld [vmem:[%s237 + $0xc] sm:$0xf]
        %v284 = vld [vmem:[%s237 + $0x10] sm:$0xf]
        %v285 = vld [vmem:[%s237 + $0x14] sm:$0xf]
        %v286 = vld [vmem:[%s237 + $0x18] sm:$0xf]
        %v287 = vld [vmem:[%s237 + $0x1c] sm:$0xf]
        %v289 = vshrl.u32 %v280, 16
        %v291 = vrot.slane %v289, 7
        %v292 = vshll.u32 %v280, 16
        %v294 = vor.u32 %v291, %v292
        %v295 = vrot.slane %v291, 4
        %v297 = vshrl.u32 %v281, 16
        %v299 = vrot.slane %v297, 7
        %v300 = vshll.u32 %v281, 16
        %v302 = vor.u32 %v299, %v300
        %v303 = vrot.slane %v299, 4
        %v305 = vshrl.u32 %v282, 16
        %v307 = vrot.slane %v305, 7
        %v308 = vshll.u32 %v282, 16
        %v310 = vor.u32 %v307, %v308
        %v311 = vrot.slane %v307, 4
        %v313 = vshrl.u32 %v283, 16
        %v315 = vrot.slane %v313, 7
        %v316 = vshll.u32 %v283, 16
        %v318 = vor.u32 %v315, %v316
        %v319 = vrot.slane %v315, 4
        %v321 = vshrl.u32 %v284, 16
        %v323 = vrot.slane %v321, 7
        %v324 = vshll.u32 %v284, 16
        %v326 = vor.u32 %v323, %v324
        %v327 = vrot.slane %v323, 4
        %v329 = vshrl.u32 %v285, 16
        %v331 = vrot.slane %v329, 7
        %v332 = vshll.u32 %v285, 16
        %v334 = vor.u32 %v331, %v332
        %v335 = vrot.slane %v331, 4
        %v337 = vshrl.u32 %v286, 16
        %v339 = vrot.slane %v337, 7
        %v340 = vshll.u32 %v286, 16
        %v342 = vor.u32 %v339, %v340
        %v343 = vrot.slane %v339, 4
        %v345 = vshrl.u32 %v287, 16
        %v347 = vrot.slane %v345, 7
        %v348 = vshll.u32 %v287, 16
        %v350 = vor.u32 %v347, %v348
        %v351 = vrot.slane %v347, 4
        %s368 = scalar_lea.vmem [#allocation2], 16
        %vm369 = vcmask 60416
        %vm370 = vsmask.f32 7938
        %vm371 = vmand %vm369, %vm370
        %v372 = vld [vmem:[%s368] sm:$0xf]
        %v373 = vsel %vm371, %v294, %v372
        %374 = vst [vmem:[%s368] sm:$0xf] %v373
        %vm375 = vcmask 57344
        %vm376 = vsmask.f32 256
        %vm377 = vmand %vm375, %vm376
        %v378 = vld [vmem:[%s368 + $0x4] sm:$0x1]
        %v379 = vsel %vm377, %v295, %v378
        %380 = vst [vmem:[%s368 + $0x4] sm:$0x1] %v379
        %v381 = vld [vmem:[%s368 + $0x8] sm:$0xf]
        %v382 = vsel %vm371, %v302, %v381
        %383 = vst [vmem:[%s368 + $0x8] sm:$0xf] %v382
        %v384 = vld [vmem:[%s368 + $0xc] sm:$0x1]
        %v385 = vsel %vm377, %v303, %v384
        %386 = vst [vmem:[%s368 + $0xc] sm:$0x1] %v385
        %v387 = vld [vmem:[%s368 + $0x10] sm:$0xf]
        %v388 = vsel %vm371, %v310, %v387
        %389 = vst [vmem:[%s368 + $0x10] sm:$0xf] %v388
        %v390 = vld [vmem:[%s368 + $0x14] sm:$0x1]
        %v391 = vsel %vm377, %v311, %v390
        %392 = vst [vmem:[%s368 + $0x14] sm:$0x1] %v391
        %v393 = vld [vmem:[%s368 + $0x18] sm:$0xf]
        %v394 = vsel %vm371, %v318, %v393
        %395 = vst [vmem:[%s368 + $0x18] sm:$0xf] %v394
        %v396 = vld [vmem:[%s368 + $0x1c] sm:$0x1]
        %v397 = vsel %vm377, %v319, %v396
        %398 = vst [vmem:[%s368 + $0x1c] sm:$0x1] %v397
        %v399 = vld [vmem:[%s368 + $0x20] sm:$0xf]
        %v400 = vsel %vm371, %v326, %v399
        %401 = vst [vmem:[%s368 + $0x20] sm:$0xf] %v400
        %v402 = vld [vmem:[%s368 + $0x24] sm:$0x1]
        %v403 = vsel %vm377, %v327, %v402
        %404 = vst [vmem:[%s368 + $0x24] sm:$0x1] %v403
        %v405 = vld [vmem:[%s368 + $0x28] sm:$0xf]
        %v406 = vsel %vm371, %v334, %v405
        %407 = vst [vmem:[%s368 + $0x28] sm:$0xf] %v406
        %v408 = vld [vmem:[%s368 + $0x2c] sm:$0x1]
        %v409 = vsel %vm377, %v335, %v408
        %410 = vst [vmem:[%s368 + $0x2c] sm:$0x1] %v409
        %v411 = vld [vmem:[%s368 + $0x30] sm:$0xf]
        %v412 = vsel %vm371, %v342, %v411
        %413 = vst [vmem:[%s368 + $0x30] sm:$0xf] %v412
        %v414 = vld [vmem:[%s368 + $0x34] sm:$0x1]
        %v415 = vsel %vm377, %v343, %v414
        %416 = vst [vmem:[%s368 + $0x34] sm:$0x1] %v415
        %v417 = vld [vmem:[%s368 + $0x38] sm:$0xf]
        %v418 = vsel %vm371, %v350, %v417
        %419 = vst [vmem:[%s368 + $0x38] sm:$0xf] %v418
        %v420 = vld [vmem:[%s368 + $0x3c] sm:$0x1]
        %v421 = vsel %vm377, %v351, %v420
        %422 = vst [vmem:[%s368 + $0x3c] sm:$0x1] %v421
      $region44: #{deblur_down_forward.3} parent=39 // pred_fallthru
        _
      %s423 = smul.u32 %s249, 2
      %s424 = smul.addr %s423, 4
      %s425 = scalar_lea.vmem [#allocation2], %s424
      %v426 = vld [vmem:[%s425] sm:$0xf]
      %v427 = vld [vmem:[%s425 + $0x8] sm:$0xf]
      %v428 = vld [vmem:[%s425 + $0x10] sm:$0xf]
      %v429 = vld [vmem:[%s425 + $0x18] sm:$0xf]
      %v430 = vld [vmem:[%s425 + $0x20] sm:$0xf]
      %v431 = vld [vmem:[%s425 + $0x28] sm:$0xf]
      %v432 = vld [vmem:[%s425 + $0x30] sm:$0xf]
      %v433 = vld [vmem:[%s425 + $0x38] sm:$0xf]
      %v434 = vld [vmem:[%s425 + $0x40] sm:$0xf]
      %v435 = vld [vmem:[%s425 + $0x48] sm:$0xf]
      %v436 = vld [vmem:[%s1] sm:$0xf]
      %v447 = vunpack.c.l.b16 %v426
      %v448 = vunpack.c.l.b16 %v427
      %v449 = vunpack.c.l.b16 %v428
      %v450 = vunpack.c.l.b16 %v429
      %v451 = vunpack.c.l.b16 %v430
      %v452 = vunpack.c.l.b16 %v431
      %v453 = vunpack.c.l.b16 %v432
      %v454 = vunpack.c.l.b16 %v433
      %v455 = vunpack.c.l.b16 %v434
      %v456 = vunpack.c.l.b16 %v435
      %v457 = vpack.c.b16 %v448, %v447
      %v458 = vpack.c.b16 %v450, %v449
      %v459 = vpack.c.b16 %v452, %v451
      %v460 = vpack.c.b16 %v454, %v453
      %v461 = vpack.c.b16 %v456, %v455
      %vm462 = vcmask 64512
      %v464 = vsel %vm462, %v457, 0
      %v467 = vsel %vm462, %v458, 0
      %v470 = vsel %vm462, %v459, 0
      %v473 = vsel %vm462, %v460, 0
      %v476 = vsel %vm462, %v461, 0
      %vm478 = vcmask 1043456
      %v480 = vsel %vm478, %v436, 0
      %482 = vmatpush.bf16.msra.mxu0 0
      %483 = vmatpush.bf16.msra.mxu0 0
      %484 = vmatpush.bf16.msra.mxu0 0
      %485 = vmatpush.bf16.msra.mxu0 0
      %486 = vmatpush.bf16.msra.mxu0 0
      %487 = vmatpush.bf16.msra.mxu0 0
      %488 = vmatpush.bf16.msra.mxu0 0
      %489 = vmatpush.bf16.msra.mxu0 %v480
      %490 = vmatmul.bf16.gmra.mxu0 %v464
      %v491 = vpop.f32.mrf.mxu0
      %v492 = vadd.f32 0.0, %v491
      %v493 = vpop.f32.mrf.mxu0
      %v494 = vadd.f32 0.0, %v493
      %495 = vmatmul.bf16.gmra.mxu0 %v467
      %v496 = vpop.f32.mrf.mxu0
      %v497 = vadd.f32 0.0, %v496
      %v498 = vpop.f32.mrf.mxu0
      %v499 = vadd.f32 0.0, %v498
      %500 = vmatmul.bf16.gmra.mxu0 %v470
      %v501 = vpop.f32.mrf.mxu0
      %v502 = vadd.f32 0.0, %v501
      %v503 = vpop.f32.mrf.mxu0
      %v504 = vadd.f32 0.0, %v503
      %505 = vmatmul.bf16.gmra.mxu0 %v473
      %v506 = vpop.f32.mrf.mxu0
      %v507 = vadd.f32 0.0, %v506
      %v508 = vpop.f32.mrf.mxu0
      %v509 = vadd.f32 0.0, %v508
      %510 = vmatmul.bf16.gmra.mxu0 %v476
      %v511 = vpop.f32.mrf.mxu0
      %v512 = vadd.f32 0.0, %v511
      %v513 = vpop.f32.mrf.mxu0
      %v514 = vadd.f32 0.0, %v513
      %515 = vdwg.mxu0
      %516 = vst.msk [vmem:[#allocation4] sm:$0xff] %vm462, %v492
      %517 = vst.msk [vmem:[#allocation4 + $0x8] sm:$0xff] %vm462, %v494
      %518 = vst.msk [vmem:[#allocation4 + $0x10] sm:$0xff] %vm462, %v497
      %519 = vst.msk [vmem:[#allocation4 + $0x18] sm:$0xff] %vm462, %v499
      %520 = vst.msk [vmem:[#allocation4 + $0x20] sm:$0xff] %vm462, %v502
      %521 = vst.msk [vmem:[#allocation4 + $0x28] sm:$0xff] %vm462, %v504
      %522 = vst.msk [vmem:[#allocation4 + $0x30] sm:$0xff] %vm462, %v507
      %523 = vst.msk [vmem:[#allocation4 + $0x38] sm:$0xff] %vm462, %v509
      %524 = vst.msk [vmem:[#allocation4 + $0x40] sm:$0xff] %vm462, %v512
      %525 = vst.msk [vmem:[#allocation4 + $0x48] sm:$0xff] %vm462, %v514
      %v526 = vld [vmem:[%s425] sm:$0xf]
      %v527 = vld [vmem:[%s425 + $0x4] sm:$0x1]
      %v528 = vld [vmem:[%s425 + $0x8] sm:$0xf]
      %v529 = vld [vmem:[%s425 + $0xc] sm:$0x1]
      %v530 = vld [vmem:[%s425 + $0x10] sm:$0xf]
      %v531 = vld [vmem:[%s425 + $0x14] sm:$0x1]
      %v532 = vld [vmem:[%s425 + $0x18] sm:$0xf]
      %v533 = vld [vmem:[%s425 + $0x1c] sm:$0x1]
      %v534 = vld [vmem:[%s425 + $0x20] sm:$0xf]
      %v535 = vld [vmem:[%s425 + $0x24] sm:$0x1]
      %v536 = vld [vmem:[%s425 + $0x28] sm:$0xf]
      %v537 = vld [vmem:[%s425 + $0x2c] sm:$0x1]
      %v538 = vld [vmem:[%s425 + $0x30] sm:$0xf]
      %v539 = vld [vmem:[%s425 + $0x34] sm:$0x1]
      %v540 = vld [vmem:[%s425 + $0x38] sm:$0xf]
      %v541 = vld [vmem:[%s425 + $0x3c] sm:$0x1]
      %v542 = vld [vmem:[%s425 + $0x40] sm:$0xf]
      %v543 = vld [vmem:[%s425 + $0x44] sm:$0x1]
      %v544 = vld [vmem:[%s425 + $0x48] sm:$0xf]
      %v545 = vld [vmem:[%s425 + $0x4c] sm:$0x1]
      %vm546 = vsmask.f32 3328
      %vm547 = vsmask.f32 7440
      %vm548 = vmor %vm546, %vm547
      %v550 = vshrl.u32 %v526, 16
      %v552 = vrot.slane %v550, 4
      %v553 = vshll.u32 %v526, 16
      %v555 = vrot.slane %v553, 5
      %v556 = vor.u32 %v552, %v555
      %v557 = vrot.slane %v556, 4
      %v559 = vshll.u32 %v527, 16
      %v561 = vrot.slane %v559, 5
      %v562 = vsel %vm548, %v557, %v561
      %v564 = vshrl.u32 %v528, 16
      %v566 = vrot.slane %v564, 4
      %v567 = vshll.u32 %v528, 16
      %v569 = vrot.slane %v567, 5
      %v570 = vor.u32 %v566, %v569
      %v571 = vrot.slane %v570, 4
      %v573 = vshll.u32 %v529, 16
      %v575 = vrot.slane %v573, 5
      %v576 = vsel %vm548, %v571, %v575
      %v578 = vshrl.u32 %v530, 16
      %v580 = vrot.slane %v578, 4
      %v581 = vshll.u32 %v530, 16
      %v583 = vrot.slane %v581, 5
      %v584 = vor.u32 %v580, %v583
      %v585 = vrot.slane %v584, 4
      %v587 = vshll.u32 %v531, 16
      %v589 = vrot.slane %v587, 5
      %v590 = vsel %vm548, %v585, %v589
      %v592 = vshrl.u32 %v532, 16
      %v594 = vrot.slane %v592, 4
      %v595 = vshll.u32 %v532, 16
      %v597 = vrot.slane %v595, 5
      %v598 = vor.u32 %v594, %v597
      %v599 = vrot.slane %v598, 4
      %v601 = vshll.u32 %v533, 16
      %v603 = vrot.slane %v601, 5
      %v604 = vsel %vm548, %v599, %v603
      %v606 = vshrl.u32 %v534, 16
      %v608 = vrot.slane %v606, 4
      %v609 = vshll.u32 %v534, 16
      %v611 = vrot.slane %v609, 5
      %v612 = vor.u32 %v608, %v611
      %v613 = vrot.slane %v612, 4
      %v615 = vshll.u32 %v535, 16
      %v617 = vrot.slane %v615, 5
      %v618 = vsel %vm548, %v613, %v617
      %v620 = vshrl.u32 %v536, 16
      %v622 = vrot.slane %v620, 4
      %v623 = vshll.u32 %v536, 16
      %v625 = vrot.slane %v623, 5
      %v626 = vor.u32 %v622, %v625
      %v627 = vrot.slane %v626, 4
      %v629 = vshll.u32 %v537, 16
      %v631 = vrot.slane %v629, 5
      %v632 = vsel %vm548, %v627, %v631
      %v634 = vshrl.u32 %v538, 16
      %v636 = vrot.slane %v634, 4
      %v637 = vshll.u32 %v538, 16
      %v639 = vrot.slane %v637, 5
      %v640 = vor.u32 %v636, %v639
      %v641 = vrot.slane %v640, 4
      %v643 = vshll.u32 %v539, 16
      %v645 = vrot.slane %v643, 5
      %v646 = vsel %vm548, %v641, %v645
      %v648 = vshrl.u32 %v540, 16
      %v650 = vrot.slane %v648, 4
      %v651 = vshll.u32 %v540, 16
      %v653 = vrot.slane %v651, 5
      %v654 = vor.u32 %v650, %v653
      %v655 = vrot.slane %v654, 4
      %v657 = vshll.u32 %v541, 16
      %v659 = vrot.slane %v657, 5
      %v660 = vsel %vm548, %v655, %v659
      %v662 = vshrl.u32 %v542, 16
      %v664 = vrot.slane %v662, 4
      %v665 = vshll.u32 %v542, 16
      %v667 = vrot.slane %v665, 5
      %v668 = vor.u32 %v664, %v667
      %v669 = vrot.slane %v668, 4
      %v671 = vshll.u32 %v543, 16
      %v673 = vrot.slane %v671, 5
      %v674 = vsel %vm548, %v669, %v673
      %v676 = vshrl.u32 %v544, 16
      %v678 = vrot.slane %v676, 4
      %v679 = vshll.u32 %v544, 16
      %v681 = vrot.slane %v679, 5
      %v682 = vor.u32 %v678, %v681
      %v683 = vrot.slane %v682, 4
      %v685 = vshll.u32 %v545, 16
      %v687 = vrot.slane %v685, 5
      %v688 = vsel %vm548, %v683, %v687
      %s689 = scalar_lea.vmem %s1, 4
      %v690 = vld [vmem:[%s689] sm:$0xf]
      %v691 = vunpack.c.l.b16 %v562
      %v692 = vunpack.c.l.b16 %v576
      %v693 = vunpack.c.l.b16 %v590
      %v694 = vunpack.c.l.b16 %v604
      %v695 = vunpack.c.l.b16 %v618
      %v696 = vunpack.c.l.b16 %v632
      %v697 = vunpack.c.l.b16 %v646
      %v698 = vunpack.c.l.b16 %v660
      %v699 = vunpack.c.l.b16 %v674
      %v700 = vunpack.c.l.b16 %v688
      %v701 = vpack.c.b16 %v692, %v691
      %v702 = vpack.c.b16 %v694, %v693
      %v703 = vpack.c.b16 %v696, %v695
      %v704 = vpack.c.b16 %v698, %v697
      %v705 = vpack.c.b16 %v700, %v699
      %v707 = vsel %vm462, %v701, 0
      %v710 = vsel %vm462, %v702, 0
      %v713 = vsel %vm462, %v703, 0
      %v716 = vsel %vm462, %v704, 0
      %v719 = vsel %vm462, %v705, 0
      %v722 = vsel %vm478, %v690, 0
      %724 = vmatpush.bf16.msra.mxu0 0
      %725 = vmatpush.bf16.msra.mxu0 0
      %726 = vmatpush.bf16.msra.mxu0 0
      %727 = vmatpush.bf16.msra.mxu0 0
      %728 = vmatpush.bf16.msra.mxu0 0
      %729 = vmatpush.bf16.msra.mxu0 0
      %730 = vmatpush.bf16.msra.mxu0 0
      %731 = vmatpush.bf16.msra.mxu0 %v722
      %732 = vmatmul.bf16.gmra.mxu0 %v707
      %v733 = vpop.f32.mrf.mxu0
      %v734 = vadd.f32 0.0, %v733
      %v735 = vpop.f32.mrf.mxu0
      %v736 = vadd.f32 0.0, %v735
      %737 = vmatmul.bf16.gmra.mxu0 %v710
      %v738 = vpop.f32.mrf.mxu0
      %v739 = vadd.f32 0.0, %v738
      %v740 = vpop.f32.mrf.mxu0
      %v741 = vadd.f32 0.0, %v740
      %742 = vmatmul.bf16.gmra.mxu0 %v713
      %v743 = vpop.f32.mrf.mxu0
      %v744 = vadd.f32 0.0, %v743
      %v745 = vpop.f32.mrf.mxu0
      %v746 = vadd.f32 0.0, %v745
      %747 = vmatmul.bf16.gmra.mxu0 %v716
      %v748 = vpop.f32.mrf.mxu0
      %v749 = vadd.f32 0.0, %v748
      %v750 = vpop.f32.mrf.mxu0
      %v751 = vadd.f32 0.0, %v750
      %752 = vmatmul.bf16.gmra.mxu0 %v719
      %v753 = vpop.f32.mrf.mxu0
      %v754 = vadd.f32 0.0, %v753
      %v755 = vpop.f32.mrf.mxu0
      %v756 = vadd.f32 0.0, %v755
      %757 = vdwg.mxu0
      %v758 = vld [vmem:[#allocation4] sm:$0xff]
      %v759 = vld [vmem:[#allocation4 + $0x8] sm:$0xff]
      %v760 = vld [vmem:[#allocation4 + $0x10] sm:$0xff]
      %v761 = vld [vmem:[#allocation4 + $0x18] sm:$0xff]
      %v762 = vld [vmem:[#allocation4 + $0x20] sm:$0xff]
      %v763 = vld [vmem:[#allocation4 + $0x28] sm:$0xff]
      %v764 = vld [vmem:[#allocation4 + $0x30] sm:$0xff]
      %v765 = vld [vmem:[#allocation4 + $0x38] sm:$0xff]
      %v766 = vld [vmem:[#allocation4 + $0x40] sm:$0xff]
      %v767 = vld [vmem:[#allocation4 + $0x48] sm:$0xff]
      %v768 = vadd.f32 %v758, %v734
      %v769 = vadd.f32 %v759, %v736
      %v770 = vadd.f32 %v760, %v739
      %v771 = vadd.f32 %v761, %v741
      %v772 = vadd.f32 %v762, %v744
      %v773 = vadd.f32 %v763, %v746
      %v774 = vadd.f32 %v764, %v749
      %v775 = vadd.f32 %v765, %v751
      %v776 = vadd.f32 %v766, %v754
      %v777 = vadd.f32 %v767, %v756
      %778 = vst.msk [vmem:[#allocation4] sm:$0xff] %vm462, %v768
      %779 = vst.msk [vmem:[#allocation4 + $0x8] sm:$0xff] %vm462, %v769
      %780 = vst.msk [vmem:[#allocation4 + $0x10] sm:$0xff] %vm462, %v770
      %781 = vst.msk [vmem:[#allocation4 + $0x18] sm:$0xff] %vm462, %v771
      %782 = vst.msk [vmem:[#allocation4 + $0x20] sm:$0xff] %vm462, %v772
      %783 = vst.msk [vmem:[#allocation4 + $0x28] sm:$0xff] %vm462, %v773
      %784 = vst.msk [vmem:[#allocation4 + $0x30] sm:$0xff] %vm462, %v774
      %785 = vst.msk [vmem:[#allocation4 + $0x38] sm:$0xff] %vm462, %v775
      %786 = vst.msk [vmem:[#allocation4 + $0x40] sm:$0xff] %vm462, %v776
      %787 = vst.msk [vmem:[#allocation4 + $0x48] sm:$0xff] %vm462, %v777
      %v788 = vld [vmem:[%s425] sm:$0xe]
      %v789 = vld [vmem:[%s425 + $0x4] sm:$0x1]
      %v790 = vld [vmem:[%s425 + $0x8] sm:$0xe]
      %v791 = vld [vmem:[%s425 + $0xc] sm:$0x1]
      %v792 = vld [vmem:[%s425 + $0x10] sm:$0xe]
      %v793 = vld [vmem:[%s425 + $0x14] sm:$0x1]
      %v794 = vld [vmem:[%s425 + $0x18] sm:$0xe]
      %v795 = vld [vmem:[%s425 + $0x1c] sm:$0x1]
      %v796 = vld [vmem:[%s425 + $0x20] sm:$0xe]
      %v797 = vld [vmem:[%s425 + $0x24] sm:$0x1]
      %v798 = vld [vmem:[%s425 + $0x28] sm:$0xe]
      %v799 = vld [vmem:[%s425 + $0x2c] sm:$0x1]
      %v800 = vld [vmem:[%s425 + $0x30] sm:$0xe]
      %v801 = vld [vmem:[%s425 + $0x34] sm:$0x1]
      %v802 = vld [vmem:[%s425 + $0x38] sm:$0xe]
      %v803 = vld [vmem:[%s425 + $0x3c] sm:$0x1]
      %v804 = vld [vmem:[%s425 + $0x40] sm:$0xe]
      %v805 = vld [vmem:[%s425 + $0x44] sm:$0x1]
      %v806 = vld [vmem:[%s425 + $0x48] sm:$0xe]
      %v807 = vld [vmem:[%s425 + $0x4c] sm:$0x1]
      %vm828 = vcmask 1042432
      %vm829 = vcmask 1046532
      %vm830 = vmor %vm828, %vm829
      %v831 = vrot.slane %v788, 5
      %v832 = vrot.slane %v831, 4
      %v833 = vrot.slane %v789, 5
      %v834 = vsel %vm830, %v832, %v833
      %v835 = vrot.slane %v790, 5
      %v836 = vrot.slane %v835, 4
      %v837 = vrot.slane %v791, 5
      %v838 = vsel %vm830, %v836, %v837
      %v839 = vrot.slane %v792, 5
      %v840 = vrot.slane %v839, 4
      %v841 = vrot.slane %v793, 5
      %v842 = vsel %vm830, %v840, %v841
      %v843 = vrot.slane %v794, 5
      %v844 = vrot.slane %v843, 4
      %v845 = vrot.slane %v795, 5
      %v846 = vsel %vm830, %v844, %v845
      %v847 = vrot.slane %v796, 5
      %v848 = vrot.slane %v847, 4
      %v849 = vrot.slane %v797, 5
      %v850 = vsel %vm830, %v848, %v849
      %v851 = vrot.slane %v798, 5
      %v852 = vrot.slane %v851, 4
      %v853 = vrot.slane %v799, 5
      %v854 = vsel %vm830, %v852, %v853
      %v855 = vrot.slane %v800, 5
      %v856 = vrot.slane %v855, 4
      %v857 = vrot.slane %v801, 5
      %v858 = vsel %vm830, %v856, %v857
      %v859 = vrot.slane %v802, 5
      %v860 = vrot.slane %v859, 4
      %v861 = vrot.slane %v803, 5
      %v862 = vsel %vm830, %v860, %v861
      %v863 = vrot.slane %v804, 5
      %v864 = vrot.slane %v863, 4
      %v865 = vrot.slane %v805, 5
      %v866 = vsel %vm830, %v864, %v865
      %v867 = vrot.slane %v806, 5
      %v868 = vrot.slane %v867, 4
      %v869 = vrot.slane %v807, 5
      %v870 = vsel %vm830, %v868, %v869
      %s871 = scalar_lea.vmem %s1, 8
      %v872 = vld [vmem:[%s871] sm:$0xf]
      %v873 = vunpack.c.l.b16 %v834
      %v874 = vunpack.c.l.b16 %v838
      %v875 = vunpack.c.l.b16 %v842
      %v876 = vunpack.c.l.b16 %v846
      %v877 = vunpack.c.l.b16 %v850
      %v878 = vunpack.c.l.b16 %v854
      %v879 = vunpack.c.l.b16 %v858
      %v880 = vunpack.c.l.b16 %v862
      %v881 = vunpack.c.l.b16 %v866
      %v882 = vunpack.c.l.b16 %v870
      %v883 = vpack.c.b16 %v874, %v873
      %v884 = vpack.c.b16 %v876, %v875
      %v885 = vpack.c.b16 %v878, %v877
      %v886 = vpack.c.b16 %v880, %v879
      %v887 = vpack.c.b16 %v882, %v881
      %v889 = vsel %vm462, %v883, 0
      %v892 = vsel %vm462, %v884, 0
      %v895 = vsel %vm462, %v885, 0
      %v898 = vsel %vm462, %v886, 0
      %v901 = vsel %vm462, %v887, 0
      %v904 = vsel %vm478, %v872, 0
      %906 = vmatpush.bf16.msra.mxu0 0
      %907 = vmatpush.bf16.msra.mxu0 0
      %908 = vmatpush.bf16.msra.mxu0 0
      %909 = vmatpush.bf16.msra.mxu0 0
      %910 = vmatpush.bf16.msra.mxu0 0
      %911 = vmatpush.bf16.msra.mxu0 0
      %912 = vmatpush.bf16.msra.mxu0 0
      %913 = vmatpush.bf16.msra.mxu0 %v904
      %914 = vmatmul.bf16.gmra.mxu0 %v889
      %v915 = vpop.f32.mrf.mxu0
      %v916 = vadd.f32 0.0, %v915
      %v917 = vpop.f32.mrf.mxu0
      %v918 = vadd.f32 0.0, %v917
      %919 = vmatmul.bf16.gmra.mxu0 %v892
      %v920 = vpop.f32.mrf.mxu0
      %v921 = vadd.f32 0.0, %v920
      %v922 = vpop.f32.mrf.mxu0
      %v923 = vadd.f32 0.0, %v922
      %924 = vmatmul.bf16.gmra.mxu0 %v895
      %v925 = vpop.f32.mrf.mxu0
      %v926 = vadd.f32 0.0, %v925
      %v927 = vpop.f32.mrf.mxu0
      %v928 = vadd.f32 0.0, %v927
      %929 = vmatmul.bf16.gmra.mxu0 %v898
      %v930 = vpop.f32.mrf.mxu0
      %v931 = vadd.f32 0.0, %v930
      %v932 = vpop.f32.mrf.mxu0
      %v933 = vadd.f32 0.0, %v932
      %934 = vmatmul.bf16.gmra.mxu0 %v901
      %v935 = vpop.f32.mrf.mxu0
      %v936 = vadd.f32 0.0, %v935
      %v937 = vpop.f32.mrf.mxu0
      %v938 = vadd.f32 0.0, %v937
      %939 = vdwg.mxu0
      %v940 = vld [vmem:[#allocation4] sm:$0xff]
      %v941 = vld [vmem:[#allocation4 + $0x8] sm:$0xff]
      %v942 = vld [vmem:[#allocation4 + $0x10] sm:$0xff]
      %v943 = vld [vmem:[#allocation4 + $0x18] sm:$0xff]
      %v944 = vld [vmem:[#allocation4 + $0x20] sm:$0xff]
      %v945 = vld [vmem:[#allocation4 + $0x28] sm:$0xff]
      %v946 = vld [vmem:[#allocation4 + $0x30] sm:$0xff]
      %v947 = vld [vmem:[#allocation4 + $0x38] sm:$0xff]
      %v948 = vld [vmem:[#allocation4 + $0x40] sm:$0xff]
      %v949 = vld [vmem:[#allocation4 + $0x48] sm:$0xff]
      %v950 = vadd.f32 %v940, %v916
      %v951 = vadd.f32 %v941, %v918
      %v952 = vadd.f32 %v942, %v921
      %v953 = vadd.f32 %v943, %v923
      %v954 = vadd.f32 %v944, %v926
      %v955 = vadd.f32 %v945, %v928
      %v956 = vadd.f32 %v946, %v931
      %v957 = vadd.f32 %v947, %v933
      %v958 = vadd.f32 %v948, %v936
      %v959 = vadd.f32 %v949, %v938
      %960 = vst.msk [vmem:[#allocation4] sm:$0xff] %vm462, %v950
      %961 = vst.msk [vmem:[#allocation4 + $0x8] sm:$0xff] %vm462, %v951
      %962 = vst.msk [vmem:[#allocation4 + $0x10] sm:$0xff] %vm462, %v952
      %963 = vst.msk [vmem:[#allocation4 + $0x18] sm:$0xff] %vm462, %v953
      %964 = vst.msk [vmem:[#allocation4 + $0x20] sm:$0xff] %vm462, %v954
      %965 = vst.msk [vmem:[#allocation4 + $0x28] sm:$0xff] %vm462, %v955
      %966 = vst.msk [vmem:[#allocation4 + $0x30] sm:$0xff] %vm462, %v956
      %967 = vst.msk [vmem:[#allocation4 + $0x38] sm:$0xff] %vm462, %v957
      %968 = vst.msk [vmem:[#allocation4 + $0x40] sm:$0xff] %vm462, %v958
      %969 = vst.msk [vmem:[#allocation4 + $0x48] sm:$0xff] %vm462, %v959
      %s970 = sadd.s32 %s249, 1
      %s971 = smul.u32 %s970, 2
      %s972 = smul.addr %s971, 4
      %s973 = scalar_lea.vmem [#allocation2], %s972
      %v974 = vld [vmem:[%s973] sm:$0xf]
      %v975 = vld [vmem:[%s973 + $0x8] sm:$0xf]
      %v976 = vld [vmem:[%s973 + $0x10] sm:$0xf]
      %v977 = vld [vmem:[%s973 + $0x18] sm:$0xf]
      %v978 = vld [vmem:[%s973 + $0x20] sm:$0xf]
      %v979 = vld [vmem:[%s973 + $0x28] sm:$0xf]
      %v980 = vld [vmem:[%s973 + $0x30] sm:$0xf]
      %v981 = vld [vmem:[%s973 + $0x38] sm:$0xf]
      %v982 = vld [vmem:[%s973 + $0x40] sm:$0xf]
      %v983 = vld [vmem:[%s973 + $0x48] sm:$0xf]
      %s984 = scalar_lea.vmem %s1, 12
      %v985 = vld [vmem:[%s984] sm:$0xf]
      %v996 = vunpack.c.l.b16 %v974
      %v997 = vunpack.c.l.b16 %v975
      %v998 = vunpack.c.l.b16 %v976
      %v999 = vunpack.c.l.b16 %v977
      %v1000 = vunpack.c.l.b16 %v978
      %v1001 = vunpack.c.l.b16 %v979
      %v1002 = vunpack.c.l.b16 %v980
      %v1003 = vunpack.c.l.b16 %v981
      %v1004 = vunpack.c.l.b16 %v982
      %v1005 = vunpack.c.l.b16 %v983
      %v1006 = vpack.c.b16 %v997, %v996
      %v1007 = vpack.c.b16 %v999, %v998
      %v1008 = vpack.c.b16 %v1001, %v1000
      %v1009 = vpack.c.b16 %v1003, %v1002
      %v1010 = vpack.c.b16 %v1005, %v1004
      %v1012 = vsel %vm462, %v1006, 0
      %v1015 = vsel %vm462, %v1007, 0
      %v1018 = vsel %vm462, %v1008, 0
      %v1021 = vsel %vm462, %v1009, 0
      %v1024 = vsel %vm462, %v1010, 0
      %v1027 = vsel %vm478, %v985, 0
      %1029 = vmatpush.bf16.msra.mxu0 0
      %1030 = vmatpush.bf16.msra.mxu0 0
      %1031 = vmatpush.bf16.msra.mxu0 0
      %1032 = vmatpush.bf16.msra.mxu0 0
      %1033 = vmatpush.bf16.msra.mxu0 0
      %1034 = vmatpush.bf16.msra.mxu0 0
      %1035 = vmatpush.bf16.msra.mxu0 0
      %1036 = vmatpush.bf16.msra.mxu0 %v1027
      %1037 = vmatmul.bf16.gmra.mxu0 %v1012
      %v1038 = vpop.f32.mrf.mxu0
      %v1039 = vadd.f32 0.0, %v1038
      %v1040 = vpop.f32.mrf.mxu0
      %v1041 = vadd.f32 0.0, %v1040
      %1042 = vmatmul.bf16.gmra.mxu0 %v1015
      %v1043 = vpop.f32.mrf.mxu0
      %v1044 = vadd.f32 0.0, %v1043
      %v1045 = vpop.f32.mrf.mxu0
      %v1046 = vadd.f32 0.0, %v1045
      %1047 = vmatmul.bf16.gmra.mxu0 %v1018
      %v1048 = vpop.f32.mrf.mxu0
      %v1049 = vadd.f32 0.0, %v1048
      %v1050 = vpop.f32.mrf.mxu0
      %v1051 = vadd.f32 0.0, %v1050
      %1052 = vmatmul.bf16.gmra.mxu0 %v1021
      %v1053 = vpop.f32.mrf.mxu0
      %v1054 = vadd.f32 0.0, %v1053
      %v1055 = vpop.f32.mrf.mxu0
      %v1056 = vadd.f32 0.0, %v1055
      %1057 = vmatmul.bf16.gmra.mxu0 %v1024
      %v1058 = vpop.f32.mrf.mxu0
      %v1059 = vadd.f32 0.0, %v1058
      %v1060 = vpop.f32.mrf.mxu0
      %v1061 = vadd.f32 0.0, %v1060
      %1062 = vdwg.mxu0
      %v1063 = vld [vmem:[#allocation4] sm:$0xff]
      %v1064 = vld [vmem:[#allocation4 + $0x8] sm:$0xff]
      %v1065 = vld [vmem:[#allocation4 + $0x10] sm:$0xff]
      %v1066 = vld [vmem:[#allocation4 + $0x18] sm:$0xff]
      %v1067 = vld [vmem:[#allocation4 + $0x20] sm:$0xff]
      %v1068 = vld [vmem:[#allocation4 + $0x28] sm:$0xff]
      %v1069 = vld [vmem:[#allocation4 + $0x30] sm:$0xff]
      %v1070 = vld [vmem:[#allocation4 + $0x38] sm:$0xff]
      %v1071 = vld [vmem:[#allocation4 + $0x40] sm:$0xff]
      %v1072 = vld [vmem:[#allocation4 + $0x48] sm:$0xff]
      %v1073 = vadd.f32 %v1063, %v1039
      %v1074 = vadd.f32 %v1064, %v1041
      %v1075 = vadd.f32 %v1065, %v1044
      %v1076 = vadd.f32 %v1066, %v1046
      %v1077 = vadd.f32 %v1067, %v1049
      %v1078 = vadd.f32 %v1068, %v1051
      %v1079 = vadd.f32 %v1069, %v1054
      %v1080 = vadd.f32 %v1070, %v1056
      %v1081 = vadd.f32 %v1071, %v1059
      %v1082 = vadd.f32 %v1072, %v1061
      %1083 = vst.msk [vmem:[#allocation4] sm:$0xff] %vm462, %v1073
      %1084 = vst.msk [vmem:[#allocation4 + $0x8] sm:$0xff] %vm462, %v1074
      %1085 = vst.msk [vmem:[#allocation4 + $0x10] sm:$0xff] %vm462, %v1075
      %1086 = vst.msk [vmem:[#allocation4 + $0x18] sm:$0xff] %vm462, %v1076
      %1087 = vst.msk [vmem:[#allocation4 + $0x20] sm:$0xff] %vm462, %v1077
      %1088 = vst.msk [vmem:[#allocation4 + $0x28] sm:$0xff] %vm462, %v1078
      %1089 = vst.msk [vmem:[#allocation4 + $0x30] sm:$0xff] %vm462, %v1079
      %1090 = vst.msk [vmem:[#allocation4 + $0x38] sm:$0xff] %vm462, %v1080
      %1091 = vst.msk [vmem:[#allocation4 + $0x40] sm:$0xff] %vm462, %v1081
      %1092 = vst.msk [vmem:[#allocation4 + $0x48] sm:$0xff] %vm462, %v1082
      %v1093 = vld [vmem:[%s973] sm:$0xf]
      %v1094 = vld [vmem:[%s973 + $0x4] sm:$0x1]
      %v1095 = vld [vmem:[%s973 + $0x8] sm:$0xf]
      %v1096 = vld [vmem:[%s973 + $0xc] sm:$0x1]
      %v1097 = vld [vmem:[%s973 + $0x10] sm:$0xf]
      %v1098 = vld [vmem:[%s973 + $0x14] sm:$0x1]
      %v1099 = vld [vmem:[%s973 + $0x18] sm:$0xf]
      %v1100 = vld [vmem:[%s973 + $0x1c] sm:$0x1]
      %v1101 = vld [vmem:[%s973 + $0x20] sm:$0xf]
      %v1102 = vld [vmem:[%s973 + $0x24] sm:$0x1]
      %v1103 = vld [vmem:[%s973 + $0x28] sm:$0xf]
      %v1104 = vld [vmem:[%s973 + $0x2c] sm:$0x1]
      %v1105 = vld [vmem:[%s973 + $0x30] sm:$0xf]
      %v1106 = vld [vmem:[%s973 + $0x34] sm:$0x1]
      %v1107 = vld [vmem:[%s973 + $0x38] sm:$0xf]
      %v1108 = vld [vmem:[%s973 + $0x3c] sm:$0x1]
      %v1109 = vld [vmem:[%s973 + $0x40] sm:$0xf]
      %v1110 = vld [vmem:[%s973 + $0x44] sm:$0x1]
      %v1111 = vld [vmem:[%s973 + $0x48] sm:$0xf]
      %v1112 = vld [vmem:[%s973 + $0x4c] sm:$0x1]
      %v1114 = vshrl.u32 %v1093, 16
      %v1116 = vrot.slane %v1114, 4
      %v1117 = vshll.u32 %v1093, 16
      %v1119 = vrot.slane %v1117, 5
      %v1120 = vor.u32 %v1116, %v1119
      %v1121 = vrot.slane %v1120, 4
      %v1123 = vshll.u32 %v1094, 16
      %v1125 = vrot.slane %v1123, 5
      %v1126 = vsel %vm548, %v1121, %v1125
      %v1128 = vshrl.u32 %v1095, 16
      %v1130 = vrot.slane %v1128, 4
      %v1131 = vshll.u32 %v1095, 16
      %v1133 = vrot.slane %v1131, 5
      %v1134 = vor.u32 %v1130, %v1133
      %v1135 = vrot.slane %v1134, 4
      %v1137 = vshll.u32 %v1096, 16
      %v1139 = vrot.slane %v1137, 5
      %v1140 = vsel %vm548, %v1135, %v1139
      %v1142 = vshrl.u32 %v1097, 16
      %v1144 = vrot.slane %v1142, 4
      %v1145 = vshll.u32 %v1097, 16
      %v1147 = vrot.slane %v1145, 5
      %v1148 = vor.u32 %v1144, %v1147
      %v1149 = vrot.slane %v1148, 4
      %v1151 = vshll.u32 %v1098, 16
      %v1153 = vrot.slane %v1151, 5
      %v1154 = vsel %vm548, %v1149, %v1153
      %v1156 = vshrl.u32 %v1099, 16
      %v1158 = vrot.slane %v1156, 4
      %v1159 = vshll.u32 %v1099, 16
      %v1161 = vrot.slane %v1159, 5
      %v1162 = vor.u32 %v1158, %v1161
      %v1163 = vrot.slane %v1162, 4
      %v1165 = vshll.u32 %v1100, 16
      %v1167 = vrot.slane %v1165, 5
      %v1168 = vsel %vm548, %v1163, %v1167
      %v1170 = vshrl.u32 %v1101, 16
      %v1172 = vrot.slane %v1170, 4
      %v1173 = vshll.u32 %v1101, 16
      %v1175 = vrot.slane %v1173, 5
      %v1176 = vor.u32 %v1172, %v1175
      %v1177 = vrot.slane %v1176, 4
      %v1179 = vshll.u32 %v1102, 16
      %v1181 = vrot.slane %v1179, 5
      %v1182 = vsel %vm548, %v1177, %v1181
      %v1184 = vshrl.u32 %v1103, 16
      %v1186 = vrot.slane %v1184, 4
      %v1187 = vshll.u32 %v1103, 16
      %v1189 = vrot.slane %v1187, 5
      %v1190 = vor.u32 %v1186, %v1189
      %v1191 = vrot.slane %v1190, 4
      %v1193 = vshll.u32 %v1104, 16
      %v1195 = vrot.slane %v1193, 5
      %v1196 = vsel %vm548, %v1191, %v1195
      %v1198 = vshrl.u32 %v1105, 16
      %v1200 = vrot.slane %v1198, 4
      %v1201 = vshll.u32 %v1105, 16
      %v1203 = vrot.slane %v1201, 5
      %v1204 = vor.u32 %v1200, %v1203
      %v1205 = vrot.slane %v1204, 4
      %v1207 = vshll.u32 %v1106, 16
      %v1209 = vrot.slane %v1207, 5
      %v1210 = vsel %vm548, %v1205, %v1209
      %v1212 = vshrl.u32 %v1107, 16
      %v1214 = vrot.slane %v1212, 4
      %v1215 = vshll.u32 %v1107, 16
      %v1217 = vrot.slane %v1215, 5
      %v1218 = vor.u32 %v1214, %v1217
      %v1219 = vrot.slane %v1218, 4
      %v1221 = vshll.u32 %v1108, 16
      %v1223 = vrot.slane %v1221, 5
      %v1224 = vsel %vm548, %v1219, %v1223
      %v1226 = vshrl.u32 %v1109, 16
      %v1228 = vrot.slane %v1226, 4
      %v1229 = vshll.u32 %v1109, 16
      %v1231 = vrot.slane %v1229, 5
      %v1232 = vor.u32 %v1228, %v1231
      %v1233 = vrot.slane %v1232, 4
      %v1235 = vshll.u32 %v1110, 16
      %v1237 = vrot.slane %v1235, 5
      %v1238 = vsel %vm548, %v1233, %v1237
      %v1240 = vshrl.u32 %v1111, 16
      %v1242 = vrot.slane %v1240, 4
      %v1243 = vshll.u32 %v1111, 16
      %v1245 = vrot.slane %v1243, 5
      %v1246 = vor.u32 %v1242, %v1245
      %v1247 = vrot.slane %v1246, 4
      %v1249 = vshll.u32 %v1112, 16
      %v1251 = vrot.slane %v1249, 5
      %v1252 = vsel %vm548, %v1247, %v1251
      %s1253 = scalar_lea.vmem %s1, 16
      %v1254 = vld [vmem:[%s1253] sm:$0xf]
      %v1255 = vunpack.c.l.b16 %v1126
      %v1256 = vunpack.c.l.b16 %v1140
      %v1257 = vunpack.c.l.b16 %v1154
      %v1258 = vunpack.c.l.b16 %v1168
      %v1259 = vunpack.c.l.b16 %v1182
      %v1260 = vunpack.c.l.b16 %v1196
      %v1261 = vunpack.c.l.b16 %v1210
      %v1262 = vunpack.c.l.b16 %v1224
      %v1263 = vunpack.c.l.b16 %v1238
      %v1264 = vunpack.c.l.b16 %v1252
      %v1265 = vpack.c.b16 %v1256, %v1255
      %v1266 = vpack.c.b16 %v1258, %v1257
      %v1267 = vpack.c.b16 %v1260, %v1259
      %v1268 = vpack.c.b16 %v1262, %v1261
      %v1269 = vpack.c.b16 %v1264, %v1263
      %v1271 = vsel %vm462, %v1265, 0
      %v1274 = vsel %vm462, %v1266, 0
      %v1277 = vsel %vm462, %v1267, 0
      %v1280 = vsel %vm462, %v1268, 0
      %v1283 = vsel %vm462, %v1269, 0
      %v1286 = vsel %vm478, %v1254, 0
      %1288 = vmatpush.bf16.msra.mxu0 0
      %1289 = vmatpush.bf16.msra.mxu0 0
      %1290 = vmatpush.bf16.msra.mxu0 0
      %1291 = vmatpush.bf16.msra.mxu0 0
      %1292 = vmatpush.bf16.msra.mxu0 0
      %1293 = vmatpush.bf16.msra.mxu0 0
      %1294 = vmatpush.bf16.msra.mxu0 0
      %1295 = vmatpush.bf16.msra.mxu0 %v1286
      %1296 = vmatmul.bf16.gmra.mxu0 %v1271
      %v1297 = vpop.f32.mrf.mxu0
      %v1298 = vadd.f32 0.0, %v1297
      %v1299 = vpop.f32.mrf.mxu0
      %v1300 = vadd.f32 0.0, %v1299
      %1301 = vmatmul.bf16.gmra.mxu0 %v1274
      %v1302 = vpop.f32.mrf.mxu0
      %v1303 = vadd.f32 0.0, %v1302
      %v1304 = vpop.f32.mrf.mxu0
      %v1305 = vadd.f32 0.0, %v1304
      %1306 = vmatmul.bf16.gmra.mxu0 %v1277
      %v1307 = vpop.f32.mrf.mxu0
      %v1308 = vadd.f32 0.0, %v1307
      %v1309 = vpop.f32.mrf.mxu0
      %v1310 = vadd.f32 0.0, %v1309
      %1311 = vmatmul.bf16.gmra.mxu0 %v1280
      %v1312 = vpop.f32.mrf.mxu0
      %v1313 = vadd.f32 0.0, %v1312
      %v1314 = vpop.f32.mrf.mxu0
      %v1315 = vadd.f32 0.0, %v1314
      %1316 = vmatmul.bf16.gmra.mxu0 %v1283
      %v1317 = vpop.f32.mrf.mxu0
      %v1318 = vadd.f32 0.0, %v1317
      %v1319 = vpop.f32.mrf.mxu0
      %v1320 = vadd.f32 0.0, %v1319
      %1321 = vdwg.mxu0
      %v1322 = vld [vmem:[#allocation4] sm:$0xff]
      %v1323 = vld [vmem:[#allocation4 + $0x8] sm:$0xff]
      %v1324 = vld [vmem:[#allocation4 + $0x10] sm:$0xff]
      %v1325 = vld [vmem:[#allocation4 + $0x18] sm:$0xff]
      %v1326 = vld [vmem:[#allocation4 + $0x20] sm:$0xff]
      %v1327 = vld [vmem:[#allocation4 + $0x28] sm:$0xff]
      %v1328 = vld [vmem:[#allocation4 + $0x30] sm:$0xff]
      %v1329 = vld [vmem:[#allocation4 + $0x38] sm:$0xff]
      %v1330 = vld [vmem:[#allocation4 + $0x40] sm:$0xff]
      %v1331 = vld [vmem:[#allocation4 + $0x48] sm:$0xff]
      %v1332 = vadd.f32 %v1322, %v1298
      %v1333 = vadd.f32 %v1323, %v1300
      %v1334 = vadd.f32 %v1324, %v1303
      %v1335 = vadd.f32 %v1325, %v1305
      %v1336 = vadd.f32 %v1326, %v1308
      %v1337 = vadd.f32 %v1327, %v1310
      %v1338 = vadd.f32 %v1328, %v1313
      %v1339 = vadd.f32 %v1329, %v1315
      %v1340 = vadd.f32 %v1330, %v1318
      %v1341 = vadd.f32 %v1331, %v1320
      %1342 = vst.msk [vmem:[#allocation4] sm:$0xff] %vm462, %v1332
      %1343 = vst.msk [vmem:[#allocation4 + $0x8] sm:$0xff] %vm462, %v1333
      %1344 = vst.msk [vmem:[#allocation4 + $0x10] sm:$0xff] %vm462, %v1334
      %1345 = vst.msk [vmem:[#allocation4 + $0x18] sm:$0xff] %vm462, %v1335
      %1346 = vst.msk [vmem:[#allocation4 + $0x20] sm:$0xff] %vm462, %v1336
      %1347 = vst.msk [vmem:[#allocation4 + $0x28] sm:$0xff] %vm462, %v1337
      %1348 = vst.msk [vmem:[#allocation4 + $0x30] sm:$0xff] %vm462, %v1338
      %1349 = vst.msk [vmem:[#allocation4 + $0x38] sm:$0xff] %vm462, %v1339
      %1350 = vst.msk [vmem:[#allocation4 + $0x40] sm:$0xff] %vm462, %v1340
      %1351 = vst.msk [vmem:[#allocation4 + $0x48] sm:$0xff] %vm462, %v1341
      %v1352 = vld [vmem:[%s973] sm:$0xe]
      %v1353 = vld [vmem:[%s973 + $0x4] sm:$0x1]
      %v1354 = vld [vmem:[%s973 + $0x8] sm:$0xe]
      %v1355 = vld [vmem:[%s973 + $0xc] sm:$0x1]
      %v1356 = vld [vmem:[%s973 + $0x10] sm:$0xe]
      %v1357 = vld [vmem:[%s973 + $0x14] sm:$0x1]
      %v1358 = vld [vmem:[%s973 + $0x18] sm:$0xe]
      %v1359 = vld [vmem:[%s973 + $0x1c] sm:$0x1]
      %v1360 = vld [vmem:[%s973 + $0x20] sm:$0xe]
      %v1361 = vld [vmem:[%s973 + $0x24] sm:$0x1]
      %v1362 = vld [vmem:[%s973 + $0x28] sm:$0xe]
      %v1363 = vld [vmem:[%s973 + $0x2c] sm:$0x1]
      %v1364 = vld [vmem:[%s973 + $0x30] sm:$0xe]
      %v1365 = vld [vmem:[%s973 + $0x34] sm:$0x1]
      %v1366 = vld [vmem:[%s973 + $0x38] sm:$0xe]
      %v1367 = vld [vmem:[%s973 + $0x3c] sm:$0x1]
      %v1368 = vld [vmem:[%s973 + $0x40] sm:$0xe]
      %v1369 = vld [vmem:[%s973 + $0x44] sm:$0x1]
      %v1370 = vld [vmem:[%s973 + $0x48] sm:$0xe]
      %v1371 = vld [vmem:[%s973 + $0x4c] sm:$0x1]
      %v1392 = vrot.slane %v1352, 5
      %v1393 = vrot.slane %v1392, 4
      %v1394 = vrot.slane %v1353, 5
      %v1395 = vsel %vm830, %v1393, %v1394
      %v1396 = vrot.slane %v1354, 5
      %v1397 = vrot.slane %v1396, 4
      %v1398 = vrot.slane %v1355, 5
      %v1399 = vsel %vm830, %v1397, %v1398
      %v1400 = vrot.slane %v1356, 5
      %v1401 = vrot.slane %v1400, 4
      %v1402 = vrot.slane %v1357, 5
      %v1403 = vsel %vm830, %v1401, %v1402
      %v1404 = vrot.slane %v1358, 5
      %v1405 = vrot.slane %v1404, 4
      %v1406 = vrot.slane %v1359, 5
      %v1407 = vsel %vm830, %v1405, %v1406
      %v1408 = vrot.slane %v1360, 5
      %v1409 = vrot.slane %v1408, 4
      %v1410 = vrot.slane %v1361, 5
      %v1411 = vsel %vm830, %v1409, %v1410
      %v1412 = vrot.slane %v1362, 5
      %v1413 = vrot.slane %v1412, 4
      %v1414 = vrot.slane %v1363, 5
      %v1415 = vsel %vm830, %v1413, %v1414
      %v1416 = vrot.slane %v1364, 5
      %v1417 = vrot.slane %v1416, 4
      %v1418 = vrot.slane %v1365, 5
      %v1419 = vsel %vm830, %v1417, %v1418
      %v1420 = vrot.slane %v1366, 5
      %v1421 = vrot.slane %v1420, 4
      %v1422 = vrot.slane %v1367, 5
      %v1423 = vsel %vm830, %v1421, %v1422
      %v1424 = vrot.slane %v1368, 5
      %v1425 = vrot.slane %v1424, 4
      %v1426 = vrot.slane %v1369, 5
      %v1427 = vsel %vm830, %v1425, %v1426
      %v1428 = vrot.slane %v1370, 5
      %v1429 = vrot.slane %v1428, 4
      %v1430 = vrot.slane %v1371, 5
      %v1431 = vsel %vm830, %v1429, %v1430
      %s1432 = scalar_lea.vmem %s1, 20
      %v1433 = vld [vmem:[%s1432] sm:$0xf]
      %v1434 = vunpack.c.l.b16 %v1395
      %v1435 = vunpack.c.l.b16 %v1399
      %v1436 = vunpack.c.l.b16 %v1403
      %v1437 = vunpack.c.l.b16 %v1407
      %v1438 = vunpack.c.l.b16 %v1411
      %v1439 = vunpack.c.l.b16 %v1415
      %v1440 = vunpack.c.l.b16 %v1419
      %v1441 = vunpack.c.l.b16 %v1423
      %v1442 = vunpack.c.l.b16 %v1427
      %v1443 = vunpack.c.l.b16 %v1431
      %v1444 = vpack.c.b16 %v1435, %v1434
      %v1445 = vpack.c.b16 %v1437, %v1436
      %v1446 = vpack.c.b16 %v1439, %v1438
      %v1447 = vpack.c.b16 %v1441, %v1440
      %v1448 = vpack.c.b16 %v1443, %v1442
      %v1450 = vsel %vm462, %v1444, 0
      %v1453 = vsel %vm462, %v1445, 0
      %v1456 = vsel %vm462, %v1446, 0
      %v1459 = vsel %vm462, %v1447, 0
      %v1462 = vsel %vm462, %v1448, 0
      %v1465 = vsel %vm478, %v1433, 0
      %1467 = vmatpush.bf16.msra.mxu0 0
      %1468 = vmatpush.bf16.msra.mxu0 0
      %1469 = vmatpush.bf16.msra.mxu0 0
      %1470 = vmatpush.bf16.msra.mxu0 0
      %1471 = vmatpush.bf16.msra.mxu0 0
      %1472 = vmatpush.bf16.msra.mxu0 0
      %1473 = vmatpush.bf16.msra.mxu0 0
      %1474 = vmatpush.bf16.msra.mxu0 %v1465
      %1475 = vmatmul.bf16.gmra.mxu0 %v1450
      %v1476 = vpop.f32.mrf.mxu0
      %v1477 = vadd.f32 0.0, %v1476
      %v1478 = vpop.f32.mrf.mxu0
      %v1479 = vadd.f32 0.0, %v1478
      %1480 = vmatmul.bf16.gmra.mxu0 %v1453
      %v1481 = vpop.f32.mrf.mxu0
      %v1482 = vadd.f32 0.0, %v1481
      %v1483 = vpop.f32.mrf.mxu0
      %v1484 = vadd.f32 0.0, %v1483
      %1485 = vmatmul.bf16.gmra.mxu0 %v1456
      %v1486 = vpop.f32.mrf.mxu0
      %v1487 = vadd.f32 0.0, %v1486
      %v1488 = vpop.f32.mrf.mxu0
      %v1489 = vadd.f32 0.0, %v1488
      %1490 = vmatmul.bf16.gmra.mxu0 %v1459
      %v1491 = vpop.f32.mrf.mxu0
      %v1492 = vadd.f32 0.0, %v1491
      %v1493 = vpop.f32.mrf.mxu0
      %v1494 = vadd.f32 0.0, %v1493
      %1495 = vmatmul.bf16.gmra.mxu0 %v1462
      %v1496 = vpop.f32.mrf.mxu0
      %v1497 = vadd.f32 0.0, %v1496
      %v1498 = vpop.f32.mrf.mxu0
      %v1499 = vadd.f32 0.0, %v1498
      %1500 = vdwg.mxu0
      %v1501 = vld [vmem:[#allocation4] sm:$0xff]
      %v1502 = vld [vmem:[#allocation4 + $0x8] sm:$0xff]
      %v1503 = vld [vmem:[#allocation4 + $0x10] sm:$0xff]
      %v1504 = vld [vmem:[#allocation4 + $0x18] sm:$0xff]
      %v1505 = vld [vmem:[#allocation4 + $0x20] sm:$0xff]
      %v1506 = vld [vmem:[#allocation4 + $0x28] sm:$0xff]
      %v1507 = vld [vmem:[#allocation4 + $0x30] sm:$0xff]
      %v1508 = vld [vmem:[#allocation4 + $0x38] sm:$0xff]
      %v1509 = vld [vmem:[#allocation4 + $0x40] sm:$0xff]
      %v1510 = vld [vmem:[#allocation4 + $0x48] sm:$0xff]
      %v1511 = vadd.f32 %v1501, %v1477
      %v1512 = vadd.f32 %v1502, %v1479
      %v1513 = vadd.f32 %v1503, %v1482
      %v1514 = vadd.f32 %v1504, %v1484
      %v1515 = vadd.f32 %v1505, %v1487
      %v1516 = vadd.f32 %v1506, %v1489
      %v1517 = vadd.f32 %v1507, %v1492
      %v1518 = vadd.f32 %v1508, %v1494
      %v1519 = vadd.f32 %v1509, %v1497
      %v1520 = vadd.f32 %v1510, %v1499
      %1521 = vst.msk [vmem:[#allocation4] sm:$0xff] %vm462, %v1511
      %1522 = vst.msk [vmem:[#allocation4 + $0x8] sm:$0xff] %vm462, %v1512
      %1523 = vst.msk [vmem:[#allocation4 + $0x10] sm:$0xff] %vm462, %v1513
      %1524 = vst.msk [vmem:[#allocation4 + $0x18] sm:$0xff] %vm462, %v1514
      %1525 = vst.msk [vmem:[#allocation4 + $0x20] sm:$0xff] %vm462, %v1515
      %1526 = vst.msk [vmem:[#allocation4 + $0x28] sm:$0xff] %vm462, %v1516
      %1527 = vst.msk [vmem:[#allocation4 + $0x30] sm:$0xff] %vm462, %v1517
      %1528 = vst.msk [vmem:[#allocation4 + $0x38] sm:$0xff] %vm462, %v1518
      %1529 = vst.msk [vmem:[#allocation4 + $0x40] sm:$0xff] %vm462, %v1519
      %1530 = vst.msk [vmem:[#allocation4 + $0x48] sm:$0xff] %vm462, %v1520
      %s1531 = sadd.s32 %s249, 2
      %s1532 = smul.u32 %s1531, 2
      %s1533 = smul.addr %s1532, 4
      %s1534 = scalar_lea.vmem [#allocation2], %s1533
      %v1535 = vld [vmem:[%s1534] sm:$0xf]
      %v1536 = vld [vmem:[%s1534 + $0x8] sm:$0xf]
      %v1537 = vld [vmem:[%s1534 + $0x10] sm:$0xf]
      %v1538 = vld [vmem:[%s1534 + $0x18] sm:$0xf]
      %v1539 = vld [vmem:[%s1534 + $0x20] sm:$0xf]
      %v1540 = vld [vmem:[%s1534 + $0x28] sm:$0xf]
      %v1541 = vld [vmem:[%s1534 + $0x30] sm:$0xf]
      %v1542 = vld [vmem:[%s1534 + $0x38] sm:$0xf]
      %v1543 = vld [vmem:[%s1534 + $0x40] sm:$0xf]
      %v1544 = vld [vmem:[%s1534 + $0x48] sm:$0xf]
      %s1545 = scalar_lea.vmem %s1, 24
      %v1546 = vld [vmem:[%s1545] sm:$0xf]
      %v1557 = vunpack.c.l.b16 %v1535
      %v1558 = vunpack.c.l.b16 %v1536
      %v1559 = vunpack.c.l.b16 %v1537
      %v1560 = vunpack.c.l.b16 %v1538
      %v1561 = vunpack.c.l.b16 %v1539
      %v1562 = vunpack.c.l.b16 %v1540
      %v1563 = vunpack.c.l.b16 %v1541
      %v1564 = vunpack.c.l.b16 %v1542
      %v1565 = vunpack.c.l.b16 %v1543
      %v1566 = vunpack.c.l.b16 %v1544
      %v1567 = vpack.c.b16 %v1558, %v1557
      %v1568 = vpack.c.b16 %v1560, %v1559
      %v1569 = vpack.c.b16 %v1562, %v1561
      %v1570 = vpack.c.b16 %v1564, %v1563
      %v1571 = vpack.c.b16 %v1566, %v1565
      %v1573 = vsel %vm462, %v1567, 0
      %v1576 = vsel %vm462, %v1568, 0
      %v1579 = vsel %vm462, %v1569, 0
      %v1582 = vsel %vm462, %v1570, 0
      %v1585 = vsel %vm462, %v1571, 0
      %v1588 = vsel %vm478, %v1546, 0
      %1590 = vmatpush.bf16.msra.mxu0 0
      %1591 = vmatpush.bf16.msra.mxu0 0
      %1592 = vmatpush.bf16.msra.mxu0 0
      %1593 = vmatpush.bf16.msra.mxu0 0
      %1594 = vmatpush.bf16.msra.mxu0 0
      %1595 = vmatpush.bf16.msra.mxu0 0
      %1596 = vmatpush.bf16.msra.mxu0 0
      %1597 = vmatpush.bf16.msra.mxu0 %v1588
      %1598 = vmatmul.bf16.gmra.mxu0 %v1573
      %v1599 = vpop.f32.mrf.mxu0
      %v1600 = vadd.f32 0.0, %v1599
      %v1601 = vpop.f32.mrf.mxu0
      %v1602 = vadd.f32 0.0, %v1601
      %1603 = vmatmul.bf16.gmra.mxu0 %v1576
      %v1604 = vpop.f32.mrf.mxu0
      %v1605 = vadd.f32 0.0, %v1604
      %v1606 = vpop.f32.mrf.mxu0
      %v1607 = vadd.f32 0.0, %v1606
      %1608 = vmatmul.bf16.gmra.mxu0 %v1579
      %v1609 = vpop.f32.mrf.mxu0
      %v1610 = vadd.f32 0.0, %v1609
      %v1611 = vpop.f32.mrf.mxu0
      %v1612 = vadd.f32 0.0, %v1611
      %1613 = vmatmul.bf16.gmra.mxu0 %v1582
      %v1614 = vpop.f32.mrf.mxu0
      %v1615 = vadd.f32 0.0, %v1614
      %v1616 = vpop.f32.mrf.mxu0
      %v1617 = vadd.f32 0.0, %v1616
      %1618 = vmatmul.bf16.gmra.mxu0 %v1585
      %v1619 = vpop.f32.mrf.mxu0
      %v1620 = vadd.f32 0.0, %v1619
      %v1621 = vpop.f32.mrf.mxu0
      %v1622 = vadd.f32 0.0, %v1621
      %1623 = vdwg.mxu0
      %v1624 = vld [vmem:[#allocation4] sm:$0xff]
      %v1625 = vld [vmem:[#allocation4 + $0x8] sm:$0xff]
      %v1626 = vld [vmem:[#allocation4 + $0x10] sm:$0xff]
      %v1627 = vld [vmem:[#allocation4 + $0x18] sm:$0xff]
      %v1628 = vld [vmem:[#allocation4 + $0x20] sm:$0xff]
      %v1629 = vld [vmem:[#allocation4 + $0x28] sm:$0xff]
      %v1630 = vld [vmem:[#allocation4 + $0x30] sm:$0xff]
      %v1631 = vld [vmem:[#allocation4 + $0x38] sm:$0xff]
      %v1632 = vld [vmem:[#allocation4 + $0x40] sm:$0xff]
      %v1633 = vld [vmem:[#allocation4 + $0x48] sm:$0xff]
      %v1634 = vadd.f32 %v1624, %v1600
      %v1635 = vadd.f32 %v1625, %v1602
      %v1636 = vadd.f32 %v1626, %v1605
      %v1637 = vadd.f32 %v1627, %v1607
      %v1638 = vadd.f32 %v1628, %v1610
      %v1639 = vadd.f32 %v1629, %v1612
      %v1640 = vadd.f32 %v1630, %v1615
      %v1641 = vadd.f32 %v1631, %v1617
      %v1642 = vadd.f32 %v1632, %v1620
      %v1643 = vadd.f32 %v1633, %v1622
      %1644 = vst.msk [vmem:[#allocation4] sm:$0xff] %vm462, %v1634
      %1645 = vst.msk [vmem:[#allocation4 + $0x8] sm:$0xff] %vm462, %v1635
      %1646 = vst.msk [vmem:[#allocation4 + $0x10] sm:$0xff] %vm462, %v1636
      %1647 = vst.msk [vmem:[#allocation4 + $0x18] sm:$0xff] %vm462, %v1637
      %1648 = vst.msk [vmem:[#allocation4 + $0x20] sm:$0xff] %vm462, %v1638
      %1649 = vst.msk [vmem:[#allocation4 + $0x28] sm:$0xff] %vm462, %v1639
      %1650 = vst.msk [vmem:[#allocation4 + $0x30] sm:$0xff] %vm462, %v1640
      %1651 = vst.msk [vmem:[#allocation4 + $0x38] sm:$0xff] %vm462, %v1641
      %1652 = vst.msk [vmem:[#allocation4 + $0x40] sm:$0xff] %vm462, %v1642
      %1653 = vst.msk [vmem:[#allocation4 + $0x48] sm:$0xff] %vm462, %v1643
      %v1654 = vld [vmem:[%s1534] sm:$0xf]
      %v1655 = vld [vmem:[%s1534 + $0x4] sm:$0x1]
      %v1656 = vld [vmem:[%s1534 + $0x8] sm:$0xf]
      %v1657 = vld [vmem:[%s1534 + $0xc] sm:$0x1]
      %v1658 = vld [vmem:[%s1534 + $0x10] sm:$0xf]
      %v1659 = vld [vmem:[%s1534 + $0x14] sm:$0x1]
      %v1660 = vld [vmem:[%s1534 + $0x18] sm:$0xf]
      %v1661 = vld [vmem:[%s1534 + $0x1c] sm:$0x1]
      %v1662 = vld [vmem:[%s1534 + $0x20] sm:$0xf]
      %v1663 = vld [vmem:[%s1534 + $0x24] sm:$0x1]
      %v1664 = vld [vmem:[%s1534 + $0x28] sm:$0xf]
      %v1665 = vld [vmem:[%s1534 + $0x2c] sm:$0x1]
      %v1666 = vld [vmem:[%s1534 + $0x30] sm:$0xf]
      %v1667 = vld [vmem:[%s1534 + $0x34] sm:$0x1]
      %v1668 = vld [vmem:[%s1534 + $0x38] sm:$0xf]
      %v1669 = vld [vmem:[%s1534 + $0x3c] sm:$0x1]
      %v1670 = vld [vmem:[%s1534 + $0x40] sm:$0xf]
      %v1671 = vld [vmem:[%s1534 + $0x44] sm:$0x1]
      %v1672 = vld [vmem:[%s1534 + $0x48] sm:$0xf]
      %v1673 = vld [vmem:[%s1534 + $0x4c] sm:$0x1]
      %v1675 = vshrl.u32 %v1654, 16
      %v1677 = vrot.slane %v1675, 4
      %v1678 = vshll.u32 %v1654, 16
      %v1680 = vrot.slane %v1678, 5
      %v1681 = vor.u32 %v1677, %v1680
      %v1682 = vrot.slane %v1681, 4
      %v1684 = vshll.u32 %v1655, 16
      %v1686 = vrot.slane %v1684, 5
      %v1687 = vsel %vm548, %v1682, %v1686
      %v1689 = vshrl.u32 %v1656, 16
      %v1691 = vrot.slane %v1689, 4
      %v1692 = vshll.u32 %v1656, 16
      %v1694 = vrot.slane %v1692, 5
      %v1695 = vor.u32 %v1691, %v1694
      %v1696 = vrot.slane %v1695, 4
      %v1698 = vshll.u32 %v1657, 16
      %v1700 = vrot.slane %v1698, 5
      %v1701 = vsel %vm548, %v1696, %v1700
      %v1703 = vshrl.u32 %v1658, 16
      %v1705 = vrot.slane %v1703, 4
      %v1706 = vshll.u32 %v1658, 16
      %v1708 = vrot.slane %v1706, 5
      %v1709 = vor.u32 %v1705, %v1708
      %v1710 = vrot.slane %v1709, 4
      %v1712 = vshll.u32 %v1659, 16
      %v1714 = vrot.slane %v1712, 5
      %v1715 = vsel %vm548, %v1710, %v1714
      %v1717 = vshrl.u32 %v1660, 16
      %v1719 = vrot.slane %v1717, 4
      %v1720 = vshll.u32 %v1660, 16
      %v1722 = vrot.slane %v1720, 5
      %v1723 = vor.u32 %v1719, %v1722
      %v1724 = vrot.slane %v1723, 4
      %v1726 = vshll.u32 %v1661, 16
      %v1728 = vrot.slane %v1726, 5
      %v1729 = vsel %vm548, %v1724, %v1728
      %v1731 = vshrl.u32 %v1662, 16
      %v1733 = vrot.slane %v1731, 4
      %v1734 = vshll.u32 %v1662, 16
      %v1736 = vrot.slane %v1734, 5
      %v1737 = vor.u32 %v1733, %v1736
      %v1738 = vrot.slane %v1737, 4
      %v1740 = vshll.u32 %v1663, 16
      %v1742 = vrot.slane %v1740, 5
      %v1743 = vsel %vm548, %v1738, %v1742
      %v1745 = vshrl.u32 %v1664, 16
      %v1747 = vrot.slane %v1745, 4
      %v1748 = vshll.u32 %v1664, 16
      %v1750 = vrot.slane %v1748, 5
      %v1751 = vor.u32 %v1747, %v1750
      %v1752 = vrot.slane %v1751, 4
      %v1754 = vshll.u32 %v1665, 16
      %v1756 = vrot.slane %v1754, 5
      %v1757 = vsel %vm548, %v1752, %v1756
      %v1759 = vshrl.u32 %v1666, 16
      %v1761 = vrot.slane %v1759, 4
      %v1762 = vshll.u32 %v1666, 16
      %v1764 = vrot.slane %v1762, 5
      %v1765 = vor.u32 %v1761, %v1764
      %v1766 = vrot.slane %v1765, 4
      %v1768 = vshll.u32 %v1667, 16
      %v1770 = vrot.slane %v1768, 5
      %v1771 = vsel %vm548, %v1766, %v1770
      %v1773 = vshrl.u32 %v1668, 16
      %v1775 = vrot.slane %v1773, 4
      %v1776 = vshll.u32 %v1668, 16
      %v1778 = vrot.slane %v1776, 5
      %v1779 = vor.u32 %v1775, %v1778
      %v1780 = vrot.slane %v1779, 4
      %v1782 = vshll.u32 %v1669, 16
      %v1784 = vrot.slane %v1782, 5
      %v1785 = vsel %vm548, %v1780, %v1784
      %v1787 = vshrl.u32 %v1670, 16
      %v1789 = vrot.slane %v1787, 4
      %v1790 = vshll.u32 %v1670, 16
      %v1792 = vrot.slane %v1790, 5
      %v1793 = vor.u32 %v1789, %v1792
      %v1794 = vrot.slane %v1793, 4
      %v1796 = vshll.u32 %v1671, 16
      %v1798 = vrot.slane %v1796, 5
      %v1799 = vsel %vm548, %v1794, %v1798
      %v1801 = vshrl.u32 %v1672, 16
      %v1803 = vrot.slane %v1801, 4
      %v1804 = vshll.u32 %v1672, 16
      %v1806 = vrot.slane %v1804, 5
      %v1807 = vor.u32 %v1803, %v1806
      %v1808 = vrot.slane %v1807, 4
      %v1810 = vshll.u32 %v1673, 16
      %v1812 = vrot.slane %v1810, 5
      %v1813 = vsel %vm548, %v1808, %v1812
      %s1814 = scalar_lea.vmem %s1, 28
      %v1815 = vld [vmem:[%s1814] sm:$0xf]
      %v1816 = vunpack.c.l.b16 %v1687
      %v1817 = vunpack.c.l.b16 %v1701
      %v1818 = vunpack.c.l.b16 %v1715
      %v1819 = vunpack.c.l.b16 %v1729
      %v1820 = vunpack.c.l.b16 %v1743
      %v1821 = vunpack.c.l.b16 %v1757
      %v1822 = vunpack.c.l.b16 %v1771
      %v1823 = vunpack.c.l.b16 %v1785
      %v1824 = vunpack.c.l.b16 %v1799
      %v1825 = vunpack.c.l.b16 %v1813
      %v1826 = vpack.c.b16 %v1817, %v1816
      %v1827 = vpack.c.b16 %v1819, %v1818
      %v1828 = vpack.c.b16 %v1821, %v1820
      %v1829 = vpack.c.b16 %v1823, %v1822
      %v1830 = vpack.c.b16 %v1825, %v1824
      %v1832 = vsel %vm462, %v1826, 0
      %v1835 = vsel %vm462, %v1827, 0
      %v1838 = vsel %vm462, %v1828, 0
      %v1841 = vsel %vm462, %v1829, 0
      %v1844 = vsel %vm462, %v1830, 0
      %v1847 = vsel %vm478, %v1815, 0
      %1849 = vmatpush.bf16.msra.mxu0 0
      %1850 = vmatpush.bf16.msra.mxu0 0
      %1851 = vmatpush.bf16.msra.mxu0 0
      %1852 = vmatpush.bf16.msra.mxu0 0
      %1853 = vmatpush.bf16.msra.mxu0 0
      %1854 = vmatpush.bf16.msra.mxu0 0
      %1855 = vmatpush.bf16.msra.mxu0 0
      %1856 = vmatpush.bf16.msra.mxu0 %v1847
      %1857 = vmatmul.bf16.gmra.mxu0 %v1832
      %v1858 = vpop.f32.mrf.mxu0
      %v1859 = vadd.f32 0.0, %v1858
      %v1860 = vpop.f32.mrf.mxu0
      %v1861 = vadd.f32 0.0, %v1860
      %1862 = vmatmul.bf16.gmra.mxu0 %v1835
      %v1863 = vpop.f32.mrf.mxu0
      %v1864 = vadd.f32 0.0, %v1863
      %v1865 = vpop.f32.mrf.mxu0
      %v1866 = vadd.f32 0.0, %v1865
      %1867 = vmatmul.bf16.gmra.mxu0 %v1838
      %v1868 = vpop.f32.mrf.mxu0
      %v1869 = vadd.f32 0.0, %v1868
      %v1870 = vpop.f32.mrf.mxu0
      %v1871 = vadd.f32 0.0, %v1870
      %1872 = vmatmul.bf16.gmra.mxu0 %v1841
      %v1873 = vpop.f32.mrf.mxu0
      %v1874 = vadd.f32 0.0, %v1873
      %v1875 = vpop.f32.mrf.mxu0
      %v1876 = vadd.f32 0.0, %v1875
      %1877 = vmatmul.bf16.gmra.mxu0 %v1844
      %v1878 = vpop.f32.mrf.mxu0
      %v1879 = vadd.f32 0.0, %v1878
      %v1880 = vpop.f32.mrf.mxu0
      %v1881 = vadd.f32 0.0, %v1880
      %1882 = vdwg.mxu0
      %v1883 = vld [vmem:[#allocation4] sm:$0xff]
      %v1884 = vld [vmem:[#allocation4 + $0x8] sm:$0xff]
      %v1885 = vld [vmem:[#allocation4 + $0x10] sm:$0xff]
      %v1886 = vld [vmem:[#allocation4 + $0x18] sm:$0xff]
      %v1887 = vld [vmem:[#allocation4 + $0x20] sm:$0xff]
      %v1888 = vld [vmem:[#allocation4 + $0x28] sm:$0xff]
      %v1889 = vld [vmem:[#allocation4 + $0x30] sm:$0xff]
      %v1890 = vld [vmem:[#allocation4 + $0x38] sm:$0xff]
      %v1891 = vld [vmem:[#allocation4 + $0x40] sm:$0xff]
      %v1892 = vld [vmem:[#allocation4 + $0x48] sm:$0xff]
      %v1893 = vadd.f32 %v1883, %v1859
      %v1894 = vadd.f32 %v1884, %v1861
      %v1895 = vadd.f32 %v1885, %v1864
      %v1896 = vadd.f32 %v1886, %v1866
      %v1897 = vadd.f32 %v1887, %v1869
      %v1898 = vadd.f32 %v1888, %v1871
      %v1899 = vadd.f32 %v1889, %v1874
      %v1900 = vadd.f32 %v1890, %v1876
      %v1901 = vadd.f32 %v1891, %v1879
      %v1902 = vadd.f32 %v1892, %v1881
      %1903 = vst.msk [vmem:[#allocation4] sm:$0xff] %vm462, %v1893
      %1904 = vst.msk [vmem:[#allocation4 + $0x8] sm:$0xff] %vm462, %v1894
      %1905 = vst.msk [vmem:[#allocation4 + $0x10] sm:$0xff] %vm462, %v1895
      %1906 = vst.msk [vmem:[#allocation4 + $0x18] sm:$0xff] %vm462, %v1896
      %1907 = vst.msk [vmem:[#allocation4 + $0x20] sm:$0xff] %vm462, %v1897
      %1908 = vst.msk [vmem:[#allocation4 + $0x28] sm:$0xff] %vm462, %v1898
      %1909 = vst.msk [vmem:[#allocation4 + $0x30] sm:$0xff] %vm462, %v1899
      %1910 = vst.msk [vmem:[#allocation4 + $0x38] sm:$0xff] %vm462, %v1900
      %1911 = vst.msk [vmem:[#allocation4 + $0x40] sm:$0xff] %vm462, %v1901
      %1912 = vst.msk [vmem:[#allocation4 + $0x48] sm:$0xff] %vm462, %v1902
      %v1913 = vld [vmem:[%s1534] sm:$0xe]
      %v1914 = vld [vmem:[%s1534 + $0x4] sm:$0x1]
      %v1915 = vld [vmem:[%s1534 + $0x8] sm:$0xe]
      %v1916 = vld [vmem:[%s1534 + $0xc] sm:$0x1]
      %v1917 = vld [vmem:[%s1534 + $0x10] sm:$0xe]
      %v1918 = vld [vmem:[%s1534 + $0x14] sm:$0x1]
      %v1919 = vld [vmem:[%s1534 + $0x18] sm:$0xe]
      %v1920 = vld [vmem:[%s1534 + $0x1c] sm:$0x1]
      %v1921 = vld [vmem:[%s1534 + $0x20] sm:$0xe]
      %v1922 = vld [vmem:[%s1534 + $0x24] sm:$0x1]
      %v1923 = vld [vmem:[%s1534 + $0x28] sm:$0xe]
      %v1924 = vld [vmem:[%s1534 + $0x2c] sm:$0x1]
      %v1925 = vld [vmem:[%s1534 + $0x30] sm:$0xe]
      %v1926 = vld [vmem:[%s1534 + $0x34] sm:$0x1]
      %v1927 = vld [vmem:[%s1534 + $0x38] sm:$0xe]
      %v1928 = vld [vmem:[%s1534 + $0x3c] sm:$0x1]
      %v1929 = vld [vmem:[%s1534 + $0x40] sm:$0xe]
      %v1930 = vld [vmem:[%s1534 + $0x44] sm:$0x1]
      %v1931 = vld [vmem:[%s1534 + $0x48] sm:$0xe]
      %v1932 = vld [vmem:[%s1534 + $0x4c] sm:$0x1]
      %v1953 = vrot.slane %v1913, 5
      %v1954 = vrot.slane %v1953, 4
      %v1955 = vrot.slane %v1914, 5
      %v1956 = vsel %vm830, %v1954, %v1955
      %v1957 = vrot.slane %v1915, 5
      %v1958 = vrot.slane %v1957, 4
      %v1959 = vrot.slane %v1916, 5
      %v1960 = vsel %vm830, %v1958, %v1959
      %v1961 = vrot.slane %v1917, 5
      %v1962 = vrot.slane %v1961, 4
      %v1963 = vrot.slane %v1918, 5
      %v1964 = vsel %vm830, %v1962, %v1963
      %v1965 = vrot.slane %v1919, 5
      %v1966 = vrot.slane %v1965, 4
      %v1967 = vrot.slane %v1920, 5
      %v1968 = vsel %vm830, %v1966, %v1967
      %v1969 = vrot.slane %v1921, 5
      %v1970 = vrot.slane %v1969, 4
      %v1971 = vrot.slane %v1922, 5
      %v1972 = vsel %vm830, %v1970, %v1971
      %v1973 = vrot.slane %v1923, 5
      %v1974 = vrot.slane %v1973, 4
      %v1975 = vrot.slane %v1924, 5
      %v1976 = vsel %vm830, %v1974, %v1975
      %v1977 = vrot.slane %v1925, 5
      %v1978 = vrot.slane %v1977, 4
      %v1979 = vrot.slane %v1926, 5
      %v1980 = vsel %vm830, %v1978, %v1979
      %v1981 = vrot.slane %v1927, 5
      %v1982 = vrot.slane %v1981, 4
      %v1983 = vrot.slane %v1928, 5
      %v1984 = vsel %vm830, %v1982, %v1983
      %v1985 = vrot.slane %v1929, 5
      %v1986 = vrot.slane %v1985, 4
      %v1987 = vrot.slane %v1930, 5
      %v1988 = vsel %vm830, %v1986, %v1987
      %v1989 = vrot.slane %v1931, 5
      %v1990 = vrot.slane %v1989, 4
      %v1991 = vrot.slane %v1932, 5
      %v1992 = vsel %vm830, %v1990, %v1991
      %s1993 = scalar_lea.vmem %s1, 32
      %v1994 = vld [vmem:[%s1993] sm:$0xf]
      %v1995 = vunpack.c.l.b16 %v1956
      %v1996 = vunpack.c.l.b16 %v1960
      %v1997 = vunpack.c.l.b16 %v1964
      %v1998 = vunpack.c.l.b16 %v1968
      %v1999 = vunpack.c.l.b16 %v1972
      %v2000 = vunpack.c.l.b16 %v1976
      %v2001 = vunpack.c.l.b16 %v1980
      %v2002 = vunpack.c.l.b16 %v1984
      %v2003 = vunpack.c.l.b16 %v1988
      %v2004 = vunpack.c.l.b16 %v1992
      %v2005 = vpack.c.b16 %v1996, %v1995
      %v2006 = vpack.c.b16 %v1998, %v1997
      %v2007 = vpack.c.b16 %v2000, %v1999
      %v2008 = vpack.c.b16 %v2002, %v2001
      %v2009 = vpack.c.b16 %v2004, %v2003
      %v2011 = vsel %vm462, %v2005, 0
      %v2014 = vsel %vm462, %v2006, 0
      %v2017 = vsel %vm462, %v2007, 0
      %v2020 = vsel %vm462, %v2008, 0
      %v2023 = vsel %vm462, %v2009, 0
      %v2026 = vsel %vm478, %v1994, 0
      %2028 = vmatpush.bf16.msra.mxu0 0
      %2029 = vmatpush.bf16.msra.mxu0 0
      %2030 = vmatpush.bf16.msra.mxu0 0
      %2031 = vmatpush.bf16.msra.mxu0 0
      %2032 = vmatpush.bf16.msra.mxu0 0
      %2033 = vmatpush.bf16.msra.mxu0 0
      %2034 = vmatpush.bf16.msra.mxu0 0
      %2035 = vmatpush.bf16.msra.mxu0 %v2026
      %2036 = vmatmul.bf16.gmra.mxu0 %v2011
      %v2037 = vpop.f32.mrf.mxu0
      %v2038 = vadd.f32 0.0, %v2037
      %v2039 = vpop.f32.mrf.mxu0
      %v2040 = vadd.f32 0.0, %v2039
      %2041 = vmatmul.bf16.gmra.mxu0 %v2014
      %v2042 = vpop.f32.mrf.mxu0
      %v2043 = vadd.f32 0.0, %v2042
      %v2044 = vpop.f32.mrf.mxu0
      %v2045 = vadd.f32 0.0, %v2044
      %2046 = vmatmul.bf16.gmra.mxu0 %v2017
      %v2047 = vpop.f32.mrf.mxu0
      %v2048 = vadd.f32 0.0, %v2047
      %v2049 = vpop.f32.mrf.mxu0
      %v2050 = vadd.f32 0.0, %v2049
      %2051 = vmatmul.bf16.gmra.mxu0 %v2020
      %v2052 = vpop.f32.mrf.mxu0
      %v2053 = vadd.f32 0.0, %v2052
      %v2054 = vpop.f32.mrf.mxu0
      %v2055 = vadd.f32 0.0, %v2054
      %2056 = vmatmul.bf16.gmra.mxu0 %v2023
      %v2057 = vpop.f32.mrf.mxu0
      %v2058 = vadd.f32 0.0, %v2057
      %v2059 = vpop.f32.mrf.mxu0
      %v2060 = vadd.f32 0.0, %v2059
      %2061 = vdwg.mxu0
      %v2062 = vld [vmem:[#allocation4] sm:$0xff]
      %v2063 = vld [vmem:[#allocation4 + $0x8] sm:$0xff]
      %v2064 = vld [vmem:[#allocation4 + $0x10] sm:$0xff]
      %v2065 = vld [vmem:[#allocation4 + $0x18] sm:$0xff]
      %v2066 = vld [vmem:[#allocation4 + $0x20] sm:$0xff]
      %v2067 = vld [vmem:[#allocation4 + $0x28] sm:$0xff]
      %v2068 = vld [vmem:[#allocation4 + $0x30] sm:$0xff]
      %v2069 = vld [vmem:[#allocation4 + $0x38] sm:$0xff]
      %v2070 = vld [vmem:[#allocation4 + $0x40] sm:$0xff]
      %v2071 = vld [vmem:[#allocation4 + $0x48] sm:$0xff]
      %v2072 = vadd.f32 %v2062, %v2038
      %v2073 = vadd.f32 %v2063, %v2040
      %v2074 = vadd.f32 %v2064, %v2043
      %v2075 = vadd.f32 %v2065, %v2045
      %v2076 = vadd.f32 %v2066, %v2048
      %v2077 = vadd.f32 %v2067, %v2050
      %v2078 = vadd.f32 %v2068, %v2053
      %v2079 = vadd.f32 %v2069, %v2055
      %v2080 = vadd.f32 %v2070, %v2058
      %v2081 = vadd.f32 %v2071, %v2060
      %2082 = vst.msk [vmem:[#allocation4] sm:$0xff] %vm462, %v2072
      %2083 = vst.msk [vmem:[#allocation4 + $0x8] sm:$0xff] %vm462, %v2073
      %2084 = vst.msk [vmem:[#allocation4 + $0x10] sm:$0xff] %vm462, %v2074
      %2085 = vst.msk [vmem:[#allocation4 + $0x18] sm:$0xff] %vm462, %v2075
      %2086 = vst.msk [vmem:[#allocation4 + $0x20] sm:$0xff] %vm462, %v2076
      %2087 = vst.msk [vmem:[#allocation4 + $0x28] sm:$0xff] %vm462, %v2077
      %2088 = vst.msk [vmem:[#allocation4 + $0x30] sm:$0xff] %vm462, %v2078
      %2089 = vst.msk [vmem:[#allocation4 + $0x38] sm:$0xff] %vm462, %v2079
      %2090 = vst.msk [vmem:[#allocation4 + $0x40] sm:$0xff] %vm462, %v2080
      %2091 = vst.msk [vmem:[#allocation4 + $0x48] sm:$0xff] %vm462, %v2081
      %v2092 = vld [vmem:[#allocation4] sm:$0xff]
      %v2093 = vld [vmem:[#allocation4 + $0x8] sm:$0xff]
      %v2094 = vld [vmem:[#allocation4 + $0x10] sm:$0xff]
      %v2095 = vld [vmem:[#allocation4 + $0x18] sm:$0xff]
      %v2096 = vld [vmem:[#allocation4 + $0x20] sm:$0xff]
      %v2097 = vld [vmem:[#allocation4 + $0x28] sm:$0xff]
      %v2098 = vld [vmem:[#allocation4 + $0x30] sm:$0xff]
      %v2099 = vld [vmem:[#allocation4 + $0x38] sm:$0xff]
      %v2100 = vld [vmem:[#allocation4 + $0x40] sm:$0xff]
      %v2101 = vld [vmem:[#allocation4 + $0x48] sm:$0xff]
      %v2102 = vld [vmem:[%s2] sm:$0x1]
      %v2104 = vperm.slane %v2102, 0
      %v2106 = vadd.f32 %v2092, %v2104
      %v2107 = vadd.f32 %v2093, %v2104
      %v2108 = vadd.f32 %v2094, %v2104
      %v2109 = vadd.f32 %v2095, %v2104
      %v2110 = vadd.f32 %v2096, %v2104
      %v2111 = vadd.f32 %v2097, %v2104
      %v2112 = vadd.f32 %v2098, %v2104
      %v2113 = vadd.f32 %v2099, %v2104
      %v2114 = vadd.f32 %v2100, %v2104
      %v2115 = vadd.f32 %v2101, %v2104
      %v2116 = vmax.f32 %v2106, 0.0
      %v2117 = vmax.f32 %v2107, 0.0
      %v2118 = vmax.f32 %v2108, 0.0
      %v2119 = vmax.f32 %v2109, 0.0
      %v2120 = vmax.f32 %v2110, 0.0
      %v2121 = vmax.f32 %v2111, 0.0
      %v2122 = vmax.f32 %v2112, 0.0
      %v2123 = vmax.f32 %v2113, 0.0
      %v2124 = vmax.f32 %v2114, 0.0
      %v2125 = vmax.f32 %v2115, 0.0
      %vm2126 = vcmask 57344
      %vm2127 = vsmask.f32 256
      %vm2128 = vmand %vm2126, %vm2127
      %v2129 = vld [vmem:[#allocation3] sm:$0x1]
      %v2130 = vsel %vm2128, 0, %v2129
      %2131 = vst [vmem:[#allocation3] sm:$0x1] %v2130
      %v2132 = vld [vmem:[#allocation3 + $0x8] sm:$0x1]
      %v2133 = vsel %vm2128, 0, %v2132
      %2134 = vst [vmem:[#allocation3 + $0x8] sm:$0x1] %v2133
      %v2135 = vld [vmem:[#allocation3 + $0x10] sm:$0x1]
      %v2136 = vsel %vm2128, 0, %v2135
      %2137 = vst [vmem:[#allocation3 + $0x10] sm:$0x1] %v2136
      %v2138 = vld [vmem:[#allocation3 + $0x18] sm:$0x1]
      %v2139 = vsel %vm2128, 0, %v2138
      %2140 = vst [vmem:[#allocation3 + $0x18] sm:$0x1] %v2139
      %v2141 = vld [vmem:[#allocation3 + $0x20] sm:$0x1]
      %v2142 = vsel %vm2128, 0, %v2141
      %2143 = vst [vmem:[#allocation3 + $0x20] sm:$0x1] %v2142
      %v2144 = vld [vmem:[#allocation3 + $0x28] sm:$0x1]
      %v2145 = vsel %vm2128, 0, %v2144
      %2146 = vst [vmem:[#allocation3 + $0x28] sm:$0x1] %v2145
      %v2147 = vld [vmem:[#allocation3 + $0x30] sm:$0x1]
      %v2148 = vsel %vm2128, 0, %v2147
      %2149 = vst [vmem:[#allocation3 + $0x30] sm:$0x1] %v2148
      %v2150 = vld [vmem:[#allocation3 + $0x38] sm:$0x1]
      %v2151 = vsel %vm2128, 0, %v2150
      %2152 = vst [vmem:[#allocation3 + $0x38] sm:$0x1] %v2151
      %v2153 = vld [vmem:[#allocation3 + $0x40] sm:$0x1]
      %v2154 = vsel %vm2128, 0, %v2153
      %2155 = vst [vmem:[#allocation3 + $0x40] sm:$0x1] %v2154
      %v2156 = vld [vmem:[#allocation3 + $0x48] sm:$0x1]
      %v2157 = vsel %vm2128, 0, %v2156
      %2158 = vst [vmem:[#allocation3 + $0x48] sm:$0x1] %v2157
      %vm2159 = vsmask.f32 7938
      %vm2160 = vmand %vm2126, %vm2159
      %v2161 = vld [vmem:[#allocation3 + $0x4] sm:$0x1]
      %v2162 = vsel %vm2160, 0, %v2161
      %2163 = vst [vmem:[#allocation3 + $0x4] sm:$0x1] %v2162
      %v2164 = vld [vmem:[#allocation3 + $0xc] sm:$0x1]
      %v2165 = vsel %vm2160, 0, %v2164
      %2166 = vst [vmem:[#allocation3 + $0xc] sm:$0x1] %v2165
      %v2167 = vld [vmem:[#allocation3 + $0x14] sm:$0x1]
      %v2168 = vsel %vm2160, 0, %v2167
      %2169 = vst [vmem:[#allocation3 + $0x14] sm:$0x1] %v2168
      %v2170 = vld [vmem:[#allocation3 + $0x1c] sm:$0x1]
      %v2171 = vsel %vm2160, 0, %v2170
      %2172 = vst [vmem:[#allocation3 + $0x1c] sm:$0x1] %v2171
      %v2173 = vld [vmem:[#allocation3 + $0x24] sm:$0x1]
      %v2174 = vsel %vm2160, 0, %v2173
      %2175 = vst [vmem:[#allocation3 + $0x24] sm:$0x1] %v2174
      %v2176 = vld [vmem:[#allocation3 + $0x2c] sm:$0x1]
      %v2177 = vsel %vm2160, 0, %v2176
      %2178 = vst [vmem:[#allocation3 + $0x2c] sm:$0x1] %v2177
      %v2179 = vld [vmem:[#allocation3 + $0x34] sm:$0x1]
      %v2180 = vsel %vm2160, 0, %v2179
      %2181 = vst [vmem:[#allocation3 + $0x34] sm:$0x1] %v2180
      %v2182 = vld [vmem:[#allocation3 + $0x3c] sm:$0x1]
      %v2183 = vsel %vm2160, 0, %v2182
      %2184 = vst [vmem:[#allocation3 + $0x3c] sm:$0x1] %v2183
      %v2185 = vld [vmem:[#allocation3 + $0x44] sm:$0x1]
      %v2186 = vsel %vm2160, 0, %v2185
      %2187 = vst [vmem:[#allocation3 + $0x44] sm:$0x1] %v2186
      %v2188 = vld [vmem:[#allocation3 + $0x4c] sm:$0x1]
      %v2189 = vsel %vm2160, 0, %v2188
      %2190 = vst [vmem:[#allocation3 + $0x4c] sm:$0x1] %v2189
      %v2191 = vpack.c.bf16 %v2116, %v2116
      %v2192 = vpack.c.bf16 %v2117, %v2117
      %v2193 = vpack.c.bf16 %v2118, %v2118
      %v2194 = vpack.c.bf16 %v2119, %v2119
      %v2195 = vpack.c.bf16 %v2120, %v2120
      %v2196 = vpack.c.bf16 %v2121, %v2121
      %v2197 = vpack.c.bf16 %v2122, %v2122
      %v2198 = vpack.c.bf16 %v2123, %v2123
      %v2199 = vpack.c.bf16 %v2124, %v2124
      %v2200 = vpack.c.bf16 %v2125, %v2125
      %v2202 = vshrl.u32 %v2191, 16
      %v2204 = vrot.slane %v2202, 7
      %v2205 = vshll.u32 %v2191, 16
      %v2207 = vor.u32 %v2204, %v2205
      %v2208 = vrot.slane %v2204, 4
      %v2210 = vshrl.u32 %v2192, 16
      %v2212 = vrot.slane %v2210, 7
      %v2213 = vshll.u32 %v2192, 16
      %v2215 = vor.u32 %v2212, %v2213
      %v2216 = vrot.slane %v2212, 4
      %v2218 = vshrl.u32 %v2193, 16
      %v2220 = vrot.slane %v2218, 7
      %v2221 = vshll.u32 %v2193, 16
      %v2223 = vor.u32 %v2220, %v2221
      %v2224 = vrot.slane %v2220, 4
      %v2226 = vshrl.u32 %v2194, 16
      %v2228 = vrot.slane %v2226, 7
      %v2229 = vshll.u32 %v2194, 16
      %v2231 = vor.u32 %v2228, %v2229
      %v2232 = vrot.slane %v2228, 4
      %v2234 = vshrl.u32 %v2195, 16
      %v2236 = vrot.slane %v2234, 7
      %v2237 = vshll.u32 %v2195, 16
      %v2239 = vor.u32 %v2236, %v2237
      %v2240 = vrot.slane %v2236, 4
      %v2242 = vshrl.u32 %v2196, 16
      %v2244 = vrot.slane %v2242, 7
      %v2245 = vshll.u32 %v2196, 16
      %v2247 = vor.u32 %v2244, %v2245
      %v2248 = vrot.slane %v2244, 4
      %v2250 = vshrl.u32 %v2197, 16
      %v2252 = vrot.slane %v2250, 7
      %v2253 = vshll.u32 %v2197, 16
      %v2255 = vor.u32 %v2252, %v2253
      %v2256 = vrot.slane %v2252, 4
      %v2258 = vshrl.u32 %v2198, 16
      %v2260 = vrot.slane %v2258, 7
      %v2261 = vshll.u32 %v2198, 16
      %v2263 = vor.u32 %v2260, %v2261
      %v2264 = vrot.slane %v2260, 4
      %v2266 = vshrl.u32 %v2199, 16
      %v2268 = vrot.slane %v2266, 7
      %v2269 = vshll.u32 %v2199, 16
      %v2271 = vor.u32 %v2268, %v2269
      %v2272 = vrot.slane %v2268, 4
      %v2274 = vshrl.u32 %v2200, 16
      %v2276 = vrot.slane %v2274, 7
      %v2277 = vshll.u32 %v2200, 16
      %v2279 = vor.u32 %v2276, %v2277
      %v2280 = vrot.slane %v2276, 4
      %vm2301 = vcmask 60416
      %vm2302 = vmand %vm2301, %vm2159
      %v2303 = vld [vmem:[#allocation3] sm:$0xf]
      %v2304 = vsel %vm2302, %v2207, %v2303
      %2305 = vst [vmem:[#allocation3] sm:$0xf] %v2304
      %v2306 = vld [vmem:[#allocation3 + $0x4] sm:$0x1]
      %v2307 = vsel %vm2128, %v2208, %v2306
      %2308 = vst [vmem:[#allocation3 + $0x4] sm:$0x1] %v2307
      %v2309 = vld [vmem:[#allocation3 + $0x8] sm:$0xf]
      %v2310 = vsel %vm2302, %v2215, %v2309
      %2311 = vst [vmem:[#allocation3 + $0x8] sm:$0xf] %v2310
      %v2312 = vld [vmem:[#allocation3 + $0xc] sm:$0x1]
      %v2313 = vsel %vm2128, %v2216, %v2312
      %2314 = vst [vmem:[#allocation3 + $0xc] sm:$0x1] %v2313
      %v2315 = vld [vmem:[#allocation3 + $0x10] sm:$0xf]
      %v2316 = vsel %vm2302, %v2223, %v2315
      %2317 = vst [vmem:[#allocation3 + $0x10] sm:$0xf] %v2316
      %v2318 = vld [vmem:[#allocation3 + $0x14] sm:$0x1]
      %v2319 = vsel %vm2128, %v2224, %v2318
      %2320 = vst [vmem:[#allocation3 + $0x14] sm:$0x1] %v2319
      %v2321 = vld [vmem:[#allocation3 + $0x18] sm:$0xf]
      %v2322 = vsel %vm2302, %v2231, %v2321
      %2323 = vst [vmem:[#allocation3 + $0x18] sm:$0xf] %v2322
      %v2324 = vld [vmem:[#allocation3 + $0x1c] sm:$0x1]
      %v2325 = vsel %vm2128, %v2232, %v2324
      %2326 = vst [vmem:[#allocation3 + $0x1c] sm:$0x1] %v2325
      %v2327 = vld [vmem:[#allocation3 + $0x20] sm:$0xf]
      %v2328 = vsel %vm2302, %v2239, %v2327
      %2329 = vst [vmem:[#allocation3 + $0x20] sm:$0xf] %v2328
      %v2330 = vld [vmem:[#allocation3 + $0x24] sm:$0x1]
      %v2331 = vsel %vm2128, %v2240, %v2330
      %2332 = vst [vmem:[#allocation3 + $0x24] sm:$0x1] %v2331
      %v2333 = vld [vmem:[#allocation3 + $0x28] sm:$0xf]
      %v2334 = vsel %vm2302, %v2247, %v2333
      %2335 = vst [vmem:[#allocation3 + $0x28] sm:$0xf] %v2334
      %v2336 = vld [vmem:[#allocation3 + $0x2c] sm:$0x1]
      %v2337 = vsel %vm2128, %v2248, %v2336
      %2338 = vst [vmem:[#allocation3 + $0x2c] sm:$0x1] %v2337
      %v2339 = vld [vmem:[#allocation3 + $0x30] sm:$0xf]
      %v2340 = vsel %vm2302, %v2255, %v2339
      %2341 = vst [vmem:[#allocation3 + $0x30] sm:$0xf] %v2340
      %v2342 = vld [vmem:[#allocation3 + $0x34] sm:$0x1]
      %v2343 = vsel %vm2128, %v2256, %v2342
      %2344 = vst [vmem:[#allocation3 + $0x34] sm:$0x1] %v2343
      %v2345 = vld [vmem:[#allocation3 + $0x38] sm:$0xf]
      %v2346 = vsel %vm2302, %v2263, %v2345
      %2347 = vst [vmem:[#allocation3 + $0x38] sm:$0xf] %v2346
      %v2348 = vld [vmem:[#allocation3 + $0x3c] sm:$0x1]
      %v2349 = vsel %vm2128, %v2264, %v2348
      %2350 = vst [vmem:[#allocation3 + $0x3c] sm:$0x1] %v2349
      %v2351 = vld [vmem:[#allocation3 + $0x40] sm:$0xf]
      %v2352 = vsel %vm2302, %v2271, %v2351
      %2353 = vst [vmem:[#allocation3 + $0x40] sm:$0xf] %v2352
      %v2354 = vld [vmem:[#allocation3 + $0x44] sm:$0x1]
      %v2355 = vsel %vm2128, %v2272, %v2354
      %2356 = vst [vmem:[#allocation3 + $0x44] sm:$0x1] %v2355
      %v2357 = vld [vmem:[#allocation3 + $0x48] sm:$0xf]
      %v2358 = vsel %vm2302, %v2279, %v2357
      %2359 = vst [vmem:[#allocation3 + $0x48] sm:$0xf] %v2358
      %v2360 = vld [vmem:[#allocation3 + $0x4c] sm:$0x1]
      %v2361 = vsel %vm2128, %v2280, %v2360
      %2362 = vst [vmem:[#allocation3 + $0x4c] sm:$0x1] %v2361
      // Predicated region
      $region45: #{deblur_down_forward.3} parent=39 // pred_check
        %p2363 = pneg %p250
      $region46: #{deblur_down_forward.3} parent=39 // pred_check_branch
        %2365 = sbr.rel (%p2363) target = $region48
      $region47: #{deblur_down_forward.3} parent=39 // pred_region
        %vm2366 = vcmask 60416
        %2367 = vst.msk [vmem:[#allocation3] sm:$0xf] %vm2366, 0
        %vm2368 = vcmask 57344
        %2369 = vst.msk [vmem:[#allocation3 + $0x4] sm:$0x1] %vm2368, 0
        %s2370 = scalar_lea.vmem [#allocation3], 72
        %2371 = vst.msk [vmem:[%s2370] sm:$0xf] %vm2366, 0
        %2372 = vst.msk [vmem:[%s2370 + $0x4] sm:$0x1] %vm2368, 0
      $region48: #{deblur_down_forward.3} parent=39 // pred_fallthru
        _
      %v2373 = vld [vmem:[#allocation3] sm:$0xf]
      %v2374 = vld [vmem:[#allocation3 + $0x8] sm:$0xf]
      %v2375 = vld [vmem:[#allocation3 + $0x10] sm:$0xf]
      %v2376 = vld [vmem:[#allocation3 + $0x18] sm:$0xf]
      %v2377 = vld [vmem:[#allocation3 + $0x20] sm:$0xf]
      %v2378 = vld [vmem:[#allocation3 + $0x28] sm:$0xf]
      %v2379 = vld [vmem:[#allocation3 + $0x30] sm:$0xf]
      %v2380 = vld [vmem:[#allocation3 + $0x38] sm:$0xf]
      %v2381 = vld [vmem:[%s3] sm:$0xf]
      %v2390 = vunpack.c.l.b16 %v2373
      %v2391 = vunpack.c.l.b16 %v2374
      %v2392 = vunpack.c.l.b16 %v2375
      %v2393 = vunpack.c.l.b16 %v2376
      %v2394 = vunpack.c.l.b16 %v2377
      %v2395 = vunpack.c.l.b16 %v2378
      %v2396 = vunpack.c.l.b16 %v2379
      %v2397 = vunpack.c.l.b16 %v2380
      %v2398 = vpack.c.b16 %v2391, %v2390
      %v2399 = vpack.c.b16 %v2393, %v2392
      %v2400 = vpack.c.b16 %v2395, %v2394
      %v2401 = vpack.c.b16 %v2397, %v2396
      %v2403 = vsel %vm462, %v2398, 0
      %v2406 = vsel %vm462, %v2399, 0
      %v2409 = vsel %vm462, %v2400, 0
      %v2412 = vsel %vm462, %v2401, 0
      %v2415 = vsel %vm478, %v2381, 0
      %2417 = vmatpush.bf16.msra.mxu0 0
      %2418 = vmatpush.bf16.msra.mxu0 0
      %2419 = vmatpush.bf16.msra.mxu0 0
      %2420 = vmatpush.bf16.msra.mxu0 0
      %2421 = vmatpush.bf16.msra.mxu0 0
      %2422 = vmatpush.bf16.msra.mxu0 0
      %2423 = vmatpush.bf16.msra.mxu0 0
      %2424 = vmatpush.bf16.msra.mxu0 %v2415
      %2425 = vmatmul.bf16.gmra.mxu0 %v2403
      %v2426 = vpop.f32.mrf.mxu0
      %v2427 = vadd.f32 0.0, %v2426
      %v2428 = vpop.f32.mrf.mxu0
      %v2429 = vadd.f32 0.0, %v2428
      %2430 = vmatmul.bf16.gmra.mxu0 %v2406
      %v2431 = vpop.f32.mrf.mxu0
      %v2432 = vadd.f32 0.0, %v2431
      %v2433 = vpop.f32.mrf.mxu0
      %v2434 = vadd.f32 0.0, %v2433
      %2435 = vmatmul.bf16.gmra.mxu0 %v2409
      %v2436 = vpop.f32.mrf.mxu0
      %v2437 = vadd.f32 0.0, %v2436
      %v2438 = vpop.f32.mrf.mxu0
      %v2439 = vadd.f32 0.0, %v2438
      %2440 = vmatmul.bf16.gmra.mxu0 %v2412
      %v2441 = vpop.f32.mrf.mxu0
      %v2442 = vadd.f32 0.0, %v2441
      %v2443 = vpop.f32.mrf.mxu0
      %v2444 = vadd.f32 0.0, %v2443
      %2445 = vdwg.mxu0
      %2446 = vst.msk [vmem:[#allocation5] sm:$0xff] %vm462, %v2427
      %2447 = vst.msk [vmem:[#allocation5 + $0x8] sm:$0xff] %vm462, %v2429
      %2448 = vst.msk [vmem:[#allocation5 + $0x10] sm:$0xff] %vm462, %v2432
      %2449 = vst.msk [vmem:[#allocation5 + $0x18] sm:$0xff] %vm462, %v2434
      %2450 = vst.msk [vmem:[#allocation5 + $0x20] sm:$0xff] %vm462, %v2437
      %2451 = vst.msk [vmem:[#allocation5 + $0x28] sm:$0xff] %vm462, %v2439
      %2452 = vst.msk [vmem:[#allocation5 + $0x30] sm:$0xff] %vm462, %v2442
      %2453 = vst.msk [vmem:[#allocation5 + $0x38] sm:$0xff] %vm462, %v2444
      %v2454 = vld [vmem:[#allocation3] sm:$0xf]
      %v2455 = vld [vmem:[#allocation3 + $0x4] sm:$0x1]
      %v2456 = vld [vmem:[#allocation3 + $0x8] sm:$0xf]
      %v2457 = vld [vmem:[#allocation3 + $0xc] sm:$0x1]
      %v2458 = vld [vmem:[#allocation3 + $0x10] sm:$0xf]
      %v2459 = vld [vmem:[#allocation3 + $0x14] sm:$0x1]
      %v2460 = vld [vmem:[#allocation3 + $0x18] sm:$0xf]
      %v2461 = vld [vmem:[#allocation3 + $0x1c] sm:$0x1]
      %v2462 = vld [vmem:[#allocation3 + $0x20] sm:$0xf]
      %v2463 = vld [vmem:[#allocation3 + $0x24] sm:$0x1]
      %v2464 = vld [vmem:[#allocation3 + $0x28] sm:$0xf]
      %v2465 = vld [vmem:[#allocation3 + $0x2c] sm:$0x1]
      %v2466 = vld [vmem:[#allocation3 + $0x30] sm:$0xf]
      %v2467 = vld [vmem:[#allocation3 + $0x34] sm:$0x1]
      %v2468 = vld [vmem:[#allocation3 + $0x38] sm:$0xf]
      %v2469 = vld [vmem:[#allocation3 + $0x3c] sm:$0x1]
      %v2471 = vshrl.u32 %v2454, 16
      %v2473 = vrot.slane %v2471, 4
      %v2474 = vshll.u32 %v2454, 16
      %v2476 = vrot.slane %v2474, 5
      %v2477 = vor.u32 %v2473, %v2476
      %v2478 = vrot.slane %v2477, 4
      %v2480 = vshll.u32 %v2455, 16
      %v2482 = vrot.slane %v2480, 5
      %v2483 = vsel %vm548, %v2478, %v2482
      %v2485 = vshrl.u32 %v2456, 16
      %v2487 = vrot.slane %v2485, 4
      %v2488 = vshll.u32 %v2456, 16
      %v2490 = vrot.slane %v2488, 5
      %v2491 = vor.u32 %v2487, %v2490
      %v2492 = vrot.slane %v2491, 4
      %v2494 = vshll.u32 %v2457, 16
      %v2496 = vrot.slane %v2494, 5
      %v2497 = vsel %vm548, %v2492, %v2496
      %v2499 = vshrl.u32 %v2458, 16
      %v2501 = vrot.slane %v2499, 4
      %v2502 = vshll.u32 %v2458, 16
      %v2504 = vrot.slane %v2502, 5
      %v2505 = vor.u32 %v2501, %v2504
      %v2506 = vrot.slane %v2505, 4
      %v2508 = vshll.u32 %v2459, 16
      %v2510 = vrot.slane %v2508, 5
      %v2511 = vsel %vm548, %v2506, %v2510
      %v2513 = vshrl.u32 %v2460, 16
      %v2515 = vrot.slane %v2513, 4
      %v2516 = vshll.u32 %v2460, 16
      %v2518 = vrot.slane %v2516, 5
      %v2519 = vor.u32 %v2515, %v2518
      %v2520 = vrot.slane %v2519, 4
      %v2522 = vshll.u32 %v2461, 16
      %v2524 = vrot.slane %v2522, 5
      %v2525 = vsel %vm548, %v2520, %v2524
      %v2527 = vshrl.u32 %v2462, 16
      %v2529 = vrot.slane %v2527, 4
      %v2530 = vshll.u32 %v2462, 16
      %v2532 = vrot.slane %v2530, 5
      %v2533 = vor.u32 %v2529, %v2532
      %v2534 = vrot.slane %v2533, 4
      %v2536 = vshll.u32 %v2463, 16
      %v2538 = vrot.slane %v2536, 5
      %v2539 = vsel %vm548, %v2534, %v2538
      %v2541 = vshrl.u32 %v2464, 16
      %v2543 = vrot.slane %v2541, 4
      %v2544 = vshll.u32 %v2464, 16
      %v2546 = vrot.slane %v2544, 5
      %v2547 = vor.u32 %v2543, %v2546
      %v2548 = vrot.slane %v2547, 4
      %v2550 = vshll.u32 %v2465, 16
      %v2552 = vrot.slane %v2550, 5
      %v2553 = vsel %vm548, %v2548, %v2552
      %v2555 = vshrl.u32 %v2466, 16
      %v2557 = vrot.slane %v2555, 4
      %v2558 = vshll.u32 %v2466, 16
      %v2560 = vrot.slane %v2558, 5
      %v2561 = vor.u32 %v2557, %v2560
      %v2562 = vrot.slane %v2561, 4
      %v2564 = vshll.u32 %v2467, 16
      %v2566 = vrot.slane %v2564, 5
      %v2567 = vsel %vm548, %v2562, %v2566
      %v2569 = vshrl.u32 %v2468, 16
      %v2571 = vrot.slane %v2569, 4
      %v2572 = vshll.u32 %v2468, 16
      %v2574 = vrot.slane %v2572, 5
      %v2575 = vor.u32 %v2571, %v2574
      %v2576 = vrot.slane %v2575, 4
      %v2578 = vshll.u32 %v2469, 16
      %v2580 = vrot.slane %v2578, 5
      %v2581 = vsel %vm548, %v2576, %v2580
      %s2582 = scalar_lea.vmem %s3, 4
      %v2583 = vld [vmem:[%s2582] sm:$0xf]
      %v2584 = vunpack.c.l.b16 %v2483
      %v2585 = vunpack.c.l.b16 %v2497
      %v2586 = vunpack.c.l.b16 %v2511
      %v2587 = vunpack.c.l.b16 %v2525
      %v2588 = vunpack.c.l.b16 %v2539
      %v2589 = vunpack.c.l.b16 %v2553
      %v2590 = vunpack.c.l.b16 %v2567
      %v2591 = vunpack.c.l.b16 %v2581
      %v2592 = vpack.c.b16 %v2585, %v2584
      %v2593 = vpack.c.b16 %v2587, %v2586
      %v2594 = vpack.c.b16 %v2589, %v2588
      %v2595 = vpack.c.b16 %v2591, %v2590
      %v2597 = vsel %vm462, %v2592, 0
      %v2600 = vsel %vm462, %v2593, 0
      %v2603 = vsel %vm462, %v2594, 0
      %v2606 = vsel %vm462, %v2595, 0
      %v2609 = vsel %vm478, %v2583, 0
      %2611 = vmatpush.bf16.msra.mxu0 0
      %2612 = vmatpush.bf16.msra.mxu0 0
      %2613 = vmatpush.bf16.msra.mxu0 0
      %2614 = vmatpush.bf16.msra.mxu0 0
      %2615 = vmatpush.bf16.msra.mxu0 0
      %2616 = vmatpush.bf16.msra.mxu0 0
      %2617 = vmatpush.bf16.msra.mxu0 0
      %2618 = vmatpush.bf16.msra.mxu0 %v2609
      %2619 = vmatmul.bf16.gmra.mxu0 %v2597
      %v2620 = vpop.f32.mrf.mxu0
      %v2621 = vadd.f32 0.0, %v2620
      %v2622 = vpop.f32.mrf.mxu0
      %v2623 = vadd.f32 0.0, %v2622
      %2624 = vmatmul.bf16.gmra.mxu0 %v2600
      %v2625 = vpop.f32.mrf.mxu0
      %v2626 = vadd.f32 0.0, %v2625
      %v2627 = vpop.f32.mrf.mxu0
      %v2628 = vadd.f32 0.0, %v2627
      %2629 = vmatmul.bf16.gmra.mxu0 %v2603
      %v2630 = vpop.f32.mrf.mxu0
      %v2631 = vadd.f32 0.0, %v2630
      %v2632 = vpop.f32.mrf.mxu0
      %v2633 = vadd.f32 0.0, %v2632
      %2634 = vmatmul.bf16.gmra.mxu0 %v2606
      %v2635 = vpop.f32.mrf.mxu0
      %v2636 = vadd.f32 0.0, %v2635
      %v2637 = vpop.f32.mrf.mxu0
      %v2638 = vadd.f32 0.0, %v2637
      %2639 = vdwg.mxu0
      %v2640 = vld [vmem:[#allocation5] sm:$0xff]
      %v2641 = vld [vmem:[#allocation5 + $0x8] sm:$0xff]
      %v2642 = vld [vmem:[#allocation5 + $0x10] sm:$0xff]
      %v2643 = vld [vmem:[#allocation5 + $0x18] sm:$0xff]
      %v2644 = vld [vmem:[#allocation5 + $0x20] sm:$0xff]
      %v2645 = vld [vmem:[#allocation5 + $0x28] sm:$0xff]
      %v2646 = vld [vmem:[#allocation5 + $0x30] sm:$0xff]
      %v2647 = vld [vmem:[#allocation5 + $0x38] sm:$0xff]
      %v2648 = vadd.f32 %v2640, %v2621
      %v2649 = vadd.f32 %v2641, %v2623
      %v2650 = vadd.f32 %v2642, %v2626
      %v2651 = vadd.f32 %v2643, %v2628
      %v2652 = vadd.f32 %v2644, %v2631
      %v2653 = vadd.f32 %v2645, %v2633
      %v2654 = vadd.f32 %v2646, %v2636
      %v2655 = vadd.f32 %v2647, %v2638
      %2656 = vst.msk [vmem:[#allocation5] sm:$0xff] %vm462, %v2648
      %2657 = vst.msk [vmem:[#allocation5 + $0x8] sm:$0xff] %vm462, %v2649
      %2658 = vst.msk [vmem:[#allocation5 + $0x10] sm:$0xff] %vm462, %v2650
      %2659 = vst.msk [vmem:[#allocation5 + $0x18] sm:$0xff] %vm462, %v2651
      %2660 = vst.msk [vmem:[#allocation5 + $0x20] sm:$0xff] %vm462, %v2652
      %2661 = vst.msk [vmem:[#allocation5 + $0x28] sm:$0xff] %vm462, %v2653
      %2662 = vst.msk [vmem:[#allocation5 + $0x30] sm:$0xff] %vm462, %v2654
      %2663 = vst.msk [vmem:[#allocation5 + $0x38] sm:$0xff] %vm462, %v2655
      %v2664 = vld [vmem:[#allocation3] sm:$0xe]
      %v2665 = vld [vmem:[#allocation3 + $0x4] sm:$0x1]
      %v2666 = vld [vmem:[#allocation3 + $0x8] sm:$0xe]
      %v2667 = vld [vmem:[#allocation3 + $0xc] sm:$0x1]
      %v2668 = vld [vmem:[#allocation3 + $0x10] sm:$0xe]
      %v2669 = vld [vmem:[#allocation3 + $0x14] sm:$0x1]
      %v2670 = vld [vmem:[#allocation3 + $0x18] sm:$0xe]
      %v2671 = vld [vmem:[#allocation3 + $0x1c] sm:$0x1]
      %v2672 = vld [vmem:[#allocation3 + $0x20] sm:$0xe]
      %v2673 = vld [vmem:[#allocation3 + $0x24] sm:$0x1]
      %v2674 = vld [vmem:[#allocation3 + $0x28] sm:$0xe]
      %v2675 = vld [vmem:[#allocation3 + $0x2c] sm:$0x1]
      %v2676 = vld [vmem:[#allocation3 + $0x30] sm:$0xe]
      %v2677 = vld [vmem:[#allocation3 + $0x34] sm:$0x1]
      %v2678 = vld [vmem:[#allocation3 + $0x38] sm:$0xe]
      %v2679 = vld [vmem:[#allocation3 + $0x3c] sm:$0x1]
      %v2696 = vrot.slane %v2664, 5
      %v2697 = vrot.slane %v2696, 4
      %v2698 = vrot.slane %v2665, 5
      %v2699 = vsel %vm830, %v2697, %v2698
      %v2700 = vrot.slane %v2666, 5
      %v2701 = vrot.slane %v2700, 4
      %v2702 = vrot.slane %v2667, 5
      %v2703 = vsel %vm830, %v2701, %v2702
      %v2704 = vrot.slane %v2668, 5
      %v2705 = vrot.slane %v2704, 4
      %v2706 = vrot.slane %v2669, 5
      %v2707 = vsel %vm830, %v2705, %v2706
      %v2708 = vrot.slane %v2670, 5
      %v2709 = vrot.slane %v2708, 4
      %v2710 = vrot.slane %v2671, 5
      %v2711 = vsel %vm830, %v2709, %v2710
      %v2712 = vrot.slane %v2672, 5
      %v2713 = vrot.slane %v2712, 4
      %v2714 = vrot.slane %v2673, 5
      %v2715 = vsel %vm830, %v2713, %v2714
      %v2716 = vrot.slane %v2674, 5
      %v2717 = vrot.slane %v2716, 4
      %v2718 = vrot.slane %v2675, 5
      %v2719 = vsel %vm830, %v2717, %v2718
      %v2720 = vrot.slane %v2676, 5
      %v2721 = vrot.slane %v2720, 4
      %v2722 = vrot.slane %v2677, 5
      %v2723 = vsel %vm830, %v2721, %v2722
      %v2724 = vrot.slane %v2678, 5
      %v2725 = vrot.slane %v2724, 4
      %v2726 = vrot.slane %v2679, 5
      %v2727 = vsel %vm830, %v2725, %v2726
      %s2728 = scalar_lea.vmem %s3, 8
      %v2729 = vld [vmem:[%s2728] sm:$0xf]
      %v2730 = vunpack.c.l.b16 %v2699
      %v2731 = vunpack.c.l.b16 %v2703
      %v2732 = vunpack.c.l.b16 %v2707
      %v2733 = vunpack.c.l.b16 %v2711
      %v2734 = vunpack.c.l.b16 %v2715
      %v2735 = vunpack.c.l.b16 %v2719
      %v2736 = vunpack.c.l.b16 %v2723
      %v2737 = vunpack.c.l.b16 %v2727
      %v2738 = vpack.c.b16 %v2731, %v2730
      %v2739 = vpack.c.b16 %v2733, %v2732
      %v2740 = vpack.c.b16 %v2735, %v2734
      %v2741 = vpack.c.b16 %v2737, %v2736
      %v2743 = vsel %vm462, %v2738, 0
      %v2746 = vsel %vm462, %v2739, 0
      %v2749 = vsel %vm462, %v2740, 0
      %v2752 = vsel %vm462, %v2741, 0
      %v2755 = vsel %vm478, %v2729, 0
      %2757 = vmatpush.bf16.msra.mxu0 0
      %2758 = vmatpush.bf16.msra.mxu0 0
      %2759 = vmatpush.bf16.msra.mxu0 0
      %2760 = vmatpush.bf16.msra.mxu0 0
      %2761 = vmatpush.bf16.msra.mxu0 0
      %2762 = vmatpush.bf16.msra.mxu0 0
      %2763 = vmatpush.bf16.msra.mxu0 0
      %2764 = vmatpush.bf16.msra.mxu0 %v2755
      %2765 = vmatmul.bf16.gmra.mxu0 %v2743
      %v2766 = vpop.f32.mrf.mxu0
      %v2767 = vadd.f32 0.0, %v2766
      %v2768 = vpop.f32.mrf.mxu0
      %v2769 = vadd.f32 0.0, %v2768
      %2770 = vmatmul.bf16.gmra.mxu0 %v2746
      %v2771 = vpop.f32.mrf.mxu0
      %v2772 = vadd.f32 0.0, %v2771
      %v2773 = vpop.f32.mrf.mxu0
      %v2774 = vadd.f32 0.0, %v2773
      %2775 = vmatmul.bf16.gmra.mxu0 %v2749
      %v2776 = vpop.f32.mrf.mxu0
      %v2777 = vadd.f32 0.0, %v2776
      %v2778 = vpop.f32.mrf.mxu0
      %v2779 = vadd.f32 0.0, %v2778
      %2780 = vmatmul.bf16.gmra.mxu0 %v2752
      %v2781 = vpop.f32.mrf.mxu0
      %v2782 = vadd.f32 0.0, %v2781
      %v2783 = vpop.f32.mrf.mxu0
      %v2784 = vadd.f32 0.0, %v2783
      %2785 = vdwg.mxu0
      %v2786 = vld [vmem:[#allocation5] sm:$0xff]
      %v2787 = vld [vmem:[#allocation5 + $0x8] sm:$0xff]
      %v2788 = vld [vmem:[#allocation5 + $0x10] sm:$0xff]
      %v2789 = vld [vmem:[#allocation5 + $0x18] sm:$0xff]
      %v2790 = vld [vmem:[#allocation5 + $0x20] sm:$0xff]
      %v2791 = vld [vmem:[#allocation5 + $0x28] sm:$0xff]
      %v2792 = vld [vmem:[#allocation5 + $0x30] sm:$0xff]
      %v2793 = vld [vmem:[#allocation5 + $0x38] sm:$0xff]
      %v2794 = vadd.f32 %v2786, %v2767
      %v2795 = vadd.f32 %v2787, %v2769
      %v2796 = vadd.f32 %v2788, %v2772
      %v2797 = vadd.f32 %v2789, %v2774
      %v2798 = vadd.f32 %v2790, %v2777
      %v2799 = vadd.f32 %v2791, %v2779
      %v2800 = vadd.f32 %v2792, %v2782
      %v2801 = vadd.f32 %v2793, %v2784
      %2802 = vst.msk [vmem:[#allocation5] sm:$0xff] %vm462, %v2794
      %2803 = vst.msk [vmem:[#allocation5 + $0x8] sm:$0xff] %vm462, %v2795
      %2804 = vst.msk [vmem:[#allocation5 + $0x10] sm:$0xff] %vm462, %v2796
      %2805 = vst.msk [vmem:[#allocation5 + $0x18] sm:$0xff] %vm462, %v2797
      %2806 = vst.msk [vmem:[#allocation5 + $0x20] sm:$0xff] %vm462, %v2798
      %2807 = vst.msk [vmem:[#allocation5 + $0x28] sm:$0xff] %vm462, %v2799
      %2808 = vst.msk [vmem:[#allocation5 + $0x30] sm:$0xff] %vm462, %v2800
      %2809 = vst.msk [vmem:[#allocation5 + $0x38] sm:$0xff] %vm462, %v2801
      %s2810 = scalar_lea.vmem [#allocation3], 8
      %v2811 = vld [vmem:[%s2810] sm:$0xf]
      %v2812 = vld [vmem:[%s2810 + $0x8] sm:$0xf]
      %v2813 = vld [vmem:[%s2810 + $0x10] sm:$0xf]
      %v2814 = vld [vmem:[%s2810 + $0x18] sm:$0xf]
      %v2815 = vld [vmem:[%s2810 + $0x20] sm:$0xf]
      %v2816 = vld [vmem:[%s2810 + $0x28] sm:$0xf]
      %v2817 = vld [vmem:[%s2810 + $0x30] sm:$0xf]
      %v2818 = vld [vmem:[%s2810 + $0x38] sm:$0xf]
      %s2819 = scalar_lea.vmem %s3, 12
      %v2820 = vld [vmem:[%s2819] sm:$0xf]
      %v2829 = vunpack.c.l.b16 %v2811
      %v2830 = vunpack.c.l.b16 %v2812
      %v2831 = vunpack.c.l.b16 %v2813
      %v2832 = vunpack.c.l.b16 %v2814
      %v2833 = vunpack.c.l.b16 %v2815
      %v2834 = vunpack.c.l.b16 %v2816
      %v2835 = vunpack.c.l.b16 %v2817
      %v2836 = vunpack.c.l.b16 %v2818
      %v2837 = vpack.c.b16 %v2830, %v2829
      %v2838 = vpack.c.b16 %v2832, %v2831
      %v2839 = vpack.c.b16 %v2834, %v2833
      %v2840 = vpack.c.b16 %v2836, %v2835
      %v2842 = vsel %vm462, %v2837, 0
      %v2845 = vsel %vm462, %v2838, 0
      %v2848 = vsel %vm462, %v2839, 0
      %v2851 = vsel %vm462, %v2840, 0
      %v2854 = vsel %vm478, %v2820, 0
      %2856 = vmatpush.bf16.msra.mxu0 0
      %2857 = vmatpush.bf16.msra.mxu0 0
      %2858 = vmatpush.bf16.msra.mxu0 0
      %2859 = vmatpush.bf16.msra.mxu0 0
      %2860 = vmatpush.bf16.msra.mxu0 0
      %2861 = vmatpush.bf16.msra.mxu0 0
      %2862 = vmatpush.bf16.msra.mxu0 0
      %2863 = vmatpush.bf16.msra.mxu0 %v2854
      %2864 = vmatmul.bf16.gmra.mxu0 %v2842
      %v2865 = vpop.f32.mrf.mxu0
      %v2866 = vadd.f32 0.0, %v2865
      %v2867 = vpop.f32.mrf.mxu0
      %v2868 = vadd.f32 0.0, %v2867
      %2869 = vmatmul.bf16.gmra.mxu0 %v2845
      %v2870 = vpop.f32.mrf.mxu0
      %v2871 = vadd.f32 0.0, %v2870
      %v2872 = vpop.f32.mrf.mxu0
      %v2873 = vadd.f32 0.0, %v2872
      %2874 = vmatmul.bf16.gmra.mxu0 %v2848
      %v2875 = vpop.f32.mrf.mxu0
      %v2876 = vadd.f32 0.0, %v2875
      %v2877 = vpop.f32.mrf.mxu0
      %v2878 = vadd.f32 0.0, %v2877
      %2879 = vmatmul.bf16.gmra.mxu0 %v2851
      %v2880 = vpop.f32.mrf.mxu0
      %v2881 = vadd.f32 0.0, %v2880
      %v2882 = vpop.f32.mrf.mxu0
      %v2883 = vadd.f32 0.0, %v2882
      %2884 = vdwg.mxu0
      %v2885 = vld [vmem:[#allocation5] sm:$0xff]
      %v2886 = vld [vmem:[#allocation5 + $0x8] sm:$0xff]
      %v2887 = vld [vmem:[#allocation5 + $0x10] sm:$0xff]
      %v2888 = vld [vmem:[#allocation5 + $0x18] sm:$0xff]
      %v2889 = vld [vmem:[#allocation5 + $0x20] sm:$0xff]
      %v2890 = vld [vmem:[#allocation5 + $0x28] sm:$0xff]
      %v2891 = vld [vmem:[#allocation5 + $0x30] sm:$0xff]
      %v2892 = vld [vmem:[#allocation5 + $0x38] sm:$0xff]
      %v2893 = vadd.f32 %v2885, %v2866
      %v2894 = vadd.f32 %v2886, %v2868
      %v2895 = vadd.f32 %v2887, %v2871
      %v2896 = vadd.f32 %v2888, %v2873
      %v2897 = vadd.f32 %v2889, %v2876
      %v2898 = vadd.f32 %v2890, %v2878
      %v2899 = vadd.f32 %v2891, %v2881
      %v2900 = vadd.f32 %v2892, %v2883
      %2901 = vst.msk [vmem:[#allocation5] sm:$0xff] %vm462, %v2893
      %2902 = vst.msk [vmem:[#allocation5 + $0x8] sm:$0xff] %vm462, %v2894
      %2903 = vst.msk [vmem:[#allocation5 + $0x10] sm:$0xff] %vm462, %v2895
      %2904 = vst.msk [vmem:[#allocation5 + $0x18] sm:$0xff] %vm462, %v2896
      %2905 = vst.msk [vmem:[#allocation5 + $0x20] sm:$0xff] %vm462, %v2897
      %2906 = vst.msk [vmem:[#allocation5 + $0x28] sm:$0xff] %vm462, %v2898
      %2907 = vst.msk [vmem:[#allocation5 + $0x30] sm:$0xff] %vm462, %v2899
      %2908 = vst.msk [vmem:[#allocation5 + $0x38] sm:$0xff] %vm462, %v2900
      %v2909 = vld [vmem:[%s2810] sm:$0xf]
      %v2910 = vld [vmem:[%s2810 + $0x4] sm:$0x1]
      %v2911 = vld [vmem:[%s2810 + $0x8] sm:$0xf]
      %v2912 = vld [vmem:[%s2810 + $0xc] sm:$0x1]
      %v2913 = vld [vmem:[%s2810 + $0x10] sm:$0xf]
      %v2914 = vld [vmem:[%s2810 + $0x14] sm:$0x1]
      %v2915 = vld [vmem:[%s2810 + $0x18] sm:$0xf]
      %v2916 = vld [vmem:[%s2810 + $0x1c] sm:$0x1]
      %v2917 = vld [vmem:[%s2810 + $0x20] sm:$0xf]
      %v2918 = vld [vmem:[%s2810 + $0x24] sm:$0x1]
      %v2919 = vld [vmem:[%s2810 + $0x28] sm:$0xf]
      %v2920 = vld [vmem:[%s2810 + $0x2c] sm:$0x1]
      %v2921 = vld [vmem:[%s2810 + $0x30] sm:$0xf]
      %v2922 = vld [vmem:[%s2810 + $0x34] sm:$0x1]
      %v2923 = vld [vmem:[%s2810 + $0x38] sm:$0xf]
      %v2924 = vld [vmem:[%s2810 + $0x3c] sm:$0x1]
      %v2926 = vshrl.u32 %v2909, 16
      %v2928 = vrot.slane %v2926, 4
      %v2929 = vshll.u32 %v2909, 16
      %v2931 = vrot.slane %v2929, 5
      %v2932 = vor.u32 %v2928, %v2931
      %v2933 = vrot.slane %v2932, 4
      %v2935 = vshll.u32 %v2910, 16
      %v2937 = vrot.slane %v2935, 5
      %v2938 = vsel %vm548, %v2933, %v2937
      %v2940 = vshrl.u32 %v2911, 16
      %v2942 = vrot.slane %v2940, 4
      %v2943 = vshll.u32 %v2911, 16
      %v2945 = vrot.slane %v2943, 5
      %v2946 = vor.u32 %v2942, %v2945
      %v2947 = vrot.slane %v2946, 4
      %v2949 = vshll.u32 %v2912, 16
      %v2951 = vrot.slane %v2949, 5
      %v2952 = vsel %vm548, %v2947, %v2951
      %v2954 = vshrl.u32 %v2913, 16
      %v2956 = vrot.slane %v2954, 4
      %v2957 = vshll.u32 %v2913, 16
      %v2959 = vrot.slane %v2957, 5
      %v2960 = vor.u32 %v2956, %v2959
      %v2961 = vrot.slane %v2960, 4
      %v2963 = vshll.u32 %v2914, 16
      %v2965 = vrot.slane %v2963, 5
      %v2966 = vsel %vm548, %v2961, %v2965
      %v2968 = vshrl.u32 %v2915, 16
      %v2970 = vrot.slane %v2968, 4
      %v2971 = vshll.u32 %v2915, 16
      %v2973 = vrot.slane %v2971, 5
      %v2974 = vor.u32 %v2970, %v2973
      %v2975 = vrot.slane %v2974, 4
      %v2977 = vshll.u32 %v2916, 16
      %v2979 = vrot.slane %v2977, 5
      %v2980 = vsel %vm548, %v2975, %v2979
      %v2982 = vshrl.u32 %v2917, 16
      %v2984 = vrot.slane %v2982, 4
      %v2985 = vshll.u32 %v2917, 16
      %v2987 = vrot.slane %v2985, 5
      %v2988 = vor.u32 %v2984, %v2987
      %v2989 = vrot.slane %v2988, 4
      %v2991 = vshll.u32 %v2918, 16
      %v2993 = vrot.slane %v2991, 5
      %v2994 = vsel %vm548, %v2989, %v2993
      %v2996 = vshrl.u32 %v2919, 16
      %v2998 = vrot.slane %v2996, 4
      %v2999 = vshll.u32 %v2919, 16
      %v3001 = vrot.slane %v2999, 5
      %v3002 = vor.u32 %v2998, %v3001
      %v3003 = vrot.slane %v3002, 4
      %v3005 = vshll.u32 %v2920, 16
      %v3007 = vrot.slane %v3005, 5
      %v3008 = vsel %vm548, %v3003, %v3007
      %v3010 = vshrl.u32 %v2921, 16
      %v3012 = vrot.slane %v3010, 4
      %v3013 = vshll.u32 %v2921, 16
      %v3015 = vrot.slane %v3013, 5
      %v3016 = vor.u32 %v3012, %v3015
      %v3017 = vrot.slane %v3016, 4
      %v3019 = vshll.u32 %v2922, 16
      %v3021 = vrot.slane %v3019, 5
      %v3022 = vsel %vm548, %v3017, %v3021
      %v3024 = vshrl.u32 %v2923, 16
      %v3026 = vrot.slane %v3024, 4
      %v3027 = vshll.u32 %v2923, 16
      %v3029 = vrot.slane %v3027, 5
      %v3030 = vor.u32 %v3026, %v3029
      %v3031 = vrot.slane %v3030, 4
      %v3033 = vshll.u32 %v2924, 16
      %v3035 = vrot.slane %v3033, 5
      %v3036 = vsel %vm548, %v3031, %v3035
      %s3037 = scalar_lea.vmem %s3, 16
      %v3038 = vld [vmem:[%s3037] sm:$0xf]
      %v3039 = vunpack.c.l.b16 %v2938
      %v3040 = vunpack.c.l.b16 %v2952
      %v3041 = vunpack.c.l.b16 %v2966
      %v3042 = vunpack.c.l.b16 %v2980
      %v3043 = vunpack.c.l.b16 %v2994
      %v3044 = vunpack.c.l.b16 %v3008
      %v3045 = vunpack.c.l.b16 %v3022
      %v3046 = vunpack.c.l.b16 %v3036
      %v3047 = vpack.c.b16 %v3040, %v3039
      %v3048 = vpack.c.b16 %v3042, %v3041
      %v3049 = vpack.c.b16 %v3044, %v3043
      %v3050 = vpack.c.b16 %v3046, %v3045
      %v3052 = vsel %vm462, %v3047, 0
      %v3055 = vsel %vm462, %v3048, 0
      %v3058 = vsel %vm462, %v3049, 0
      %v3061 = vsel %vm462, %v3050, 0
      %v3064 = vsel %vm478, %v3038, 0
      %3066 = vmatpush.bf16.msra.mxu0 0
      %3067 = vmatpush.bf16.msra.mxu0 0
      %3068 = vmatpush.bf16.msra.mxu0 0
      %3069 = vmatpush.bf16.msra.mxu0 0
      %3070 = vmatpush.bf16.msra.mxu0 0
      %3071 = vmatpush.bf16.msra.mxu0 0
      %3072 = vmatpush.bf16.msra.mxu0 0
      %3073 = vmatpush.bf16.msra.mxu0 %v3064
      %3074 = vmatmul.bf16.gmra.mxu0 %v3052
      %v3075 = vpop.f32.mrf.mxu0
      %v3076 = vadd.f32 0.0, %v3075
      %v3077 = vpop.f32.mrf.mxu0
      %v3078 = vadd.f32 0.0, %v3077
      %3079 = vmatmul.bf16.gmra.mxu0 %v3055
      %v3080 = vpop.f32.mrf.mxu0
      %v3081 = vadd.f32 0.0, %v3080
      %v3082 = vpop.f32.mrf.mxu0
      %v3083 = vadd.f32 0.0, %v3082
      %3084 = vmatmul.bf16.gmra.mxu0 %v3058
      %v3085 = vpop.f32.mrf.mxu0
      %v3086 = vadd.f32 0.0, %v3085
      %v3087 = vpop.f32.mrf.mxu0
      %v3088 = vadd.f32 0.0, %v3087
      %3089 = vmatmul.bf16.gmra.mxu0 %v3061
      %v3090 = vpop.f32.mrf.mxu0
      %v3091 = vadd.f32 0.0, %v3090
      %v3092 = vpop.f32.mrf.mxu0
      %v3093 = vadd.f32 0.0, %v3092
      %3094 = vdwg.mxu0
      %v3095 = vld [vmem:[#allocation5] sm:$0xff]
      %v3096 = vld [vmem:[#allocation5 + $0x8] sm:$0xff]
      %v3097 = vld [vmem:[#allocation5 + $0x10] sm:$0xff]
      %v3098 = vld [vmem:[#allocation5 + $0x18] sm:$0xff]
      %v3099 = vld [vmem:[#allocation5 + $0x20] sm:$0xff]
      %v3100 = vld [vmem:[#allocation5 + $0x28] sm:$0xff]
      %v3101 = vld [vmem:[#allocation5 + $0x30] sm:$0xff]
      %v3102 = vld [vmem:[#allocation5 + $0x38] sm:$0xff]
      %v3103 = vadd.f32 %v3095, %v3076
      %v3104 = vadd.f32 %v3096, %v3078
      %v3105 = vadd.f32 %v3097, %v3081
      %v3106 = vadd.f32 %v3098, %v3083
      %v3107 = vadd.f32 %v3099, %v3086
      %v3108 = vadd.f32 %v3100, %v3088
      %v3109 = vadd.f32 %v3101, %v3091
      %v3110 = vadd.f32 %v3102, %v3093
      %3111 = vst.msk [vmem:[#allocation5] sm:$0xff] %vm462, %v3103
      %3112 = vst.msk [vmem:[#allocation5 + $0x8] sm:$0xff] %vm462, %v3104
      %3113 = vst.msk [vmem:[#allocation5 + $0x10] sm:$0xff] %vm462, %v3105
      %3114 = vst.msk [vmem:[#allocation5 + $0x18] sm:$0xff] %vm462, %v3106
      %3115 = vst.msk [vmem:[#allocation5 + $0x20] sm:$0xff] %vm462, %v3107
      %3116 = vst.msk [vmem:[#allocation5 + $0x28] sm:$0xff] %vm462, %v3108
      %3117 = vst.msk [vmem:[#allocation5 + $0x30] sm:$0xff] %vm462, %v3109
      %3118 = vst.msk [vmem:[#allocation5 + $0x38] sm:$0xff] %vm462, %v3110
      %v3119 = vld [vmem:[%s2810] sm:$0xe]
      %v3120 = vld [vmem:[%s2810 + $0x4] sm:$0x1]
      %v3121 = vld [vmem:[%s2810 + $0x8] sm:$0xe]
      %v3122 = vld [vmem:[%s2810 + $0xc] sm:$0x1]
      %v3123 = vld [vmem:[%s2810 + $0x10] sm:$0xe]
      %v3124 = vld [vmem:[%s2810 + $0x14] sm:$0x1]
      %v3125 = vld [vmem:[%s2810 + $0x18] sm:$0xe]
      %v3126 = vld [vmem:[%s2810 + $0x1c] sm:$0x1]
      %v3127 = vld [vmem:[%s2810 + $0x20] sm:$0xe]
      %v3128 = vld [vmem:[%s2810 + $0x24] sm:$0x1]
      %v3129 = vld [vmem:[%s2810 + $0x28] sm:$0xe]
      %v3130 = vld [vmem:[%s2810 + $0x2c] sm:$0x1]
      %v3131 = vld [vmem:[%s2810 + $0x30] sm:$0xe]
      %v3132 = vld [vmem:[%s2810 + $0x34] sm:$0x1]
      %v3133 = vld [vmem:[%s2810 + $0x38] sm:$0xe]
      %v3134 = vld [vmem:[%s2810 + $0x3c] sm:$0x1]
      %v3151 = vrot.slane %v3119, 5
      %v3152 = vrot.slane %v3151, 4
      %v3153 = vrot.slane %v3120, 5
      %v3154 = vsel %vm830, %v3152, %v3153
      %v3155 = vrot.slane %v3121, 5
      %v3156 = vrot.slane %v3155, 4
      %v3157 = vrot.slane %v3122, 5
      %v3158 = vsel %vm830, %v3156, %v3157
      %v3159 = vrot.slane %v3123, 5
      %v3160 = vrot.slane %v3159, 4
      %v3161 = vrot.slane %v3124, 5
      %v3162 = vsel %vm830, %v3160, %v3161
      %v3163 = vrot.slane %v3125, 5
      %v3164 = vrot.slane %v3163, 4
      %v3165 = vrot.slane %v3126, 5
      %v3166 = vsel %vm830, %v3164, %v3165
      %v3167 = vrot.slane %v3127, 5
      %v3168 = vrot.slane %v3167, 4
      %v3169 = vrot.slane %v3128, 5
      %v3170 = vsel %vm830, %v3168, %v3169
      %v3171 = vrot.slane %v3129, 5
      %v3172 = vrot.slane %v3171, 4
      %v3173 = vrot.slane %v3130, 5
      %v3174 = vsel %vm830, %v3172, %v3173
      %v3175 = vrot.slane %v3131, 5
      %v3176 = vrot.slane %v3175, 4
      %v3177 = vrot.slane %v3132, 5
      %v3178 = vsel %vm830, %v3176, %v3177
      %v3179 = vrot.slane %v3133, 5
      %v3180 = vrot.slane %v3179, 4
      %v3181 = vrot.slane %v3134, 5
      %v3182 = vsel %vm830, %v3180, %v3181
      %s3183 = scalar_lea.vmem %s3, 20
      %v3184 = vld [vmem:[%s3183] sm:$0xf]
      %v3185 = vunpack.c.l.b16 %v3154
      %v3186 = vunpack.c.l.b16 %v3158
      %v3187 = vunpack.c.l.b16 %v3162
      %v3188 = vunpack.c.l.b16 %v3166
      %v3189 = vunpack.c.l.b16 %v3170
      %v3190 = vunpack.c.l.b16 %v3174
      %v3191 = vunpack.c.l.b16 %v3178
      %v3192 = vunpack.c.l.b16 %v3182
      %v3193 = vpack.c.b16 %v3186, %v3185
      %v3194 = vpack.c.b16 %v3188, %v3187
      %v3195 = vpack.c.b16 %v3190, %v3189
      %v3196 = vpack.c.b16 %v3192, %v3191
      %v3198 = vsel %vm462, %v3193, 0
      %v3201 = vsel %vm462, %v3194, 0
      %v3204 = vsel %vm462, %v3195, 0
      %v3207 = vsel %vm462, %v3196, 0
      %v3210 = vsel %vm478, %v3184, 0
      %3212 = vmatpush.bf16.msra.mxu0 0
      %3213 = vmatpush.bf16.msra.mxu0 0
      %3214 = vmatpush.bf16.msra.mxu0 0
      %3215 = vmatpush.bf16.msra.mxu0 0
      %3216 = vmatpush.bf16.msra.mxu0 0
      %3217 = vmatpush.bf16.msra.mxu0 0
      %3218 = vmatpush.bf16.msra.mxu0 0
      %3219 = vmatpush.bf16.msra.mxu0 %v3210
      %3220 = vmatmul.bf16.gmra.mxu0 %v3198
      %v3221 = vpop.f32.mrf.mxu0
      %v3222 = vadd.f32 0.0, %v3221
      %v3223 = vpop.f32.mrf.mxu0
      %v3224 = vadd.f32 0.0, %v3223
      %3225 = vmatmul.bf16.gmra.mxu0 %v3201
      %v3226 = vpop.f32.mrf.mxu0
      %v3227 = vadd.f32 0.0, %v3226
      %v3228 = vpop.f32.mrf.mxu0
      %v3229 = vadd.f32 0.0, %v3228
      %3230 = vmatmul.bf16.gmra.mxu0 %v3204
      %v3231 = vpop.f32.mrf.mxu0
      %v3232 = vadd.f32 0.0, %v3231
      %v3233 = vpop.f32.mrf.mxu0
      %v3234 = vadd.f32 0.0, %v3233
      %3235 = vmatmul.bf16.gmra.mxu0 %v3207
      %v3236 = vpop.f32.mrf.mxu0
      %v3237 = vadd.f32 0.0, %v3236
      %v3238 = vpop.f32.mrf.mxu0
      %v3239 = vadd.f32 0.0, %v3238
      %3240 = vdwg.mxu0
      %v3241 = vld [vmem:[#allocation5] sm:$0xff]
      %v3242 = vld [vmem:[#allocation5 + $0x8] sm:$0xff]
      %v3243 = vld [vmem:[#allocation5 + $0x10] sm:$0xff]
      %v3244 = vld [vmem:[#allocation5 + $0x18] sm:$0xff]
      %v3245 = vld [vmem:[#allocation5 + $0x20] sm:$0xff]
      %v3246 = vld [vmem:[#allocation5 + $0x28] sm:$0xff]
      %v3247 = vld [vmem:[#allocation5 + $0x30] sm:$0xff]
      %v3248 = vld [vmem:[#allocation5 + $0x38] sm:$0xff]
      %v3249 = vadd.f32 %v3241, %v3222
      %v3250 = vadd.f32 %v3242, %v3224
      %v3251 = vadd.f32 %v3243, %v3227
      %v3252 = vadd.f32 %v3244, %v3229
      %v3253 = vadd.f32 %v3245, %v3232
      %v3254 = vadd.f32 %v3246, %v3234
      %v3255 = vadd.f32 %v3247, %v3237
      %v3256 = vadd.f32 %v3248, %v3239
      %3257 = vst.msk [vmem:[#allocation5] sm:$0xff] %vm462, %v3249
      %3258 = vst.msk [vmem:[#allocation5 + $0x8] sm:$0xff] %vm462, %v3250
      %3259 = vst.msk [vmem:[#allocation5 + $0x10] sm:$0xff] %vm462, %v3251
      %3260 = vst.msk [vmem:[#allocation5 + $0x18] sm:$0xff] %vm462, %v3252
      %3261 = vst.msk [vmem:[#allocation5 + $0x20] sm:$0xff] %vm462, %v3253
      %3262 = vst.msk [vmem:[#allocation5 + $0x28] sm:$0xff] %vm462, %v3254
      %3263 = vst.msk [vmem:[#allocation5 + $0x30] sm:$0xff] %vm462, %v3255
      %3264 = vst.msk [vmem:[#allocation5 + $0x38] sm:$0xff] %vm462, %v3256
      %s3265 = scalar_lea.vmem [#allocation3], 16
      %v3266 = vld [vmem:[%s3265] sm:$0xf]
      %v3267 = vld [vmem:[%s3265 + $0x8] sm:$0xf]
      %v3268 = vld [vmem:[%s3265 + $0x10] sm:$0xf]
      %v3269 = vld [vmem:[%s3265 + $0x18] sm:$0xf]
      %v3270 = vld [vmem:[%s3265 + $0x20] sm:$0xf]
      %v3271 = vld [vmem:[%s3265 + $0x28] sm:$0xf]
      %v3272 = vld [vmem:[%s3265 + $0x30] sm:$0xf]
      %v3273 = vld [vmem:[%s3265 + $0x38] sm:$0xf]
      %s3274 = scalar_lea.vmem %s3, 24
      %v3275 = vld [vmem:[%s3274] sm:$0xf]
      %v3284 = vunpack.c.l.b16 %v3266
      %v3285 = vunpack.c.l.b16 %v3267
      %v3286 = vunpack.c.l.b16 %v3268
      %v3287 = vunpack.c.l.b16 %v3269
      %v3288 = vunpack.c.l.b16 %v3270
      %v3289 = vunpack.c.l.b16 %v3271
      %v3290 = vunpack.c.l.b16 %v3272
      %v3291 = vunpack.c.l.b16 %v3273
      %v3292 = vpack.c.b16 %v3285, %v3284
      %v3293 = vpack.c.b16 %v3287, %v3286
      %v3294 = vpack.c.b16 %v3289, %v3288
      %v3295 = vpack.c.b16 %v3291, %v3290
      %v3297 = vsel %vm462, %v3292, 0
      %v3300 = vsel %vm462, %v3293, 0
      %v3303 = vsel %vm462, %v3294, 0
      %v3306 = vsel %vm462, %v3295, 0
      %v3309 = vsel %vm478, %v3275, 0
      %3311 = vmatpush.bf16.msra.mxu0 0
      %3312 = vmatpush.bf16.msra.mxu0 0
      %3313 = vmatpush.bf16.msra.mxu0 0
      %3314 = vmatpush.bf16.msra.mxu0 0
      %3315 = vmatpush.bf16.msra.mxu0 0
      %3316 = vmatpush.bf16.msra.mxu0 0
      %3317 = vmatpush.bf16.msra.mxu0 0
      %3318 = vmatpush.bf16.msra.mxu0 %v3309
      %3319 = vmatmul.bf16.gmra.mxu0 %v3297
      %v3320 = vpop.f32.mrf.mxu0
      %v3321 = vadd.f32 0.0, %v3320
      %v3322 = vpop.f32.mrf.mxu0
      %v3323 = vadd.f32 0.0, %v3322
      %3324 = vmatmul.bf16.gmra.mxu0 %v3300
      %v3325 = vpop.f32.mrf.mxu0
      %v3326 = vadd.f32 0.0, %v3325
      %v3327 = vpop.f32.mrf.mxu0
      %v3328 = vadd.f32 0.0, %v3327
      %3329 = vmatmul.bf16.gmra.mxu0 %v3303
      %v3330 = vpop.f32.mrf.mxu0
      %v3331 = vadd.f32 0.0, %v3330
      %v3332 = vpop.f32.mrf.mxu0
      %v3333 = vadd.f32 0.0, %v3332
      %3334 = vmatmul.bf16.gmra.mxu0 %v3306
      %v3335 = vpop.f32.mrf.mxu0
      %v3336 = vadd.f32 0.0, %v3335
      %v3337 = vpop.f32.mrf.mxu0
      %v3338 = vadd.f32 0.0, %v3337
      %3339 = vdwg.mxu0
      %v3340 = vld [vmem:[#allocation5] sm:$0xff]
      %v3341 = vld [vmem:[#allocation5 + $0x8] sm:$0xff]
      %v3342 = vld [vmem:[#allocation5 + $0x10] sm:$0xff]
      %v3343 = vld [vmem:[#allocation5 + $0x18] sm:$0xff]
      %v3344 = vld [vmem:[#allocation5 + $0x20] sm:$0xff]
      %v3345 = vld [vmem:[#allocation5 + $0x28] sm:$0xff]
      %v3346 = vld [vmem:[#allocation5 + $0x30] sm:$0xff]
      %v3347 = vld [vmem:[#allocation5 + $0x38] sm:$0xff]
      %v3348 = vadd.f32 %v3340, %v3321
      %v3349 = vadd.f32 %v3341, %v3323
      %v3350 = vadd.f32 %v3342, %v3326
      %v3351 = vadd.f32 %v3343, %v3328
      %v3352 = vadd.f32 %v3344, %v3331
      %v3353 = vadd.f32 %v3345, %v3333
      %v3354 = vadd.f32 %v3346, %v3336
      %v3355 = vadd.f32 %v3347, %v3338
      %3356 = vst.msk [vmem:[#allocation5] sm:$0xff] %vm462, %v3348
      %3357 = vst.msk [vmem:[#allocation5 + $0x8] sm:$0xff] %vm462, %v3349
      %3358 = vst.msk [vmem:[#allocation5 + $0x10] sm:$0xff] %vm462, %v3350
      %3359 = vst.msk [vmem:[#allocation5 + $0x18] sm:$0xff] %vm462, %v3351
      %3360 = vst.msk [vmem:[#allocation5 + $0x20] sm:$0xff] %vm462, %v3352
      %3361 = vst.msk [vmem:[#allocation5 + $0x28] sm:$0xff] %vm462, %v3353
      %3362 = vst.msk [vmem:[#allocation5 + $0x30] sm:$0xff] %vm462, %v3354
      %3363 = vst.msk [vmem:[#allocation5 + $0x38] sm:$0xff] %vm462, %v3355
      %v3364 = vld [vmem:[%s3265] sm:$0xf]
      %v3365 = vld [vmem:[%s3265 + $0x4] sm:$0x1]
      %v3366 = vld [vmem:[%s3265 + $0x8] sm:$0xf]
      %v3367 = vld [vmem:[%s3265 + $0xc] sm:$0x1]
      %v3368 = vld [vmem:[%s3265 + $0x10] sm:$0xf]
      %v3369 = vld [vmem:[%s3265 + $0x14] sm:$0x1]
      %v3370 = vld [vmem:[%s3265 + $0x18] sm:$0xf]
      %v3371 = vld [vmem:[%s3265 + $0x1c] sm:$0x1]
      %v3372 = vld [vmem:[%s3265 + $0x20] sm:$0xf]
      %v3373 = vld [vmem:[%s3265 + $0x24] sm:$0x1]
      %v3374 = vld [vmem:[%s3265 + $0x28] sm:$0xf]
      %v3375 = vld [vmem:[%s3265 + $0x2c] sm:$0x1]
      %v3376 = vld [vmem:[%s3265 + $0x30] sm:$0xf]
      %v3377 = vld [vmem:[%s3265 + $0x34] sm:$0x1]
      %v3378 = vld [vmem:[%s3265 + $0x38] sm:$0xf]
      %v3379 = vld [vmem:[%s3265 + $0x3c] sm:$0x1]
      %v3381 = vshrl.u32 %v3364, 16
      %v3383 = vrot.slane %v3381, 4
      %v3384 = vshll.u32 %v3364, 16
      %v3386 = vrot.slane %v3384, 5
      %v3387 = vor.u32 %v3383, %v3386
      %v3388 = vrot.slane %v3387, 4
      %v3390 = vshll.u32 %v3365, 16
      %v3392 = vrot.slane %v3390, 5
      %v3393 = vsel %vm548, %v3388, %v3392
      %v3395 = vshrl.u32 %v3366, 16
      %v3397 = vrot.slane %v3395, 4
      %v3398 = vshll.u32 %v3366, 16
      %v3400 = vrot.slane %v3398, 5
      %v3401 = vor.u32 %v3397, %v3400
      %v3402 = vrot.slane %v3401, 4
      %v3404 = vshll.u32 %v3367, 16
      %v3406 = vrot.slane %v3404, 5
      %v3407 = vsel %vm548, %v3402, %v3406
      %v3409 = vshrl.u32 %v3368, 16
      %v3411 = vrot.slane %v3409, 4
      %v3412 = vshll.u32 %v3368, 16
      %v3414 = vrot.slane %v3412, 5
      %v3415 = vor.u32 %v3411, %v3414
      %v3416 = vrot.slane %v3415, 4
      %v3418 = vshll.u32 %v3369, 16
      %v3420 = vrot.slane %v3418, 5
      %v3421 = vsel %vm548, %v3416, %v3420
      %v3423 = vshrl.u32 %v3370, 16
      %v3425 = vrot.slane %v3423, 4
      %v3426 = vshll.u32 %v3370, 16
      %v3428 = vrot.slane %v3426, 5
      %v3429 = vor.u32 %v3425, %v3428
      %v3430 = vrot.slane %v3429, 4
      %v3432 = vshll.u32 %v3371, 16
      %v3434 = vrot.slane %v3432, 5
      %v3435 = vsel %vm548, %v3430, %v3434
      %v3437 = vshrl.u32 %v3372, 16
      %v3439 = vrot.slane %v3437, 4
      %v3440 = vshll.u32 %v3372, 16
      %v3442 = vrot.slane %v3440, 5
      %v3443 = vor.u32 %v3439, %v3442
      %v3444 = vrot.slane %v3443, 4
      %v3446 = vshll.u32 %v3373, 16
      %v3448 = vrot.slane %v3446, 5
      %v3449 = vsel %vm548, %v3444, %v3448
      %v3451 = vshrl.u32 %v3374, 16
      %v3453 = vrot.slane %v3451, 4
      %v3454 = vshll.u32 %v3374, 16
      %v3456 = vrot.slane %v3454, 5
      %v3457 = vor.u32 %v3453, %v3456
      %v3458 = vrot.slane %v3457, 4
      %v3460 = vshll.u32 %v3375, 16
      %v3462 = vrot.slane %v3460, 5
      %v3463 = vsel %vm548, %v3458, %v3462
      %v3465 = vshrl.u32 %v3376, 16
      %v3467 = vrot.slane %v3465, 4
      %v3468 = vshll.u32 %v3376, 16
      %v3470 = vrot.slane %v3468, 5
      %v3471 = vor.u32 %v3467, %v3470
      %v3472 = vrot.slane %v3471, 4
      %v3474 = vshll.u32 %v3377, 16
      %v3476 = vrot.slane %v3474, 5
      %v3477 = vsel %vm548, %v3472, %v3476
      %v3479 = vshrl.u32 %v3378, 16
      %v3481 = vrot.slane %v3479, 4
      %v3482 = vshll.u32 %v3378, 16
      %v3484 = vrot.slane %v3482, 5
      %v3485 = vor.u32 %v3481, %v3484
      %v3486 = vrot.slane %v3485, 4
      %v3488 = vshll.u32 %v3379, 16
      %v3490 = vrot.slane %v3488, 5
      %v3491 = vsel %vm548, %v3486, %v3490
      %s3492 = scalar_lea.vmem %s3, 28
      %v3493 = vld [vmem:[%s3492] sm:$0xf]
      %v3494 = vunpack.c.l.b16 %v3393
      %v3495 = vunpack.c.l.b16 %v3407
      %v3496 = vunpack.c.l.b16 %v3421
      %v3497 = vunpack.c.l.b16 %v3435
      %v3498 = vunpack.c.l.b16 %v3449
      %v3499 = vunpack.c.l.b16 %v3463
      %v3500 = vunpack.c.l.b16 %v3477
      %v3501 = vunpack.c.l.b16 %v3491
      %v3502 = vpack.c.b16 %v3495, %v3494
      %v3503 = vpack.c.b16 %v3497, %v3496
      %v3504 = vpack.c.b16 %v3499, %v3498
      %v3505 = vpack.c.b16 %v3501, %v3500
      %v3507 = vsel %vm462, %v3502, 0
      %v3510 = vsel %vm462, %v3503, 0
      %v3513 = vsel %vm462, %v3504, 0
      %v3516 = vsel %vm462, %v3505, 0
      %v3519 = vsel %vm478, %v3493, 0
      %3521 = vmatpush.bf16.msra.mxu0 0
      %3522 = vmatpush.bf16.msra.mxu0 0
      %3523 = vmatpush.bf16.msra.mxu0 0
      %3524 = vmatpush.bf16.msra.mxu0 0
      %3525 = vmatpush.bf16.msra.mxu0 0
      %3526 = vmatpush.bf16.msra.mxu0 0
      %3527 = vmatpush.bf16.msra.mxu0 0
      %3528 = vmatpush.bf16.msra.mxu0 %v3519
      %3529 = vmatmul.bf16.gmra.mxu0 %v3507
      %v3530 = vpop.f32.mrf.mxu0
      %v3531 = vadd.f32 0.0, %v3530
      %v3532 = vpop.f32.mrf.mxu0
      %v3533 = vadd.f32 0.0, %v3532
      %3534 = vmatmul.bf16.gmra.mxu0 %v3510
      %v3535 = vpop.f32.mrf.mxu0
      %v3536 = vadd.f32 0.0, %v3535
      %v3537 = vpop.f32.mrf.mxu0
      %v3538 = vadd.f32 0.0, %v3537
      %3539 = vmatmul.bf16.gmra.mxu0 %v3513
      %v3540 = vpop.f32.mrf.mxu0
      %v3541 = vadd.f32 0.0, %v3540
      %v3542 = vpop.f32.mrf.mxu0
      %v3543 = vadd.f32 0.0, %v3542
      %3544 = vmatmul.bf16.gmra.mxu0 %v3516
      %v3545 = vpop.f32.mrf.mxu0
      %v3546 = vadd.f32 0.0, %v3545
      %v3547 = vpop.f32.mrf.mxu0
      %v3548 = vadd.f32 0.0, %v3547
      %3549 = vdwg.mxu0
      %v3550 = vld [vmem:[#allocation5] sm:$0xff]
      %v3551 = vld [vmem:[#allocation5 + $0x8] sm:$0xff]
      %v3552 = vld [vmem:[#allocation5 + $0x10] sm:$0xff]
      %v3553 = vld [vmem:[#allocation5 + $0x18] sm:$0xff]
      %v3554 = vld [vmem:[#allocation5 + $0x20] sm:$0xff]
      %v3555 = vld [vmem:[#allocation5 + $0x28] sm:$0xff]
      %v3556 = vld [vmem:[#allocation5 + $0x30] sm:$0xff]
      %v3557 = vld [vmem:[#allocation5 + $0x38] sm:$0xff]
      %v3558 = vadd.f32 %v3550, %v3531
      %v3559 = vadd.f32 %v3551, %v3533
      %v3560 = vadd.f32 %v3552, %v3536
      %v3561 = vadd.f32 %v3553, %v3538
      %v3562 = vadd.f32 %v3554, %v3541
      %v3563 = vadd.f32 %v3555, %v3543
      %v3564 = vadd.f32 %v3556, %v3546
      %v3565 = vadd.f32 %v3557, %v3548
      %3566 = vst.msk [vmem:[#allocation5] sm:$0xff] %vm462, %v3558
      %3567 = vst.msk [vmem:[#allocation5 + $0x8] sm:$0xff] %vm462, %v3559
      %3568 = vst.msk [vmem:[#allocation5 + $0x10] sm:$0xff] %vm462, %v3560
      %3569 = vst.msk [vmem:[#allocation5 + $0x18] sm:$0xff] %vm462, %v3561
      %3570 = vst.msk [vmem:[#allocation5 + $0x20] sm:$0xff] %vm462, %v3562
      %3571 = vst.msk [vmem:[#allocation5 + $0x28] sm:$0xff] %vm462, %v3563
      %3572 = vst.msk [vmem:[#allocation5 + $0x30] sm:$0xff] %vm462, %v3564
      %3573 = vst.msk [vmem:[#allocation5 + $0x38] sm:$0xff] %vm462, %v3565
      %v3574 = vld [vmem:[%s3265] sm:$0xe]
      %v3575 = vld [vmem:[%s3265 + $0x4] sm:$0x1]
      %v3576 = vld [vmem:[%s3265 + $0x8] sm:$0xe]
      %v3577 = vld [vmem:[%s3265 + $0xc] sm:$0x1]
      %v3578 = vld [vmem:[%s3265 + $0x10] sm:$0xe]
      %v3579 = vld [vmem:[%s3265 + $0x14] sm:$0x1]
      %v3580 = vld [vmem:[%s3265 + $0x18] sm:$0xe]
      %v3581 = vld [vmem:[%s3265 + $0x1c] sm:$0x1]
      %v3582 = vld [vmem:[%s3265 + $0x20] sm:$0xe]
      %v3583 = vld [vmem:[%s3265 + $0x24] sm:$0x1]
      %v3584 = vld [vmem:[%s3265 + $0x28] sm:$0xe]
      %v3585 = vld [vmem:[%s3265 + $0x2c] sm:$0x1]
      %v3586 = vld [vmem:[%s3265 + $0x30] sm:$0xe]
      %v3587 = vld [vmem:[%s3265 + $0x34] sm:$0x1]
      %v3588 = vld [vmem:[%s3265 + $0x38] sm:$0xe]
      %v3589 = vld [vmem:[%s3265 + $0x3c] sm:$0x1]
      %v3606 = vrot.slane %v3574, 5
      %v3607 = vrot.slane %v3606, 4
      %v3608 = vrot.slane %v3575, 5
      %v3609 = vsel %vm830, %v3607, %v3608
      %v3610 = vrot.slane %v3576, 5
      %v3611 = vrot.slane %v3610, 4
      %v3612 = vrot.slane %v3577, 5
      %v3613 = vsel %vm830, %v3611, %v3612
      %v3614 = vrot.slane %v3578, 5
      %v3615 = vrot.slane %v3614, 4
      %v3616 = vrot.slane %v3579, 5
      %v3617 = vsel %vm830, %v3615, %v3616
      %v3618 = vrot.slane %v3580, 5
      %v3619 = vrot.slane %v3618, 4
      %v3620 = vrot.slane %v3581, 5
      %v3621 = vsel %vm830, %v3619, %v3620
      %v3622 = vrot.slane %v3582, 5
      %v3623 = vrot.slane %v3622, 4
      %v3624 = vrot.slane %v3583, 5
      %v3625 = vsel %vm830, %v3623, %v3624
      %v3626 = vrot.slane %v3584, 5
      %v3627 = vrot.slane %v3626, 4
      %v3628 = vrot.slane %v3585, 5
      %v3629 = vsel %vm830, %v3627, %v3628
      %v3630 = vrot.slane %v3586, 5
      %v3631 = vrot.slane %v3630, 4
      %v3632 = vrot.slane %v3587, 5
      %v3633 = vsel %vm830, %v3631, %v3632
      %v3634 = vrot.slane %v3588, 5
      %v3635 = vrot.slane %v3634, 4
      %v3636 = vrot.slane %v3589, 5
      %v3637 = vsel %vm830, %v3635, %v3636
      %s3638 = scalar_lea.vmem %s3, 32
      %v3639 = vld [vmem:[%s3638] sm:$0xf]
      %v3640 = vunpack.c.l.b16 %v3609
      %v3641 = vunpack.c.l.b16 %v3613
      %v3642 = vunpack.c.l.b16 %v3617
      %v3643 = vunpack.c.l.b16 %v3621
      %v3644 = vunpack.c.l.b16 %v3625
      %v3645 = vunpack.c.l.b16 %v3629
      %v3646 = vunpack.c.l.b16 %v3633
      %v3647 = vunpack.c.l.b16 %v3637
      %v3648 = vpack.c.b16 %v3641, %v3640
      %v3649 = vpack.c.b16 %v3643, %v3642
      %v3650 = vpack.c.b16 %v3645, %v3644
      %v3651 = vpack.c.b16 %v3647, %v3646
      %v3653 = vsel %vm462, %v3648, 0
      %v3656 = vsel %vm462, %v3649, 0
      %v3659 = vsel %vm462, %v3650, 0
      %v3662 = vsel %vm462, %v3651, 0
      %v3665 = vsel %vm478, %v3639, 0
      %3667 = vmatpush.bf16.msra.mxu0 0
      %3668 = vmatpush.bf16.msra.mxu0 0
      %3669 = vmatpush.bf16.msra.mxu0 0
      %3670 = vmatpush.bf16.msra.mxu0 0
      %3671 = vmatpush.bf16.msra.mxu0 0
      %3672 = vmatpush.bf16.msra.mxu0 0
      %3673 = vmatpush.bf16.msra.mxu0 0
      %3674 = vmatpush.bf16.msra.mxu0 %v3665
      %3675 = vmatmul.bf16.gmra.mxu0 %v3653
      %v3676 = vpop.f32.mrf.mxu0
      %v3677 = vadd.f32 0.0, %v3676
      %v3678 = vpop.f32.mrf.mxu0
      %v3679 = vadd.f32 0.0, %v3678
      %3680 = vmatmul.bf16.gmra.mxu0 %v3656
      %v3681 = vpop.f32.mrf.mxu0
      %v3682 = vadd.f32 0.0, %v3681
      %v3683 = vpop.f32.mrf.mxu0
      %v3684 = vadd.f32 0.0, %v3683
      %3685 = vmatmul.bf16.gmra.mxu0 %v3659
      %v3686 = vpop.f32.mrf.mxu0
      %v3687 = vadd.f32 0.0, %v3686
      %v3688 = vpop.f32.mrf.mxu0
      %v3689 = vadd.f32 0.0, %v3688
      %3690 = vmatmul.bf16.gmra.mxu0 %v3662
      %v3691 = vpop.f32.mrf.mxu0
      %v3692 = vadd.f32 0.0, %v3691
      %v3693 = vpop.f32.mrf.mxu0
      %v3694 = vadd.f32 0.0, %v3693
      %3695 = vdwg.mxu0
      %v3696 = vld [vmem:[#allocation5] sm:$0xff]
      %v3697 = vld [vmem:[#allocation5 + $0x8] sm:$0xff]
      %v3698 = vld [vmem:[#allocation5 + $0x10] sm:$0xff]
      %v3699 = vld [vmem:[#allocation5 + $0x18] sm:$0xff]
      %v3700 = vld [vmem:[#allocation5 + $0x20] sm:$0xff]
      %v3701 = vld [vmem:[#allocation5 + $0x28] sm:$0xff]
      %v3702 = vld [vmem:[#allocation5 + $0x30] sm:$0xff]
      %v3703 = vld [vmem:[#allocation5 + $0x38] sm:$0xff]
      %v3704 = vadd.f32 %v3696, %v3677
      %v3705 = vadd.f32 %v3697, %v3679
      %v3706 = vadd.f32 %v3698, %v3682
      %v3707 = vadd.f32 %v3699, %v3684
      %v3708 = vadd.f32 %v3700, %v3687
      %v3709 = vadd.f32 %v3701, %v3689
      %v3710 = vadd.f32 %v3702, %v3692
      %v3711 = vadd.f32 %v3703, %v3694
      %3712 = vst.msk [vmem:[#allocation5] sm:$0xff] %vm462, %v3704
      %3713 = vst.msk [vmem:[#allocation5 + $0x8] sm:$0xff] %vm462, %v3705
      %3714 = vst.msk [vmem:[#allocation5 + $0x10] sm:$0xff] %vm462, %v3706
      %3715 = vst.msk [vmem:[#allocation5 + $0x18] sm:$0xff] %vm462, %v3707
      %3716 = vst.msk [vmem:[#allocation5 + $0x20] sm:$0xff] %vm462, %v3708
      %3717 = vst.msk [vmem:[#allocation5 + $0x28] sm:$0xff] %vm462, %v3709
      %3718 = vst.msk [vmem:[#allocation5 + $0x30] sm:$0xff] %vm462, %v3710
      %3719 = vst.msk [vmem:[#allocation5 + $0x38] sm:$0xff] %vm462, %v3711
      %v3720 = vld [vmem:[#allocation5] sm:$0xff]
      %v3721 = vld [vmem:[#allocation5 + $0x8] sm:$0xff]
      %v3722 = vld [vmem:[#allocation5 + $0x10] sm:$0xff]
      %v3723 = vld [vmem:[#allocation5 + $0x18] sm:$0xff]
      %v3724 = vld [vmem:[#allocation5 + $0x20] sm:$0xff]
      %v3725 = vld [vmem:[#allocation5 + $0x28] sm:$0xff]
      %v3726 = vld [vmem:[#allocation5 + $0x30] sm:$0xff]
      %v3727 = vld [vmem:[#allocation5 + $0x38] sm:$0xff]
      %v3728 = vld [vmem:[%s4] sm:$0x1]
      %v3730 = vperm.slane %v3728, 0
      %v3732 = vadd.f32 %v3720, %v3730
      %v3733 = vadd.f32 %v3721, %v3730
      %v3734 = vadd.f32 %v3722, %v3730
      %v3735 = vadd.f32 %v3723, %v3730
      %v3736 = vadd.f32 %v3724, %v3730
      %v3737 = vadd.f32 %v3725, %v3730
      %v3738 = vadd.f32 %v3726, %v3730
      %v3739 = vadd.f32 %v3727, %v3730
      %v3740 = vmax.f32 %v3732, 0.0
      %v3741 = vmax.f32 %v3733, 0.0
      %v3742 = vmax.f32 %v3734, 0.0
      %v3743 = vmax.f32 %v3735, 0.0
      %v3744 = vmax.f32 %v3736, 0.0
      %v3745 = vmax.f32 %v3737, 0.0
      %v3746 = vmax.f32 %v3738, 0.0
      %v3747 = vmax.f32 %v3739, 0.0
      %3748 = vst.msk [vmem:[%s246] sm:$0xff] %vm462, %v3740
      %3749 = vst.msk [vmem:[%s246 + $0x8] sm:$0xff] %vm462, %v3741
      %3750 = vst.msk [vmem:[%s246 + $0x10] sm:$0xff] %vm462, %v3742
      %3751 = vst.msk [vmem:[%s246 + $0x18] sm:$0xff] %vm462, %v3743
      %3752 = vst.msk [vmem:[%s246 + $0x20] sm:$0xff] %vm462, %v3744
      %3753 = vst.msk [vmem:[%s246 + $0x28] sm:$0xff] %vm462, %v3745
      %3754 = vst.msk [vmem:[%s246 + $0x30] sm:$0xff] %vm462, %v3746
      %3755 = vst.msk [vmem:[%s246 + $0x38] sm:$0xff] %vm462, %v3747
      %s3756 = smul.u32 8, %s21
      %p3757 = scmp.lt.s32.totalorder %s20, 1
      %s3758 = scalar_select %p3757, %s20, 1
      %p3759 = scmp.lt.s32.totalorder %s3756, 7
      %s3760 = scalar_select %p3759, %s3756, 7
      %s3761 = smul.addr %s3758, 8
      %s3762 = sadd.s32 %s3760, %s3761
      %s3763 = smul.addr %s3762, 8
      %s3764 = scalar_lea.vmem %s5, %s3763
      // Predicated region
      $region49: #{deblur_down_forward.3} parent=39 // pred_check
        %p3765 = pneg %p158
      $region50: #{deblur_down_forward.3} parent=39 // pred_check_branch
        %3767 = sbr.rel (%p3765) target = $region52
      $region51: #{deblur_down_forward.3} parent=39 // pred_region
        %s3768 = smul.u32 8, %s21
      $region52: #{deblur_down_forward.3} parent=39 // pred_fallthru
        _
    $region40: #{deblur_down_forward.3} parent=5 // pred_fallthru
      _
    %p3769 = scmp.le.s32.totalorder 2, %s11
    // Predicated region
    $region53: #{deblur_down_forward.3} parent=5 // pred_check
      %p3770 = pneg %p3769
    $region54: #{deblur_down_forward.3} parent=5 // pred_check_branch
      %3772 = sbr.rel (%p3770) target = $region56
    $region55: #{deblur_down_forward.3} parent=5 // pred_region
      %s3773 = ssub.s32 %s11, 2
      // Predicated region
      $region57: #{deblur_down_forward.3} parent=55 // pred_check
        %p3774 = pneg %p164
      $region58: #{deblur_down_forward.3} parent=55 // pred_check_branch
        %3776 = sbr.rel (%p3774) target = $region60
      $region59: #{deblur_down_forward.3} parent=55 // pred_region
        %s3777 = smul.u32 8, %s23
        %p3778 = scmp.lt.s32.totalorder %s22, 1
        %s3779 = scalar_select %p3778, %s22, 1
        %p3780 = scmp.lt.s32.totalorder %s3777, 7
        %s3781 = scalar_select %p3780, %s3777, 7
        %s3782 = smul.addr %s3779, 8
        %s3783 = sadd.s32 %s3781, %s3782
        %s3784 = smul.addr %s3783, 8
        %s3785 = scalar_lea.vmem %s5, %s3784
      $region60: #{deblur_down_forward.3} parent=55 // pred_fallthru
        _
    $region56: #{deblur_down_forward.3} parent=5 // pred_fallthru
      _
  $region6: #{deblur_down_forward.3} parent=0 // loop_footer
    %s15 = sadd.s32 1, %s11
  $region7: #{deblur_down_forward.3} parent=0 // loop_footer_branch
    %10 = sbr.rel target = $region3
  $region8: #{deblur_down_forward.3} parent=0 // loop_exit
    _

</llo_original>
